<compile_context>
chip_gen: v5e
topology: v5e:2x2
jax: 0.10.0
libtpu: 0.0.40
codegen_flags: <defaults>
</compile_context>

<pallas_src>
import jax
import jax.numpy as jnp
from jax.experimental import pallas as pl
from jax.experimental.pallas import tpu as pltpu

FEAT_DIM = 1024     # DenseNet121 feature channels (fixed by Linear(1024+128, 512))
DEMO_DIM = 3
DEMO_HIDDEN = 128
CLS_HIDDEN = 512
NUM_CLASSES = 14
OUT_PAD = 128       # lane-dense output width; real logits in [:, :NUM_CLASSES]


def _chexnet_head_kernel(xf_ref, demo_ref,
                         w1x_ref, w1d_ref, b1_ref,
                         w2_ref, b2_ref,
                         out_ref):
    """Fused head for one batch tile.

    xf_ref   : (BT, 1024, HW) backbone feature map (channels on sublanes,
               spatial on lanes); f32 or bf16.
    demo_ref : (BT, 3)
    w1x_ref  : (1024, 512) classifier W1 rows for the image features
    w1d_ref  : (3, 512)    folded demographic path  (Wd @ W1[1024:])
    b1_ref   : (1, 512)    folded bias              (b1 + bd @ W1[1024:])
    w2_ref   : (512, 128)  final Linear, zero-padded to 128 output lanes
    b2_ref   : (1, 128)
    out_ref  : (BT, 128)
    """
    # AdaptiveAvgPool2d((1,1)) + Flatten == mean over the spatial (lane) axis.
    # Accumulate in f32 regardless of the feature-map dtype.
    pooled = jnp.mean(xf_ref[...].astype(jnp.float32), axis=-1)        # (BT, 1024)

    # concat([pooled, demo @ Wd + bd]) @ W1 + b1, with the demographic Linear
    # algebraically folded into W1's demographic rows (no nonlinearity between).
    h = (jnp.dot(pooled, w1x_ref[...], preferred_element_type=jnp.float32)
         + jnp.dot(demo_ref[...].astype(jnp.float32), w1d_ref[...],
                   preferred_element_type=jnp.float32)
         + b1_ref[...])                                                # (BT, 512)

    # ReLU
    h = jnp.maximum(h, 0.0)

    # Dropout(0.3): identity at inference time (module.eval() semantics).

    # Final Linear(512, 14), padded to 128 lanes for unmasked stores.
    out_ref[...] = (jnp.dot(h, w2_ref[...], preferred_element_type=jnp.float32)
                    + b2_ref[...]).astype(out_ref.dtype)               # (BT, 128)


def _choose_batch_tile(batch, hw, itemsize):
    """Pick a batch tile so double-buffered feature tiles stay within ~16 MiB
    (plus ~2.3 MiB of resident weights => comfortably under v7x's 64 MiB VMEM)."""
    budget = 16 * 1024 * 1024
    per_row = FEAT_DIM * hw * itemsize
    bt = max(1, budget // (2 * per_row))
    bt = int(min(bt, 256, batch))
    if bt == batch:
        return bt
    if bt >= 8:
        return (bt // 8) * 8          # keep batch-tiled blocks sublane-aligned
    return min(8, batch)


def chexnet_with_demographics_forward(x_nchw, demographics, params):
    """x_nchw: (B, 1024, H, W) backbone feature map (f32 or bf16);
    demographics: (B, 3). Returns (B, 14) logits in f32."""
    B, C, H, W = x_nchw.shape
    assert C == FEAT_DIM
    HW = H * W
    # Free reshape (no transpose, no extra HBM pass): (B, C, H, W) -> (B, C, HW).
    xf = x_nchw.reshape(B, C, HW)

    wd, bd, w1, b1, w2, b2 = (params["wd"], params["bd"], params["w1"],
                              params["b1"], params["w2"], params["b2"])
    w1x = w1[:FEAT_DIM, :].astype(jnp.float32)                       # (1024, 512)
    w1d = w1[FEAT_DIM:, :].astype(jnp.float32)                       # (128, 512)
    # Fold demographic Linear(3,128) into the classifier's first Linear.
    w1d_fold = (wd.astype(jnp.float32) @ w1d)                        # (3, 512)
    b1_fold = (b1 + bd @ w1d).astype(jnp.float32).reshape(1, CLS_HIDDEN)
    # Pad the final Linear to a 128-wide (lane-dense) output.
    w2p = jnp.zeros((CLS_HIDDEN, OUT_PAD), jnp.float32).at[:, :NUM_CLASSES].set(
        w2.astype(jnp.float32))
    b2p = jnp.zeros((1, OUT_PAD), jnp.float32).at[:, :NUM_CLASSES].set(
        b2.astype(jnp.float32))

    itemsize = jnp.dtype(xf.dtype).itemsize
    bt = _choose_batch_tile(B, HW, itemsize)
    grid = (pl.cdiv(B, bt),)

    # VMEM budget: double-buffered per-tile I/O + (conservatively double-counted)
    # resident weights, with headroom; clamp to stay valid on v7x (64 MiB).
    tile_io_bytes = 2 * (bt * FEAT_DIM * HW * itemsize
                         + bt * DEMO_DIM * 4
                         + bt * OUT_PAD * 4)
    weight_bytes = 2 * 4 * (FEAT_DIM * CLS_HIDDEN + DEMO_DIM * CLS_HIDDEN
                            + CLS_HIDDEN + CLS_HIDDEN * OUT_PAD + OUT_PAD)
    vmem_limit = int(min(64 * 1024 * 1024,
                         max(int(1.5 * (tile_io_bytes + weight_bytes)),
                             16 * 1024 * 1024)))

    cost = pl.CostEstimate(
        flops=int(B * (HW * FEAT_DIM                      # spatial mean
                       + 2 * FEAT_DIM * CLS_HIDDEN        # pooled @ W1x
                       + 2 * DEMO_DIM * CLS_HIDDEN        # demo @ W1d'
                       + CLS_HIDDEN                       # ReLU
                       + 2 * CLS_HIDDEN * OUT_PAD)),      # h @ W2
        transcendentals=0,
        bytes_accessed=int(B * FEAT_DIM * HW * itemsize
                           + B * DEMO_DIM * 4
                           + weight_bytes // 2
                           + B * OUT_PAD * 4),
    )

    out_padded = pl.pallas_call(
        _chexnet_head_kernel,
        out_shape=jax.ShapeDtypeStruct((B, OUT_PAD), jnp.float32),
        grid=grid,
        in_specs=[
            pl.BlockSpec((bt, FEAT_DIM, HW), lambda i: (i, 0, 0)),   # feature map
            pl.BlockSpec((bt, DEMO_DIM), lambda i: (i, 0)),          # demographics
            pl.BlockSpec((FEAT_DIM, CLS_HIDDEN), lambda i: (0, 0)),  # W1x (resident)
            pl.BlockSpec((DEMO_DIM, CLS_HIDDEN), lambda i: (0, 0)),  # W1d' (resident)
            pl.BlockSpec((1, CLS_HIDDEN), lambda i: (0, 0)),         # b1'  (resident)
            pl.BlockSpec((CLS_HIDDEN, OUT_PAD), lambda i: (0, 0)),   # W2   (resident)
            pl.BlockSpec((1, OUT_PAD), lambda i: (0, 0)),            # b2   (resident)
        ],
        out_specs=pl.BlockSpec((bt, OUT_PAD), lambda i: (i, 0)),
        compiler_params=pltpu.CompilerParams(
            dimension_semantics=("parallel",),
            vmem_limit_bytes=vmem_limit),
        cost_estimate=cost,
    )(xf, demographics, w1x, w1d_fold, b1_fold, w2p, b2p)

    return out_padded[:, :NUM_CLASSES]


def init_params(key):
    """Deterministic synthetic parameters, PyTorch-Linear-style uniform init."""
    ks = jax.random.split(key, 6)

    def linear(kw, kb, fan_in, fan_out):
        bound = 1.0 / jnp.sqrt(float(fan_in))
        w = jax.random.uniform(kw, (fan_in, fan_out), jnp.float32, -bound, bound)
        b = jax.random.uniform(kb, (fan_out,), jnp.float32, -bound, bound)
        return w, b

    wd, bd = linear(ks[0], ks[1], DEMO_DIM, DEMO_HIDDEN)
    w1, b1 = linear(ks[2], ks[3], FEAT_DIM + DEMO_HIDDEN, CLS_HIDDEN)
    w2, b2 = linear(ks[4], ks[5], CLS_HIDDEN, NUM_CLASSES)
    return {"wd": wd, "bd": bd, "w1": w1, "b1": b1, "w2": w2, "b2": b2}


def reference_forward(x_nchw, demographics, params):
    """Plain-JAX reference mirroring the PyTorch forward (eval mode)."""
    pooled = jnp.mean(x_nchw.astype(jnp.float32), axis=(2, 3))           # (B, 1024)
    d = demographics @ params["wd"] + params["bd"]                       # (B, 128)
    combined = jnp.concatenate([pooled, d], axis=1)                      # (B, 1152)
    h = jnp.maximum(combined @ params["w1"] + params["b1"], 0.0)         # (B, 512)
    return h @ params["w2"] + params["b2"]                               # (B, 14)


if __name__ == "__main__":
    key = jax.random.PRNGKey(0)
    k_x, k_d, k_p = jax.random.split(key, 3)

    B, H, W = 2, 8, 8
    x = jax.random.normal(k_x, (B, FEAT_DIM, H, W), jnp.float32)   # NCHW feature map
    demographics = jax.random.normal(k_d, (B, DEMO_DIM), jnp.float32)
    params = init_params(k_p)

    # f32 feature map path.
    out = jax.block_until_ready(
        chexnet_with_demographics_forward(x, demographics, params))
    ref = reference_forward(x, demographics, params)
    assert out.shape == (B, NUM_CLASSES)
    assert jnp.allclose(out, ref, atol=1e-3, rtol=1e-3), "f32 mismatch vs reference"

    # bf16 feature map path (as produced by a bf16 backbone); the kernel still
    # pools and accumulates in f32.
    x_bf = x.astype(jnp.bfloat16)
    out_bf = jax.block_until_ready(
        chexnet_with_demographics_forward(x_bf, demographics, params))
    ref_bf = reference_forward(x_bf.astype(jnp.float32), demographics, params)
    assert jnp.allclose(out_bf, ref_bf, atol=1e-3, rtol=1e-3), "bf16 mismatch vs reference"

    print("KERNEL_OK")
</pallas_src>

<mosaic_0001>
module attributes {stable_mosaic.version = 11 : i64} {
  func.func @_chexnet_head_kernel(%arg0: i32, %arg1: memref<2x1024x64xf32, #tpu.memory_space<vmem>>, %arg2: memref<2x3xf32, #tpu.memory_space<vmem>>, %arg3: memref<1024x512xf32, #tpu.memory_space<vmem>>, %arg4: memref<3x512xf32, #tpu.memory_space<vmem>>, %arg5: memref<1x512xf32, #tpu.memory_space<vmem>>, %arg6: memref<512x128xf32, #tpu.memory_space<vmem>>, %arg7: memref<1x128xf32, #tpu.memory_space<vmem>>, %arg8: memref<2x128xf32, #tpu.memory_space<vmem>>) attributes {dimension_semantics = [#tpu.dimension_semantics<parallel>], iteration_bounds = array<i64: 1>, scalar_prefetch = 0 : i64, scratch_operands = 0 : i64, tpu.core_type = #tpu.core_type<tc>, window_params = [{transform_indices = @transform_0, window_bounds = array<i64: 2, 1024, 64>}, {transform_indices = @transform_1, window_bounds = array<i64: 2, 3>}, {pipeline_mode = #tpu.pipeline_mode<synchronous>, transform_indices = @transform_2, window_bounds = array<i64: 1024, 512>}, {pipeline_mode = #tpu.pipeline_mode<synchronous>, transform_indices = @transform_3, window_bounds = array<i64: 3, 512>}, {pipeline_mode = #tpu.pipeline_mode<synchronous>, transform_indices = @transform_4, window_bounds = array<i64: 1, 512>}, {pipeline_mode = #tpu.pipeline_mode<synchronous>, transform_indices = @transform_5, window_bounds = array<i64: 512, 128>}, {pipeline_mode = #tpu.pipeline_mode<synchronous>, transform_indices = @transform_6, window_bounds = array<i64: 1, 128>}, {transform_indices = @transform_7, window_bounds = array<i64: 2, 128>}]} {
    %c0 = arith.constant 0 : index
    %c0_0 = arith.constant 0 : index
    %c0_1 = arith.constant 0 : index
    %0 = vector.load %arg1[%c0, %c0_0, %c0_1] : memref<2x1024x64xf32, #tpu.memory_space<vmem>>, vector<2x1024x64xf32>
    %cst = arith.constant dense<0.000000e+00> : vector<2x1024xf32>
    %1 = vector.multi_reduction <add>, %0, %cst [2] : vector<2x1024x64xf32> to vector<2x1024xf32>
    %cst_2 = arith.constant 6.400000e+01 : f32
    %2 = vector.broadcast %cst_2 : f32 to vector<2x1024xf32>
    %3 = arith.divf %1, %2 : vector<2x1024xf32>
    %c0_3 = arith.constant 0 : index
    %c0_4 = arith.constant 0 : index
    %4 = vector.load %arg3[%c0_3, %c0_4] : memref<1024x512xf32, #tpu.memory_space<vmem>>, vector<1024x512xf32>
    %cst_5 = arith.constant dense<0.000000e+00> : vector<2x512xf32>
    %5 = tpu.matmul %3, %4, %cst_5 {dimension_numbers = #tpu.dot_dimension_numbers<[1], [0], [0], [1], [0, 0, 1, 1], [], []>} : vector<2x1024xf32>, vector<1024x512xf32>, vector<2x512xf32> -> vector<2x512xf32>
    %c0_6 = arith.constant 0 : index
    %c0_7 = arith.constant 0 : index
    %6 = vector.load %arg2[%c0_6, %c0_7] : memref<2x3xf32, #tpu.memory_space<vmem>>, vector<2x3xf32>
    %c0_8 = arith.constant 0 : index
    %c0_9 = arith.constant 0 : index
    %7 = vector.load %arg4[%c0_8, %c0_9] : memref<3x512xf32, #tpu.memory_space<vmem>>, vector<3x512xf32>
    %cst_10 = arith.constant dense<0.000000e+00> : vector<2x512xf32>
    %8 = tpu.matmul %6, %7, %cst_10 {dimension_numbers = #tpu.dot_dimension_numbers<[1], [0], [0], [1], [0, 0, 1, 1], [], []>} : vector<2x3xf32>, vector<3x512xf32>, vector<2x512xf32> -> vector<2x512xf32>
    %9 = arith.addf %5, %8 : vector<2x512xf32>
    %c0_11 = arith.constant 0 : index
    %c0_12 = arith.constant 0 : index
    %10 = vector.load %arg5[%c0_11, %c0_12] : memref<1x512xf32, #tpu.memory_space<vmem>>, vector<1x512xf32>
    %11 = vector.broadcast %10 : vector<1x512xf32> to vector<2x512xf32>
    %12 = arith.addf %9, %11 : vector<2x512xf32>
    %cst_13 = arith.constant 0.000000e+00 : f32
    %13 = vector.broadcast %cst_13 : f32 to vector<2x512xf32>
    %14 = arith.maximumf %12, %13 : vector<2x512xf32>
    %c0_14 = arith.constant 0 : index
    %c0_15 = arith.constant 0 : index
    %15 = vector.load %arg6[%c0_14, %c0_15] : memref<512x128xf32, #tpu.memory_space<vmem>>, vector<512x128xf32>
    %cst_16 = arith.constant dense<0.000000e+00> : vector<2x128xf32>
    %16 = tpu.matmul %14, %15, %cst_16 {dimension_numbers = #tpu.dot_dimension_numbers<[1], [0], [0], [1], [0, 0, 1, 1], [], []>} : vector<2x512xf32>, vector<512x128xf32>, vector<2x128xf32> -> vector<2x128xf32>
    %c0_17 = arith.constant 0 : index
    %c0_18 = arith.constant 0 : index
    %17 = vector.load %arg7[%c0_17, %c0_18] : memref<1x128xf32, #tpu.memory_space<vmem>>, vector<1x128xf32>
    %18 = vector.broadcast %17 : vector<1x128xf32> to vector<2x128xf32>
    %19 = arith.addf %16, %18 : vector<2x128xf32>
    %c0_19 = arith.constant 0 : index
    %c0_20 = arith.constant 0 : index
    %20 = vector.load %arg8[%c0_19, %c0_20] : memref<2x128xf32, #tpu.memory_space<vmem>>, vector<2x128xf32>
    tpu.vector_store %arg8[%c0_19, %c0_20], %19 {strides = array<i32>} : memref<2x128xf32, #tpu.memory_space<vmem>>, vector<2x128xf32>,
    return
  }
  func.func @transform_0(%arg0: i32) -> (i32, i32, i32) {
    %c0_i32 = arith.constant 0 : i32
    %c0_i32_0 = arith.constant 0 : i32
    %c0_i32_1 = arith.constant 0 : i32
    return %arg0, %c0_i32, %c0_i32_0 : i32, i32, i32
  }
  func.func @transform_1(%arg0: i32) -> (i32, i32) {
    %c0_i32 = arith.constant 0 : i32
    %c0_i32_0 = arith.constant 0 : i32
    return %arg0, %c0_i32 : i32, i32
  }
  func.func @transform_2(%arg0: i32) -> (i32, i32) {
    %c0_i32 = arith.constant 0 : i32
    %c0_i32_0 = arith.constant 0 : i32
    %c0_i32_1 = arith.constant 0 : i32
    return %c0_i32, %c0_i32_0 : i32, i32
  }
  func.func @transform_3(%arg0: i32) -> (i32, i32) {
    %c0_i32 = arith.constant 0 : i32
    %c0_i32_0 = arith.constant 0 : i32
    %c0_i32_1 = arith.constant 0 : i32
    return %c0_i32, %c0_i32_0 : i32, i32
  }
  func.func @transform_4(%arg0: i32) -> (i32, i32) {
    %c0_i32 = arith.constant 0 : i32
    %c0_i32_0 = arith.constant 0 : i32
    %c0_i32_1 = arith.constant 0 : i32
    return %c0_i32, %c0_i32_0 : i32, i32
  }
  func.func @transform_5(%arg0: i32) -> (i32, i32) {
    %c0_i32 = arith.constant 0 : i32
    %c0_i32_0 = arith.constant 0 : i32
    %c0_i32_1 = arith.constant 0 : i32
    return %c0_i32, %c0_i32_0 : i32, i32
  }
  func.func @transform_6(%arg0: i32) -> (i32, i32) {
    %c0_i32 = arith.constant 0 : i32
    %c0_i32_0 = arith.constant 0 : i32
    %c0_i32_1 = arith.constant 0 : i32
    return %c0_i32, %c0_i32_0 : i32, i32
  }
  func.func @transform_7(%arg0: i32) -> (i32, i32) {
    %c0_i32 = arith.constant 0 : i32
    %c0_i32_0 = arith.constant 0 : i32
    return %arg0, %c0_i32 : i32, i32
  }
}

</mosaic_0001>

<llo_original>
// kernel: tpu_custom_call.1
$region0: #{tpu_custom_call.1}
  #allocation0 [shape = 'u32[]', space=smem, size = 0x4, offset = 0x4, fixed_abs, tag = 'smem constant byte address 0x4 - core index']
  #allocation1 [shape = 'u32[72,128]{1,0:T(1,128)}', space=vmem, size = 0x9000, scoped, tag = 'internal scratch']
  %s0 = inlined_call_operand.vmem [shape: f32[2,1024,64], index: 0, kind: input, shape index: {}]
  %s1 = inlined_call_operand.hbm [shape: f32[2,3], index: 1, kind: input, shape index: {}]
  %s2 = inlined_call_operand.hbm [shape: f32[1024,512], index: 2, kind: input, shape index: {}]
  %s3 = inlined_call_operand.hbm [shape: f32[3,512], index: 3, kind: input, shape index: {}]
  %s4 = inlined_call_operand.hbm [shape: f32[1,512], index: 4, kind: input, shape index: {}]
  %s5 = inlined_call_operand.hbm [shape: f32[512,128], index: 5, kind: input, shape index: {}]
  %s6 = inlined_call_operand.hbm [shape: f32[1,128], index: 6, kind: input, shape index: {}]
  %s7 = inlined_call_operand.hbm [shape: f32[2,128], index: 7, kind: output, shape index: {}]
  %s8 = sld [smem:[#allocation0]]
  $region62: #{tpu_custom_call.1} parent=0
    _
  %s10 = ssub.s32 1, %s8
  %s11 = scalar_select 0, %s10, %s8
  $region1: #{tpu_custom_call.1} parent=0
    #allocation2 [shape = 'u8[1024]{0}', space=vmem, size = 0x400, scoped, tag = 'input window, operand 1, single buffered']
    #allocation3 [shape = 's32[1]{0}', space=sflag, size = 0x4, scoped, tag = 'scoped memory for tpu_custom_call.1']
    #allocation4 [shape = 's32[1]{0}', space=sflag, size = 0x4, scoped, tag = 'scoped memory for tpu_custom_call.1']
    #allocation5 [shape = 'u8[2097152]{0}', space=vmem, size = 0x200000, scoped, tag = 'input window, operand 2, single buffered']
    #allocation6 [shape = 's32[1]{0}', space=sflag, size = 0x4, scoped, tag = 'scoped memory for tpu_custom_call.1']
    #allocation7 [shape = 'u8[8192]{0}', space=vmem, size = 0x2000, scoped, tag = 'input window, operand 3, single buffered']
    #allocation8 [shape = 'u8[2048]{0}', space=vmem, size = 0x800, scoped, tag = 'input window, operand 4, single buffered']
    #allocation9 [shape = 's32[1]{0}', space=sflag, size = 0x4, scoped, tag = 'scoped memory for tpu_custom_call.1']
    #allocation10 [shape = 'u8[262144]{0}', space=vmem, size = 0x40000, scoped, tag = 'input window, operand 5, single buffered']
    #allocation11 [shape = 'u8[512]{0}', space=vmem, size = 0x400, scoped, tag = 'input window, operand 6, single buffered']
    #allocation12 [shape = 's32[1]{0}', space=sflag, size = 0x4, scoped, tag = 'scoped memory for tpu_custom_call.1']
    #allocation13 [shape = 'u8[1024]{0}', space=vmem, size = 0x400, scoped, tag = 'output window, operand 0, single buffered']
    %12 = vsyncpa [#allocation3], 0
    %13 = vsyncpa [#allocation6], 0
    %14 = vsyncpa [#allocation9], 0
    %15 = vsyncpa [#allocation12], 0
    %16 = vsyncpa [#allocation4], 0
    // Predicated region
    $region2: #{tpu_custom_call.1} parent=1 // pred_check
      _
    $region3: #{tpu_custom_call.1} parent=1 // pred_check_branch
      %18 = sbr.rel (0) target = $region5
    $region4: #{tpu_custom_call.1} parent=1 // pred_region
      _
    $region5: #{tpu_custom_call.1} parent=1 // pred_fallthru
      _
    // Predicated region
    $region6: #{tpu_custom_call.1} parent=1 // pred_check
      _
    $region7: #{tpu_custom_call.1} parent=1 // pred_check_branch
      %20 = sbr.rel (0) target = $region9
    $region8: #{tpu_custom_call.1} parent=1 // pred_region
      %22 = vsyncadd [#allocation3], 0
      %s24 = sshll.u32 %s1, 4
      %s25 = int_to_ptr.hbm [resolvable:$true] %s24
      %s26 = sshll.u32 [#allocation2], 4
      %s27 = int_to_ptr.vmem [resolvable:$true] %s26
      %29 = dma.hbm_to_vmem [thread:$0]  %s25, 32, %s27, [#allocation3]
    $region9: #{tpu_custom_call.1} parent=1 // pred_fallthru
      _
    // Predicated region
    $region10: #{tpu_custom_call.1} parent=1 // pred_check
      _
    $region11: #{tpu_custom_call.1} parent=1 // pred_check_branch
      %31 = sbr.rel (0) target = $region13
    $region12: #{tpu_custom_call.1} parent=1 // pred_region
      %33 = vsyncadd [#allocation6], 0
      %s34 = sshll.u32 %s2, 4
      %s35 = int_to_ptr.hbm [resolvable:$true] %s34
      %s36 = sshll.u32 [#allocation5], 4
      %s37 = int_to_ptr.vmem [resolvable:$true] %s36
      %42 = dma.hbm_to_vmem [thread:$0]  %s35, 65536, %s37, [#allocation6], 512, 512, 32
    $region13: #{tpu_custom_call.1} parent=1 // pred_fallthru
      _
    // Predicated region
    $region14: #{tpu_custom_call.1} parent=1 // pred_check
      _
    $region15: #{tpu_custom_call.1} parent=1 // pred_check_branch
      %44 = sbr.rel (0) target = $region17
    $region16: #{tpu_custom_call.1} parent=1 // pred_region
      %46 = vsyncadd [#allocation6], 0
      %s48 = sshll.u32 %s3, 4
      %s49 = int_to_ptr.hbm [resolvable:$true] %s48
      %s50 = sshll.u32 [#allocation7], 4
      %s51 = int_to_ptr.vmem [resolvable:$true] %s50
      %53 = dma.hbm_to_vmem [thread:$0]  %s49, 256, %s51, [#allocation6]
    $region17: #{tpu_custom_call.1} parent=1 // pred_fallthru
      _
    // Predicated region
    $region18: #{tpu_custom_call.1} parent=1 // pred_check
      _
    $region19: #{tpu_custom_call.1} parent=1 // pred_check_branch
      %55 = sbr.rel (0) target = $region21
    $region20: #{tpu_custom_call.1} parent=1 // pred_region
      %57 = vsyncadd [#allocation9], 0
      %s59 = sshll.u32 %s4, 4
      %s60 = int_to_ptr.hbm [resolvable:$true] %s59
      %s61 = sshll.u32 [#allocation8], 4
      %s62 = int_to_ptr.vmem [resolvable:$true] %s61
      %64 = dma.hbm_to_vmem [thread:$0]  %s60, 64, %s62, [#allocation9]
    $region21: #{tpu_custom_call.1} parent=1 // pred_fallthru
      _
    // Predicated region
    $region22: #{tpu_custom_call.1} parent=1 // pred_check
      _
    $region23: #{tpu_custom_call.1} parent=1 // pred_check_branch
      %66 = sbr.rel (0) target = $region25
    $region24: #{tpu_custom_call.1} parent=1 // pred_region
      %68 = vsyncadd [#allocation9], 0
      %s69 = sshll.u32 %s5, 4
      %s70 = int_to_ptr.hbm [resolvable:$true] %s69
      %s71 = sshll.u32 [#allocation10], 4
      %s72 = int_to_ptr.vmem [resolvable:$true] %s71
      %77 = dma.hbm_to_vmem [thread:$0]  %s70, 8192, %s72, [#allocation9], 128, 128, 8
    $region25: #{tpu_custom_call.1} parent=1 // pred_fallthru
      _
    // Predicated region
    $region26: #{tpu_custom_call.1} parent=1 // pred_check
      _
    $region27: #{tpu_custom_call.1} parent=1 // pred_check_branch
      %79 = sbr.rel (0) target = $region29
    $region28: #{tpu_custom_call.1} parent=1 // pred_region
      %81 = vsyncadd [#allocation12], 0
      %s83 = sshll.u32 %s6, 4
      %s84 = int_to_ptr.hbm [resolvable:$true] %s83
      %s85 = sshll.u32 [#allocation11], 4
      %s86 = int_to_ptr.vmem [resolvable:$true] %s85
      %88 = dma.hbm_to_vmem [thread:$0]  %s84, 16, %s86, [#allocation12]
    $region29: #{tpu_custom_call.1} parent=1 // pred_fallthru
      _
    // Predicated region
    $region30: #{tpu_custom_call.1} parent=1 // pred_check
      _
    $region31: #{tpu_custom_call.1} parent=1 // pred_check_branch
      %90 = sbr.rel (0) target = $region33
    $region32: #{tpu_custom_call.1} parent=1 // pred_region
      %92 = dma.done [#allocation3], 32
    $region33: #{tpu_custom_call.1} parent=1 // pred_fallthru
      _
    // Predicated region
    $region34: #{tpu_custom_call.1} parent=1 // pred_check
      _
    $region35: #{tpu_custom_call.1} parent=1 // pred_check_branch
      %94 = sbr.rel (0) target = $region37
    $region36: #{tpu_custom_call.1} parent=1 // pred_region
      %96 = dma.done [#allocation6], 65536
    $region37: #{tpu_custom_call.1} parent=1 // pred_fallthru
      _
    // Predicated region
    $region38: #{tpu_custom_call.1} parent=1 // pred_check
      _
    $region39: #{tpu_custom_call.1} parent=1 // pred_check_branch
      %98 = sbr.rel (0) target = $region41
    $region40: #{tpu_custom_call.1} parent=1 // pred_region
      %100 = dma.done [#allocation6], 256
    $region41: #{tpu_custom_call.1} parent=1 // pred_fallthru
      _
    // Predicated region
    $region42: #{tpu_custom_call.1} parent=1 // pred_check
      _
    $region43: #{tpu_custom_call.1} parent=1 // pred_check_branch
      %102 = sbr.rel (0) target = $region45
    $region44: #{tpu_custom_call.1} parent=1 // pred_region
      %104 = dma.done [#allocation9], 64
    $region45: #{tpu_custom_call.1} parent=1 // pred_fallthru
      _
    // Predicated region
    $region46: #{tpu_custom_call.1} parent=1 // pred_check
      _
    $region47: #{tpu_custom_call.1} parent=1 // pred_check_branch
      %106 = sbr.rel (0) target = $region49
    $region48: #{tpu_custom_call.1} parent=1 // pred_region
      %108 = dma.done [#allocation9], 8192
    $region49: #{tpu_custom_call.1} parent=1 // pred_fallthru
      _
    // Predicated region
    $region50: #{tpu_custom_call.1} parent=1 // pred_check
      _
    $region51: #{tpu_custom_call.1} parent=1 // pred_check_branch
      %110 = sbr.rel (0) target = $region53
    $region52: #{tpu_custom_call.1} parent=1 // pred_region
      %112 = dma.done [#allocation12], 16
    $region53: #{tpu_custom_call.1} parent=1 // pred_fallthru
      _
    %v113 = vld [vmem:[%s0] sm:$0xff]
    %v114 = vld [vmem:[%s0 + $0x8] sm:$0xff]
    %v115 = vld [vmem:[%s0 + $0x10] sm:$0xff]
    %v116 = vld [vmem:[%s0 + $0x18] sm:$0xff]
    %v117 = vld [vmem:[%s0 + $0x20] sm:$0xff]
    %v118 = vld [vmem:[%s0 + $0x28] sm:$0xff]
    %v119 = vld [vmem:[%s0 + $0x30] sm:$0xff]
    %v120 = vld [vmem:[%s0 + $0x38] sm:$0xff]
    %v121 = vld [vmem:[%s0 + $0x40] sm:$0xff]
    %v122 = vld [vmem:[%s0 + $0x48] sm:$0xff]
    %v123 = vld [vmem:[%s0 + $0x50] sm:$0xff]
    %v124 = vld [vmem:[%s0 + $0x58] sm:$0xff]
    %v125 = vld [vmem:[%s0 + $0x60] sm:$0xff]
    %v126 = vld [vmem:[%s0 + $0x68] sm:$0xff]
    %v127 = vld [vmem:[%s0 + $0x70] sm:$0xff]
    %v128 = vld [vmem:[%s0 + $0x78] sm:$0xff]
    %v129 = vld [vmem:[%s0 + $0x80] sm:$0xff]
    %v130 = vld [vmem:[%s0 + $0x88] sm:$0xff]
    %v131 = vld [vmem:[%s0 + $0x90] sm:$0xff]
    %v132 = vld [vmem:[%s0 + $0x98] sm:$0xff]
    %v133 = vld [vmem:[%s0 + $0xa0] sm:$0xff]
    %v134 = vld [vmem:[%s0 + $0xa8] sm:$0xff]
    %v135 = vld [vmem:[%s0 + $0xb0] sm:$0xff]
    %v136 = vld [vmem:[%s0 + $0xb8] sm:$0xff]
    %v137 = vld [vmem:[%s0 + $0xc0] sm:$0xff]
    %v138 = vld [vmem:[%s0 + $0xc8] sm:$0xff]
    %v139 = vld [vmem:[%s0 + $0xd0] sm:$0xff]
    %v140 = vld [vmem:[%s0 + $0xd8] sm:$0xff]
    %v141 = vld [vmem:[%s0 + $0xe0] sm:$0xff]
    %v142 = vld [vmem:[%s0 + $0xe8] sm:$0xff]
    %v143 = vld [vmem:[%s0 + $0xf0] sm:$0xff]
    %v144 = vld [vmem:[%s0 + $0xf8] sm:$0xff]
    %v145 = vld [vmem:[%s0 + $0x100] sm:$0xff]
    %v146 = vld [vmem:[%s0 + $0x108] sm:$0xff]
    %v147 = vld [vmem:[%s0 + $0x110] sm:$0xff]
    %v148 = vld [vmem:[%s0 + $0x118] sm:$0xff]
    %v149 = vld [vmem:[%s0 + $0x120] sm:$0xff]
    %v150 = vld [vmem:[%s0 + $0x128] sm:$0xff]
    %v151 = vld [vmem:[%s0 + $0x130] sm:$0xff]
    %v152 = vld [vmem:[%s0 + $0x138] sm:$0xff]
    %v153 = vld [vmem:[%s0 + $0x140] sm:$0xff]
    %v154 = vld [vmem:[%s0 + $0x148] sm:$0xff]
    %v155 = vld [vmem:[%s0 + $0x150] sm:$0xff]
    %v156 = vld [vmem:[%s0 + $0x158] sm:$0xff]
    %v157 = vld [vmem:[%s0 + $0x160] sm:$0xff]
    %v158 = vld [vmem:[%s0 + $0x168] sm:$0xff]
    %v159 = vld [vmem:[%s0 + $0x170] sm:$0xff]
    %v160 = vld [vmem:[%s0 + $0x178] sm:$0xff]
    %v161 = vld [vmem:[%s0 + $0x180] sm:$0xff]
    %v162 = vld [vmem:[%s0 + $0x188] sm:$0xff]
    %v163 = vld [vmem:[%s0 + $0x190] sm:$0xff]
    %v164 = vld [vmem:[%s0 + $0x198] sm:$0xff]
    %v165 = vld [vmem:[%s0 + $0x1a0] sm:$0xff]
    %v166 = vld [vmem:[%s0 + $0x1a8] sm:$0xff]
    %v167 = vld [vmem:[%s0 + $0x1b0] sm:$0xff]
    %v168 = vld [vmem:[%s0 + $0x1b8] sm:$0xff]
    %v169 = vld [vmem:[%s0 + $0x1c0] sm:$0xff]
    %v170 = vld [vmem:[%s0 + $0x1c8] sm:$0xff]
    %v171 = vld [vmem:[%s0 + $0x1d0] sm:$0xff]
    %v172 = vld [vmem:[%s0 + $0x1d8] sm:$0xff]
    %v173 = vld [vmem:[%s0 + $0x1e0] sm:$0xff]
    %v174 = vld [vmem:[%s0 + $0x1e8] sm:$0xff]
    %v175 = vld [vmem:[%s0 + $0x1f0] sm:$0xff]
    %v176 = vld [vmem:[%s0 + $0x1f8] sm:$0xff]
    %v177 = vld [vmem:[%s0 + $0x200] sm:$0xff]
    %v178 = vld [vmem:[%s0 + $0x208] sm:$0xff]
    %v179 = vld [vmem:[%s0 + $0x210] sm:$0xff]
    %v180 = vld [vmem:[%s0 + $0x218] sm:$0xff]
    %v181 = vld [vmem:[%s0 + $0x220] sm:$0xff]
    %v182 = vld [vmem:[%s0 + $0x228] sm:$0xff]
    %v183 = vld [vmem:[%s0 + $0x230] sm:$0xff]
    %v184 = vld [vmem:[%s0 + $0x238] sm:$0xff]
    %v185 = vld [vmem:[%s0 + $0x240] sm:$0xff]
    %v186 = vld [vmem:[%s0 + $0x248] sm:$0xff]
    %v187 = vld [vmem:[%s0 + $0x250] sm:$0xff]
    %v188 = vld [vmem:[%s0 + $0x258] sm:$0xff]
    %v189 = vld [vmem:[%s0 + $0x260] sm:$0xff]
    %v190 = vld [vmem:[%s0 + $0x268] sm:$0xff]
    %v191 = vld [vmem:[%s0 + $0x270] sm:$0xff]
    %v192 = vld [vmem:[%s0 + $0x278] sm:$0xff]
    %v193 = vld [vmem:[%s0 + $0x280] sm:$0xff]
    %v194 = vld [vmem:[%s0 + $0x288] sm:$0xff]
    %v195 = vld [vmem:[%s0 + $0x290] sm:$0xff]
    %v196 = vld [vmem:[%s0 + $0x298] sm:$0xff]
    %v197 = vld [vmem:[%s0 + $0x2a0] sm:$0xff]
    %v198 = vld [vmem:[%s0 + $0x2a8] sm:$0xff]
    %v199 = vld [vmem:[%s0 + $0x2b0] sm:$0xff]
    %v200 = vld [vmem:[%s0 + $0x2b8] sm:$0xff]
    %v201 = vld [vmem:[%s0 + $0x2c0] sm:$0xff]
    %v202 = vld [vmem:[%s0 + $0x2c8] sm:$0xff]
    %v203 = vld [vmem:[%s0 + $0x2d0] sm:$0xff]
    %v204 = vld [vmem:[%s0 + $0x2d8] sm:$0xff]
    %v205 = vld [vmem:[%s0 + $0x2e0] sm:$0xff]
    %v206 = vld [vmem:[%s0 + $0x2e8] sm:$0xff]
    %v207 = vld [vmem:[%s0 + $0x2f0] sm:$0xff]
    %v208 = vld [vmem:[%s0 + $0x2f8] sm:$0xff]
    %v209 = vld [vmem:[%s0 + $0x300] sm:$0xff]
    %v210 = vld [vmem:[%s0 + $0x308] sm:$0xff]
    %v211 = vld [vmem:[%s0 + $0x310] sm:$0xff]
    %v212 = vld [vmem:[%s0 + $0x318] sm:$0xff]
    %v213 = vld [vmem:[%s0 + $0x320] sm:$0xff]
    %v214 = vld [vmem:[%s0 + $0x328] sm:$0xff]
    %v215 = vld [vmem:[%s0 + $0x330] sm:$0xff]
    %v216 = vld [vmem:[%s0 + $0x338] sm:$0xff]
    %v217 = vld [vmem:[%s0 + $0x340] sm:$0xff]
    %v218 = vld [vmem:[%s0 + $0x348] sm:$0xff]
    %v219 = vld [vmem:[%s0 + $0x350] sm:$0xff]
    %v220 = vld [vmem:[%s0 + $0x358] sm:$0xff]
    %v221 = vld [vmem:[%s0 + $0x360] sm:$0xff]
    %v222 = vld [vmem:[%s0 + $0x368] sm:$0xff]
    %v223 = vld [vmem:[%s0 + $0x370] sm:$0xff]
    %v224 = vld [vmem:[%s0 + $0x378] sm:$0xff]
    %v225 = vld [vmem:[%s0 + $0x380] sm:$0xff]
    %v226 = vld [vmem:[%s0 + $0x388] sm:$0xff]
    %v227 = vld [vmem:[%s0 + $0x390] sm:$0xff]
    %v228 = vld [vmem:[%s0 + $0x398] sm:$0xff]
    %v229 = vld [vmem:[%s0 + $0x3a0] sm:$0xff]
    %v230 = vld [vmem:[%s0 + $0x3a8] sm:$0xff]
    %v231 = vld [vmem:[%s0 + $0x3b0] sm:$0xff]
    %v232 = vld [vmem:[%s0 + $0x3b8] sm:$0xff]
    %v233 = vld [vmem:[%s0 + $0x3c0] sm:$0xff]
    %v234 = vld [vmem:[%s0 + $0x3c8] sm:$0xff]
    %v235 = vld [vmem:[%s0 + $0x3d0] sm:$0xff]
    %v236 = vld [vmem:[%s0 + $0x3d8] sm:$0xff]
    %v237 = vld [vmem:[%s0 + $0x3e0] sm:$0xff]
    %v238 = vld [vmem:[%s0 + $0x3e8] sm:$0xff]
    %v239 = vld [vmem:[%s0 + $0x3f0] sm:$0xff]
    %v240 = vld [vmem:[%s0 + $0x3f8] sm:$0xff]
    %v241 = vld [vmem:[%s0 + $0x400] sm:$0xff]
    %v242 = vld [vmem:[%s0 + $0x408] sm:$0xff]
    %v243 = vld [vmem:[%s0 + $0x410] sm:$0xff]
    %v244 = vld [vmem:[%s0 + $0x418] sm:$0xff]
    %v245 = vld [vmem:[%s0 + $0x420] sm:$0xff]
    %v246 = vld [vmem:[%s0 + $0x428] sm:$0xff]
    %v247 = vld [vmem:[%s0 + $0x430] sm:$0xff]
    %v248 = vld [vmem:[%s0 + $0x438] sm:$0xff]
    %v249 = vld [vmem:[%s0 + $0x440] sm:$0xff]
    %v250 = vld [vmem:[%s0 + $0x448] sm:$0xff]
    %v251 = vld [vmem:[%s0 + $0x450] sm:$0xff]
    %v252 = vld [vmem:[%s0 + $0x458] sm:$0xff]
    %v253 = vld [vmem:[%s0 + $0x460] sm:$0xff]
    %v254 = vld [vmem:[%s0 + $0x468] sm:$0xff]
    %v255 = vld [vmem:[%s0 + $0x470] sm:$0xff]
    %v256 = vld [vmem:[%s0 + $0x478] sm:$0xff]
    %v257 = vld [vmem:[%s0 + $0x480] sm:$0xff]
    %v258 = vld [vmem:[%s0 + $0x488] sm:$0xff]
    %v259 = vld [vmem:[%s0 + $0x490] sm:$0xff]
    %v260 = vld [vmem:[%s0 + $0x498] sm:$0xff]
    %v261 = vld [vmem:[%s0 + $0x4a0] sm:$0xff]
    %v262 = vld [vmem:[%s0 + $0x4a8] sm:$0xff]
    %v263 = vld [vmem:[%s0 + $0x4b0] sm:$0xff]
    %v264 = vld [vmem:[%s0 + $0x4b8] sm:$0xff]
    %v265 = vld [vmem:[%s0 + $0x4c0] sm:$0xff]
    %v266 = vld [vmem:[%s0 + $0x4c8] sm:$0xff]
    %v267 = vld [vmem:[%s0 + $0x4d0] sm:$0xff]
    %v268 = vld [vmem:[%s0 + $0x4d8] sm:$0xff]
    %v269 = vld [vmem:[%s0 + $0x4e0] sm:$0xff]
    %v270 = vld [vmem:[%s0 + $0x4e8] sm:$0xff]
    %v271 = vld [vmem:[%s0 + $0x4f0] sm:$0xff]
    %v272 = vld [vmem:[%s0 + $0x4f8] sm:$0xff]
    %v273 = vld [vmem:[%s0 + $0x500] sm:$0xff]
    %v274 = vld [vmem:[%s0 + $0x508] sm:$0xff]
    %v275 = vld [vmem:[%s0 + $0x510] sm:$0xff]
    %v276 = vld [vmem:[%s0 + $0x518] sm:$0xff]
    %v277 = vld [vmem:[%s0 + $0x520] sm:$0xff]
    %v278 = vld [vmem:[%s0 + $0x528] sm:$0xff]
    %v279 = vld [vmem:[%s0 + $0x530] sm:$0xff]
    %v280 = vld [vmem:[%s0 + $0x538] sm:$0xff]
    %v281 = vld [vmem:[%s0 + $0x540] sm:$0xff]
    %v282 = vld [vmem:[%s0 + $0x548] sm:$0xff]
    %v283 = vld [vmem:[%s0 + $0x550] sm:$0xff]
    %v284 = vld [vmem:[%s0 + $0x558] sm:$0xff]
    %v285 = vld [vmem:[%s0 + $0x560] sm:$0xff]
    %v286 = vld [vmem:[%s0 + $0x568] sm:$0xff]
    %v287 = vld [vmem:[%s0 + $0x570] sm:$0xff]
    %v288 = vld [vmem:[%s0 + $0x578] sm:$0xff]
    %v289 = vld [vmem:[%s0 + $0x580] sm:$0xff]
    %v290 = vld [vmem:[%s0 + $0x588] sm:$0xff]
    %v291 = vld [vmem:[%s0 + $0x590] sm:$0xff]
    %v292 = vld [vmem:[%s0 + $0x598] sm:$0xff]
    %v293 = vld [vmem:[%s0 + $0x5a0] sm:$0xff]
    %v294 = vld [vmem:[%s0 + $0x5a8] sm:$0xff]
    %v295 = vld [vmem:[%s0 + $0x5b0] sm:$0xff]
    %v296 = vld [vmem:[%s0 + $0x5b8] sm:$0xff]
    %v297 = vld [vmem:[%s0 + $0x5c0] sm:$0xff]
    %v298 = vld [vmem:[%s0 + $0x5c8] sm:$0xff]
    %v299 = vld [vmem:[%s0 + $0x5d0] sm:$0xff]
    %v300 = vld [vmem:[%s0 + $0x5d8] sm:$0xff]
    %v301 = vld [vmem:[%s0 + $0x5e0] sm:$0xff]
    %v302 = vld [vmem:[%s0 + $0x5e8] sm:$0xff]
    %v303 = vld [vmem:[%s0 + $0x5f0] sm:$0xff]
    %v304 = vld [vmem:[%s0 + $0x5f8] sm:$0xff]
    %v305 = vld [vmem:[%s0 + $0x600] sm:$0xff]
    %v306 = vld [vmem:[%s0 + $0x608] sm:$0xff]
    %v307 = vld [vmem:[%s0 + $0x610] sm:$0xff]
    %v308 = vld [vmem:[%s0 + $0x618] sm:$0xff]
    %v309 = vld [vmem:[%s0 + $0x620] sm:$0xff]
    %v310 = vld [vmem:[%s0 + $0x628] sm:$0xff]
    %v311 = vld [vmem:[%s0 + $0x630] sm:$0xff]
    %v312 = vld [vmem:[%s0 + $0x638] sm:$0xff]
    %v313 = vld [vmem:[%s0 + $0x640] sm:$0xff]
    %v314 = vld [vmem:[%s0 + $0x648] sm:$0xff]
    %v315 = vld [vmem:[%s0 + $0x650] sm:$0xff]
    %v316 = vld [vmem:[%s0 + $0x658] sm:$0xff]
    %v317 = vld [vmem:[%s0 + $0x660] sm:$0xff]
    %v318 = vld [vmem:[%s0 + $0x668] sm:$0xff]
    %v319 = vld [vmem:[%s0 + $0x670] sm:$0xff]
    %v320 = vld [vmem:[%s0 + $0x678] sm:$0xff]
    %v321 = vld [vmem:[%s0 + $0x680] sm:$0xff]
    %v322 = vld [vmem:[%s0 + $0x688] sm:$0xff]
    %v323 = vld [vmem:[%s0 + $0x690] sm:$0xff]
    %v324 = vld [vmem:[%s0 + $0x698] sm:$0xff]
    %v325 = vld [vmem:[%s0 + $0x6a0] sm:$0xff]
    %v326 = vld [vmem:[%s0 + $0x6a8] sm:$0xff]
    %v327 = vld [vmem:[%s0 + $0x6b0] sm:$0xff]
    %v328 = vld [vmem:[%s0 + $0x6b8] sm:$0xff]
    %v329 = vld [vmem:[%s0 + $0x6c0] sm:$0xff]
    %v330 = vld [vmem:[%s0 + $0x6c8] sm:$0xff]
    %v331 = vld [vmem:[%s0 + $0x6d0] sm:$0xff]
    %v332 = vld [vmem:[%s0 + $0x6d8] sm:$0xff]
    %v333 = vld [vmem:[%s0 + $0x6e0] sm:$0xff]
    %v334 = vld [vmem:[%s0 + $0x6e8] sm:$0xff]
    %v335 = vld [vmem:[%s0 + $0x6f0] sm:$0xff]
    %v336 = vld [vmem:[%s0 + $0x6f8] sm:$0xff]
    %v337 = vld [vmem:[%s0 + $0x700] sm:$0xff]
    %v338 = vld [vmem:[%s0 + $0x708] sm:$0xff]
    %v339 = vld [vmem:[%s0 + $0x710] sm:$0xff]
    %v340 = vld [vmem:[%s0 + $0x718] sm:$0xff]
    %v341 = vld [vmem:[%s0 + $0x720] sm:$0xff]
    %v342 = vld [vmem:[%s0 + $0x728] sm:$0xff]
    %v343 = vld [vmem:[%s0 + $0x730] sm:$0xff]
    %v344 = vld [vmem:[%s0 + $0x738] sm:$0xff]
    %v345 = vld [vmem:[%s0 + $0x740] sm:$0xff]
    %v346 = vld [vmem:[%s0 + $0x748] sm:$0xff]
    %v347 = vld [vmem:[%s0 + $0x750] sm:$0xff]
    %v348 = vld [vmem:[%s0 + $0x758] sm:$0xff]
    %v349 = vld [vmem:[%s0 + $0x760] sm:$0xff]
    %v350 = vld [vmem:[%s0 + $0x768] sm:$0xff]
    %v351 = vld [vmem:[%s0 + $0x770] sm:$0xff]
    %v352 = vld [vmem:[%s0 + $0x778] sm:$0xff]
    %v353 = vld [vmem:[%s0 + $0x780] sm:$0xff]
    %v354 = vld [vmem:[%s0 + $0x788] sm:$0xff]
    %v355 = vld [vmem:[%s0 + $0x790] sm:$0xff]
    %v356 = vld [vmem:[%s0 + $0x798] sm:$0xff]
    %v357 = vld [vmem:[%s0 + $0x7a0] sm:$0xff]
    %v358 = vld [vmem:[%s0 + $0x7a8] sm:$0xff]
    %v359 = vld [vmem:[%s0 + $0x7b0] sm:$0xff]
    %v360 = vld [vmem:[%s0 + $0x7b8] sm:$0xff]
    %v361 = vld [vmem:[%s0 + $0x7c0] sm:$0xff]
    %v362 = vld [vmem:[%s0 + $0x7c8] sm:$0xff]
    %v363 = vld [vmem:[%s0 + $0x7d0] sm:$0xff]
    %v364 = vld [vmem:[%s0 + $0x7d8] sm:$0xff]
    %v365 = vld [vmem:[%s0 + $0x7e0] sm:$0xff]
    %v366 = vld [vmem:[%s0 + $0x7e8] sm:$0xff]
    %v367 = vld [vmem:[%s0 + $0x7f0] sm:$0xff]
    %v368 = vld [vmem:[%s0 + $0x7f8] sm:$0xff]
    %vm369 = vcmask 523264
    %v370 = vsel %vm369, %v113, 0.0
    %371 = vadd.xlane.f32.xlu0 %v370
    %v372 = vpop.xlane.xlu0 %371
    %v373 = vsel %vm369, %v114, 0.0
    %374 = vadd.xlane.f32.xlu0 %v373
    %v375 = vpop.xlane.xlu0 %374
    %v376 = vsel %vm369, %v115, 0.0
    %377 = vadd.xlane.f32.xlu0 %v376
    %v378 = vpop.xlane.xlu0 %377
    %v379 = vsel %vm369, %v116, 0.0
    %380 = vadd.xlane.f32.xlu0 %v379
    %v381 = vpop.xlane.xlu0 %380
    %v382 = vsel %vm369, %v117, 0.0
    %383 = vadd.xlane.f32.xlu0 %v382
    %v384 = vpop.xlane.xlu0 %383
    %v385 = vsel %vm369, %v118, 0.0
    %386 = vadd.xlane.f32.xlu0 %v385
    %v387 = vpop.xlane.xlu0 %386
    %v388 = vsel %vm369, %v119, 0.0
    %389 = vadd.xlane.f32.xlu0 %v388
    %v390 = vpop.xlane.xlu0 %389
    %v391 = vsel %vm369, %v120, 0.0
    %392 = vadd.xlane.f32.xlu0 %v391
    %v393 = vpop.xlane.xlu0 %392
    %v394 = vsel %vm369, %v121, 0.0
    %395 = vadd.xlane.f32.xlu0 %v394
    %v396 = vpop.xlane.xlu0 %395
    %v397 = vsel %vm369, %v122, 0.0
    %398 = vadd.xlane.f32.xlu0 %v397
    %v399 = vpop.xlane.xlu0 %398
    %v400 = vsel %vm369, %v123, 0.0
    %401 = vadd.xlane.f32.xlu0 %v400
    %v402 = vpop.xlane.xlu0 %401
    %v403 = vsel %vm369, %v124, 0.0
    %404 = vadd.xlane.f32.xlu0 %v403
    %v405 = vpop.xlane.xlu0 %404
    %v406 = vsel %vm369, %v125, 0.0
    %407 = vadd.xlane.f32.xlu0 %v406
    %v408 = vpop.xlane.xlu0 %407
    %v409 = vsel %vm369, %v126, 0.0
    %410 = vadd.xlane.f32.xlu0 %v409
    %v411 = vpop.xlane.xlu0 %410
    %v412 = vsel %vm369, %v127, 0.0
    %413 = vadd.xlane.f32.xlu0 %v412
    %v414 = vpop.xlane.xlu0 %413
    %v415 = vsel %vm369, %v128, 0.0
    %416 = vadd.xlane.f32.xlu0 %v415
    %v417 = vpop.xlane.xlu0 %416
    %v418 = vsel %vm369, %v129, 0.0
    %419 = vadd.xlane.f32.xlu0 %v418
    %v420 = vpop.xlane.xlu0 %419
    %v421 = vsel %vm369, %v130, 0.0
    %422 = vadd.xlane.f32.xlu0 %v421
    %v423 = vpop.xlane.xlu0 %422
    %v424 = vsel %vm369, %v131, 0.0
    %425 = vadd.xlane.f32.xlu0 %v424
    %v426 = vpop.xlane.xlu0 %425
    %v427 = vsel %vm369, %v132, 0.0
    %428 = vadd.xlane.f32.xlu0 %v427
    %v429 = vpop.xlane.xlu0 %428
    %v430 = vsel %vm369, %v133, 0.0
    %431 = vadd.xlane.f32.xlu0 %v430
    %v432 = vpop.xlane.xlu0 %431
    %v433 = vsel %vm369, %v134, 0.0
    %434 = vadd.xlane.f32.xlu0 %v433
    %v435 = vpop.xlane.xlu0 %434
    %v436 = vsel %vm369, %v135, 0.0
    %437 = vadd.xlane.f32.xlu0 %v436
    %v438 = vpop.xlane.xlu0 %437
    %v439 = vsel %vm369, %v136, 0.0
    %440 = vadd.xlane.f32.xlu0 %v439
    %v441 = vpop.xlane.xlu0 %440
    %v442 = vsel %vm369, %v137, 0.0
    %443 = vadd.xlane.f32.xlu0 %v442
    %v444 = vpop.xlane.xlu0 %443
    %v445 = vsel %vm369, %v138, 0.0
    %446 = vadd.xlane.f32.xlu0 %v445
    %v447 = vpop.xlane.xlu0 %446
    %v448 = vsel %vm369, %v139, 0.0
    %449 = vadd.xlane.f32.xlu0 %v448
    %v450 = vpop.xlane.xlu0 %449
    %v451 = vsel %vm369, %v140, 0.0
    %452 = vadd.xlane.f32.xlu0 %v451
    %v453 = vpop.xlane.xlu0 %452
    %v454 = vsel %vm369, %v141, 0.0
    %455 = vadd.xlane.f32.xlu0 %v454
    %v456 = vpop.xlane.xlu0 %455
    %v457 = vsel %vm369, %v142, 0.0
    %458 = vadd.xlane.f32.xlu0 %v457
    %v459 = vpop.xlane.xlu0 %458
    %v460 = vsel %vm369, %v143, 0.0
    %461 = vadd.xlane.f32.xlu0 %v460
    %v462 = vpop.xlane.xlu0 %461
    %v463 = vsel %vm369, %v144, 0.0
    %464 = vadd.xlane.f32.xlu0 %v463
    %v465 = vpop.xlane.xlu0 %464
    %v466 = vsel %vm369, %v145, 0.0
    %467 = vadd.xlane.f32.xlu0 %v466
    %v468 = vpop.xlane.xlu0 %467
    %v469 = vsel %vm369, %v146, 0.0
    %470 = vadd.xlane.f32.xlu0 %v469
    %v471 = vpop.xlane.xlu0 %470
    %v472 = vsel %vm369, %v147, 0.0
    %473 = vadd.xlane.f32.xlu0 %v472
    %v474 = vpop.xlane.xlu0 %473
    %v475 = vsel %vm369, %v148, 0.0
    %476 = vadd.xlane.f32.xlu0 %v475
    %v477 = vpop.xlane.xlu0 %476
    %v478 = vsel %vm369, %v149, 0.0
    %479 = vadd.xlane.f32.xlu0 %v478
    %v480 = vpop.xlane.xlu0 %479
    %v481 = vsel %vm369, %v150, 0.0
    %482 = vadd.xlane.f32.xlu0 %v481
    %v483 = vpop.xlane.xlu0 %482
    %v484 = vsel %vm369, %v151, 0.0
    %485 = vadd.xlane.f32.xlu0 %v484
    %v486 = vpop.xlane.xlu0 %485
    %v487 = vsel %vm369, %v152, 0.0
    %488 = vadd.xlane.f32.xlu0 %v487
    %v489 = vpop.xlane.xlu0 %488
    %v490 = vsel %vm369, %v153, 0.0
    %491 = vadd.xlane.f32.xlu0 %v490
    %v492 = vpop.xlane.xlu0 %491
    %v493 = vsel %vm369, %v154, 0.0
    %494 = vadd.xlane.f32.xlu0 %v493
    %v495 = vpop.xlane.xlu0 %494
    %v496 = vsel %vm369, %v155, 0.0
    %497 = vadd.xlane.f32.xlu0 %v496
    %v498 = vpop.xlane.xlu0 %497
    %v499 = vsel %vm369, %v156, 0.0
    %500 = vadd.xlane.f32.xlu0 %v499
    %v501 = vpop.xlane.xlu0 %500
    %v502 = vsel %vm369, %v157, 0.0
    %503 = vadd.xlane.f32.xlu0 %v502
    %v504 = vpop.xlane.xlu0 %503
    %v505 = vsel %vm369, %v158, 0.0
    %506 = vadd.xlane.f32.xlu0 %v505
    %v507 = vpop.xlane.xlu0 %506
    %v508 = vsel %vm369, %v159, 0.0
    %509 = vadd.xlane.f32.xlu0 %v508
    %v510 = vpop.xlane.xlu0 %509
    %v511 = vsel %vm369, %v160, 0.0
    %512 = vadd.xlane.f32.xlu0 %v511
    %v513 = vpop.xlane.xlu0 %512
    %v514 = vsel %vm369, %v161, 0.0
    %515 = vadd.xlane.f32.xlu0 %v514
    %v516 = vpop.xlane.xlu0 %515
    %v517 = vsel %vm369, %v162, 0.0
    %518 = vadd.xlane.f32.xlu0 %v517
    %v519 = vpop.xlane.xlu0 %518
    %v520 = vsel %vm369, %v163, 0.0
    %521 = vadd.xlane.f32.xlu0 %v520
    %v522 = vpop.xlane.xlu0 %521
    %v523 = vsel %vm369, %v164, 0.0
    %524 = vadd.xlane.f32.xlu0 %v523
    %v525 = vpop.xlane.xlu0 %524
    %v526 = vsel %vm369, %v165, 0.0
    %527 = vadd.xlane.f32.xlu0 %v526
    %v528 = vpop.xlane.xlu0 %527
    %v529 = vsel %vm369, %v166, 0.0
    %530 = vadd.xlane.f32.xlu0 %v529
    %v531 = vpop.xlane.xlu0 %530
    %v532 = vsel %vm369, %v167, 0.0
    %533 = vadd.xlane.f32.xlu0 %v532
    %v534 = vpop.xlane.xlu0 %533
    %v535 = vsel %vm369, %v168, 0.0
    %536 = vadd.xlane.f32.xlu0 %v535
    %v537 = vpop.xlane.xlu0 %536
    %v538 = vsel %vm369, %v169, 0.0
    %539 = vadd.xlane.f32.xlu0 %v538
    %v540 = vpop.xlane.xlu0 %539
    %v541 = vsel %vm369, %v170, 0.0
    %542 = vadd.xlane.f32.xlu0 %v541
    %v543 = vpop.xlane.xlu0 %542
    %v544 = vsel %vm369, %v171, 0.0
    %545 = vadd.xlane.f32.xlu0 %v544
    %v546 = vpop.xlane.xlu0 %545
    %v547 = vsel %vm369, %v172, 0.0
    %548 = vadd.xlane.f32.xlu0 %v547
    %v549 = vpop.xlane.xlu0 %548
    %v550 = vsel %vm369, %v173, 0.0
    %551 = vadd.xlane.f32.xlu0 %v550
    %v552 = vpop.xlane.xlu0 %551
    %v553 = vsel %vm369, %v174, 0.0
    %554 = vadd.xlane.f32.xlu0 %v553
    %v555 = vpop.xlane.xlu0 %554
    %v556 = vsel %vm369, %v175, 0.0
    %557 = vadd.xlane.f32.xlu0 %v556
    %v558 = vpop.xlane.xlu0 %557
    %v559 = vsel %vm369, %v176, 0.0
    %560 = vadd.xlane.f32.xlu0 %v559
    %v561 = vpop.xlane.xlu0 %560
    %v562 = vsel %vm369, %v177, 0.0
    %563 = vadd.xlane.f32.xlu0 %v562
    %v564 = vpop.xlane.xlu0 %563
    %v565 = vsel %vm369, %v178, 0.0
    %566 = vadd.xlane.f32.xlu0 %v565
    %v567 = vpop.xlane.xlu0 %566
    %v568 = vsel %vm369, %v179, 0.0
    %569 = vadd.xlane.f32.xlu0 %v568
    %v570 = vpop.xlane.xlu0 %569
    %v571 = vsel %vm369, %v180, 0.0
    %572 = vadd.xlane.f32.xlu0 %v571
    %v573 = vpop.xlane.xlu0 %572
    %v574 = vsel %vm369, %v181, 0.0
    %575 = vadd.xlane.f32.xlu0 %v574
    %v576 = vpop.xlane.xlu0 %575
    %v577 = vsel %vm369, %v182, 0.0
    %578 = vadd.xlane.f32.xlu0 %v577
    %v579 = vpop.xlane.xlu0 %578
    %v580 = vsel %vm369, %v183, 0.0
    %581 = vadd.xlane.f32.xlu0 %v580
    %v582 = vpop.xlane.xlu0 %581
    %v583 = vsel %vm369, %v184, 0.0
    %584 = vadd.xlane.f32.xlu0 %v583
    %v585 = vpop.xlane.xlu0 %584
    %v586 = vsel %vm369, %v185, 0.0
    %587 = vadd.xlane.f32.xlu0 %v586
    %v588 = vpop.xlane.xlu0 %587
    %v589 = vsel %vm369, %v186, 0.0
    %590 = vadd.xlane.f32.xlu0 %v589
    %v591 = vpop.xlane.xlu0 %590
    %v592 = vsel %vm369, %v187, 0.0
    %593 = vadd.xlane.f32.xlu0 %v592
    %v594 = vpop.xlane.xlu0 %593
    %v595 = vsel %vm369, %v188, 0.0
    %596 = vadd.xlane.f32.xlu0 %v595
    %v597 = vpop.xlane.xlu0 %596
    %v598 = vsel %vm369, %v189, 0.0
    %599 = vadd.xlane.f32.xlu0 %v598
    %v600 = vpop.xlane.xlu0 %599
    %v601 = vsel %vm369, %v190, 0.0
    %602 = vadd.xlane.f32.xlu0 %v601
    %v603 = vpop.xlane.xlu0 %602
    %v604 = vsel %vm369, %v191, 0.0
    %605 = vadd.xlane.f32.xlu0 %v604
    %v606 = vpop.xlane.xlu0 %605
    %v607 = vsel %vm369, %v192, 0.0
    %608 = vadd.xlane.f32.xlu0 %v607
    %v609 = vpop.xlane.xlu0 %608
    %v610 = vsel %vm369, %v193, 0.0
    %611 = vadd.xlane.f32.xlu0 %v610
    %v612 = vpop.xlane.xlu0 %611
    %v613 = vsel %vm369, %v194, 0.0
    %614 = vadd.xlane.f32.xlu0 %v613
    %v615 = vpop.xlane.xlu0 %614
    %v616 = vsel %vm369, %v195, 0.0
    %617 = vadd.xlane.f32.xlu0 %v616
    %v618 = vpop.xlane.xlu0 %617
    %v619 = vsel %vm369, %v196, 0.0
    %620 = vadd.xlane.f32.xlu0 %v619
    %v621 = vpop.xlane.xlu0 %620
    %v622 = vsel %vm369, %v197, 0.0
    %623 = vadd.xlane.f32.xlu0 %v622
    %v624 = vpop.xlane.xlu0 %623
    %v625 = vsel %vm369, %v198, 0.0
    %626 = vadd.xlane.f32.xlu0 %v625
    %v627 = vpop.xlane.xlu0 %626
    %v628 = vsel %vm369, %v199, 0.0
    %629 = vadd.xlane.f32.xlu0 %v628
    %v630 = vpop.xlane.xlu0 %629
    %v631 = vsel %vm369, %v200, 0.0
    %632 = vadd.xlane.f32.xlu0 %v631
    %v633 = vpop.xlane.xlu0 %632
    %v634 = vsel %vm369, %v201, 0.0
    %635 = vadd.xlane.f32.xlu0 %v634
    %v636 = vpop.xlane.xlu0 %635
    %v637 = vsel %vm369, %v202, 0.0
    %638 = vadd.xlane.f32.xlu0 %v637
    %v639 = vpop.xlane.xlu0 %638
    %v640 = vsel %vm369, %v203, 0.0
    %641 = vadd.xlane.f32.xlu0 %v640
    %v642 = vpop.xlane.xlu0 %641
    %v643 = vsel %vm369, %v204, 0.0
    %644 = vadd.xlane.f32.xlu0 %v643
    %v645 = vpop.xlane.xlu0 %644
    %v646 = vsel %vm369, %v205, 0.0
    %647 = vadd.xlane.f32.xlu0 %v646
    %v648 = vpop.xlane.xlu0 %647
    %v649 = vsel %vm369, %v206, 0.0
    %650 = vadd.xlane.f32.xlu0 %v649
    %v651 = vpop.xlane.xlu0 %650
    %v652 = vsel %vm369, %v207, 0.0
    %653 = vadd.xlane.f32.xlu0 %v652
    %v654 = vpop.xlane.xlu0 %653
    %v655 = vsel %vm369, %v208, 0.0
    %656 = vadd.xlane.f32.xlu0 %v655
    %v657 = vpop.xlane.xlu0 %656
    %v658 = vsel %vm369, %v209, 0.0
    %659 = vadd.xlane.f32.xlu0 %v658
    %v660 = vpop.xlane.xlu0 %659
    %v661 = vsel %vm369, %v210, 0.0
    %662 = vadd.xlane.f32.xlu0 %v661
    %v663 = vpop.xlane.xlu0 %662
    %v664 = vsel %vm369, %v211, 0.0
    %665 = vadd.xlane.f32.xlu0 %v664
    %v666 = vpop.xlane.xlu0 %665
    %v667 = vsel %vm369, %v212, 0.0
    %668 = vadd.xlane.f32.xlu0 %v667
    %v669 = vpop.xlane.xlu0 %668
    %v670 = vsel %vm369, %v213, 0.0
    %671 = vadd.xlane.f32.xlu0 %v670
    %v672 = vpop.xlane.xlu0 %671
    %v673 = vsel %vm369, %v214, 0.0
    %674 = vadd.xlane.f32.xlu0 %v673
    %v675 = vpop.xlane.xlu0 %674
    %v676 = vsel %vm369, %v215, 0.0
    %677 = vadd.xlane.f32.xlu0 %v676
    %v678 = vpop.xlane.xlu0 %677
    %v679 = vsel %vm369, %v216, 0.0
    %680 = vadd.xlane.f32.xlu0 %v679
    %v681 = vpop.xlane.xlu0 %680
    %v682 = vsel %vm369, %v217, 0.0
    %683 = vadd.xlane.f32.xlu0 %v682
    %v684 = vpop.xlane.xlu0 %683
    %v685 = vsel %vm369, %v218, 0.0
    %686 = vadd.xlane.f32.xlu0 %v685
    %v687 = vpop.xlane.xlu0 %686
    %v688 = vsel %vm369, %v219, 0.0
    %689 = vadd.xlane.f32.xlu0 %v688
    %v690 = vpop.xlane.xlu0 %689
    %v691 = vsel %vm369, %v220, 0.0
    %692 = vadd.xlane.f32.xlu0 %v691
    %v693 = vpop.xlane.xlu0 %692
    %v694 = vsel %vm369, %v221, 0.0
    %695 = vadd.xlane.f32.xlu0 %v694
    %v696 = vpop.xlane.xlu0 %695
    %v697 = vsel %vm369, %v222, 0.0
    %698 = vadd.xlane.f32.xlu0 %v697
    %v699 = vpop.xlane.xlu0 %698
    %v700 = vsel %vm369, %v223, 0.0
    %701 = vadd.xlane.f32.xlu0 %v700
    %v702 = vpop.xlane.xlu0 %701
    %v703 = vsel %vm369, %v224, 0.0
    %704 = vadd.xlane.f32.xlu0 %v703
    %v705 = vpop.xlane.xlu0 %704
    %v706 = vsel %vm369, %v225, 0.0
    %707 = vadd.xlane.f32.xlu0 %v706
    %v708 = vpop.xlane.xlu0 %707
    %v709 = vsel %vm369, %v226, 0.0
    %710 = vadd.xlane.f32.xlu0 %v709
    %v711 = vpop.xlane.xlu0 %710
    %v712 = vsel %vm369, %v227, 0.0
    %713 = vadd.xlane.f32.xlu0 %v712
    %v714 = vpop.xlane.xlu0 %713
    %v715 = vsel %vm369, %v228, 0.0
    %716 = vadd.xlane.f32.xlu0 %v715
    %v717 = vpop.xlane.xlu0 %716
    %v718 = vsel %vm369, %v229, 0.0
    %719 = vadd.xlane.f32.xlu0 %v718
    %v720 = vpop.xlane.xlu0 %719
    %v721 = vsel %vm369, %v230, 0.0
    %722 = vadd.xlane.f32.xlu0 %v721
    %v723 = vpop.xlane.xlu0 %722
    %v724 = vsel %vm369, %v231, 0.0
    %725 = vadd.xlane.f32.xlu0 %v724
    %v726 = vpop.xlane.xlu0 %725
    %v727 = vsel %vm369, %v232, 0.0
    %728 = vadd.xlane.f32.xlu0 %v727
    %v729 = vpop.xlane.xlu0 %728
    %v730 = vsel %vm369, %v233, 0.0
    %731 = vadd.xlane.f32.xlu0 %v730
    %v732 = vpop.xlane.xlu0 %731
    %v733 = vsel %vm369, %v234, 0.0
    %734 = vadd.xlane.f32.xlu0 %v733
    %v735 = vpop.xlane.xlu0 %734
    %v736 = vsel %vm369, %v235, 0.0
    %737 = vadd.xlane.f32.xlu0 %v736
    %v738 = vpop.xlane.xlu0 %737
    %v739 = vsel %vm369, %v236, 0.0
    %740 = vadd.xlane.f32.xlu0 %v739
    %v741 = vpop.xlane.xlu0 %740
    %v742 = vsel %vm369, %v237, 0.0
    %743 = vadd.xlane.f32.xlu0 %v742
    %v744 = vpop.xlane.xlu0 %743
    %v745 = vsel %vm369, %v238, 0.0
    %746 = vadd.xlane.f32.xlu0 %v745
    %v747 = vpop.xlane.xlu0 %746
    %v748 = vsel %vm369, %v239, 0.0
    %749 = vadd.xlane.f32.xlu0 %v748
    %v750 = vpop.xlane.xlu0 %749
    %v751 = vsel %vm369, %v240, 0.0
    %752 = vadd.xlane.f32.xlu0 %v751
    %v753 = vpop.xlane.xlu0 %752
    %v754 = vsel %vm369, %v241, 0.0
    %755 = vadd.xlane.f32.xlu0 %v754
    %v756 = vpop.xlane.xlu0 %755
    %v757 = vsel %vm369, %v242, 0.0
    %758 = vadd.xlane.f32.xlu0 %v757
    %v759 = vpop.xlane.xlu0 %758
    %v760 = vsel %vm369, %v243, 0.0
    %761 = vadd.xlane.f32.xlu0 %v760
    %v762 = vpop.xlane.xlu0 %761
    %v763 = vsel %vm369, %v244, 0.0
    %764 = vadd.xlane.f32.xlu0 %v763
    %v765 = vpop.xlane.xlu0 %764
    %v766 = vsel %vm369, %v245, 0.0
    %767 = vadd.xlane.f32.xlu0 %v766
    %v768 = vpop.xlane.xlu0 %767
    %v769 = vsel %vm369, %v246, 0.0
    %770 = vadd.xlane.f32.xlu0 %v769
    %v771 = vpop.xlane.xlu0 %770
    %v772 = vsel %vm369, %v247, 0.0
    %773 = vadd.xlane.f32.xlu0 %v772
    %v774 = vpop.xlane.xlu0 %773
    %v775 = vsel %vm369, %v248, 0.0
    %776 = vadd.xlane.f32.xlu0 %v775
    %v777 = vpop.xlane.xlu0 %776
    %v778 = vsel %vm369, %v249, 0.0
    %779 = vadd.xlane.f32.xlu0 %v778
    %v780 = vpop.xlane.xlu0 %779
    %v781 = vsel %vm369, %v250, 0.0
    %782 = vadd.xlane.f32.xlu0 %v781
    %v783 = vpop.xlane.xlu0 %782
    %v784 = vsel %vm369, %v251, 0.0
    %785 = vadd.xlane.f32.xlu0 %v784
    %v786 = vpop.xlane.xlu0 %785
    %v787 = vsel %vm369, %v252, 0.0
    %788 = vadd.xlane.f32.xlu0 %v787
    %v789 = vpop.xlane.xlu0 %788
    %v790 = vsel %vm369, %v253, 0.0
    %791 = vadd.xlane.f32.xlu0 %v790
    %v792 = vpop.xlane.xlu0 %791
    %v793 = vsel %vm369, %v254, 0.0
    %794 = vadd.xlane.f32.xlu0 %v793
    %v795 = vpop.xlane.xlu0 %794
    %v796 = vsel %vm369, %v255, 0.0
    %797 = vadd.xlane.f32.xlu0 %v796
    %v798 = vpop.xlane.xlu0 %797
    %v799 = vsel %vm369, %v256, 0.0
    %800 = vadd.xlane.f32.xlu0 %v799
    %v801 = vpop.xlane.xlu0 %800
    %v802 = vsel %vm369, %v257, 0.0
    %803 = vadd.xlane.f32.xlu0 %v802
    %v804 = vpop.xlane.xlu0 %803
    %v805 = vsel %vm369, %v258, 0.0
    %806 = vadd.xlane.f32.xlu0 %v805
    %v807 = vpop.xlane.xlu0 %806
    %v808 = vsel %vm369, %v259, 0.0
    %809 = vadd.xlane.f32.xlu0 %v808
    %v810 = vpop.xlane.xlu0 %809
    %v811 = vsel %vm369, %v260, 0.0
    %812 = vadd.xlane.f32.xlu0 %v811
    %v813 = vpop.xlane.xlu0 %812
    %v814 = vsel %vm369, %v261, 0.0
    %815 = vadd.xlane.f32.xlu0 %v814
    %v816 = vpop.xlane.xlu0 %815
    %v817 = vsel %vm369, %v262, 0.0
    %818 = vadd.xlane.f32.xlu0 %v817
    %v819 = vpop.xlane.xlu0 %818
    %v820 = vsel %vm369, %v263, 0.0
    %821 = vadd.xlane.f32.xlu0 %v820
    %v822 = vpop.xlane.xlu0 %821
    %v823 = vsel %vm369, %v264, 0.0
    %824 = vadd.xlane.f32.xlu0 %v823
    %v825 = vpop.xlane.xlu0 %824
    %v826 = vsel %vm369, %v265, 0.0
    %827 = vadd.xlane.f32.xlu0 %v826
    %v828 = vpop.xlane.xlu0 %827
    %v829 = vsel %vm369, %v266, 0.0
    %830 = vadd.xlane.f32.xlu0 %v829
    %v831 = vpop.xlane.xlu0 %830
    %v832 = vsel %vm369, %v267, 0.0
    %833 = vadd.xlane.f32.xlu0 %v832
    %v834 = vpop.xlane.xlu0 %833
    %v835 = vsel %vm369, %v268, 0.0
    %836 = vadd.xlane.f32.xlu0 %v835
    %v837 = vpop.xlane.xlu0 %836
    %v838 = vsel %vm369, %v269, 0.0
    %839 = vadd.xlane.f32.xlu0 %v838
    %v840 = vpop.xlane.xlu0 %839
    %v841 = vsel %vm369, %v270, 0.0
    %842 = vadd.xlane.f32.xlu0 %v841
    %v843 = vpop.xlane.xlu0 %842
    %v844 = vsel %vm369, %v271, 0.0
    %845 = vadd.xlane.f32.xlu0 %v844
    %v846 = vpop.xlane.xlu0 %845
    %v847 = vsel %vm369, %v272, 0.0
    %848 = vadd.xlane.f32.xlu0 %v847
    %v849 = vpop.xlane.xlu0 %848
    %v850 = vsel %vm369, %v273, 0.0
    %851 = vadd.xlane.f32.xlu0 %v850
    %v852 = vpop.xlane.xlu0 %851
    %v853 = vsel %vm369, %v274, 0.0
    %854 = vadd.xlane.f32.xlu0 %v853
    %v855 = vpop.xlane.xlu0 %854
    %v856 = vsel %vm369, %v275, 0.0
    %857 = vadd.xlane.f32.xlu0 %v856
    %v858 = vpop.xlane.xlu0 %857
    %v859 = vsel %vm369, %v276, 0.0
    %860 = vadd.xlane.f32.xlu0 %v859
    %v861 = vpop.xlane.xlu0 %860
    %v862 = vsel %vm369, %v277, 0.0
    %863 = vadd.xlane.f32.xlu0 %v862
    %v864 = vpop.xlane.xlu0 %863
    %v865 = vsel %vm369, %v278, 0.0
    %866 = vadd.xlane.f32.xlu0 %v865
    %v867 = vpop.xlane.xlu0 %866
    %v868 = vsel %vm369, %v279, 0.0
    %869 = vadd.xlane.f32.xlu0 %v868
    %v870 = vpop.xlane.xlu0 %869
    %v871 = vsel %vm369, %v280, 0.0
    %872 = vadd.xlane.f32.xlu0 %v871
    %v873 = vpop.xlane.xlu0 %872
    %v874 = vsel %vm369, %v281, 0.0
    %875 = vadd.xlane.f32.xlu0 %v874
    %v876 = vpop.xlane.xlu0 %875
    %v877 = vsel %vm369, %v282, 0.0
    %878 = vadd.xlane.f32.xlu0 %v877
    %v879 = vpop.xlane.xlu0 %878
    %v880 = vsel %vm369, %v283, 0.0
    %881 = vadd.xlane.f32.xlu0 %v880
    %v882 = vpop.xlane.xlu0 %881
    %v883 = vsel %vm369, %v284, 0.0
    %884 = vadd.xlane.f32.xlu0 %v883
    %v885 = vpop.xlane.xlu0 %884
    %v886 = vsel %vm369, %v285, 0.0
    %887 = vadd.xlane.f32.xlu0 %v886
    %v888 = vpop.xlane.xlu0 %887
    %v889 = vsel %vm369, %v286, 0.0
    %890 = vadd.xlane.f32.xlu0 %v889
    %v891 = vpop.xlane.xlu0 %890
    %v892 = vsel %vm369, %v287, 0.0
    %893 = vadd.xlane.f32.xlu0 %v892
    %v894 = vpop.xlane.xlu0 %893
    %v895 = vsel %vm369, %v288, 0.0
    %896 = vadd.xlane.f32.xlu0 %v895
    %v897 = vpop.xlane.xlu0 %896
    %v898 = vsel %vm369, %v289, 0.0
    %899 = vadd.xlane.f32.xlu0 %v898
    %v900 = vpop.xlane.xlu0 %899
    %v901 = vsel %vm369, %v290, 0.0
    %902 = vadd.xlane.f32.xlu0 %v901
    %v903 = vpop.xlane.xlu0 %902
    %v904 = vsel %vm369, %v291, 0.0
    %905 = vadd.xlane.f32.xlu0 %v904
    %v906 = vpop.xlane.xlu0 %905
    %v907 = vsel %vm369, %v292, 0.0
    %908 = vadd.xlane.f32.xlu0 %v907
    %v909 = vpop.xlane.xlu0 %908
    %v910 = vsel %vm369, %v293, 0.0
    %911 = vadd.xlane.f32.xlu0 %v910
    %v912 = vpop.xlane.xlu0 %911
    %v913 = vsel %vm369, %v294, 0.0
    %914 = vadd.xlane.f32.xlu0 %v913
    %v915 = vpop.xlane.xlu0 %914
    %v916 = vsel %vm369, %v295, 0.0
    %917 = vadd.xlane.f32.xlu0 %v916
    %v918 = vpop.xlane.xlu0 %917
    %v919 = vsel %vm369, %v296, 0.0
    %920 = vadd.xlane.f32.xlu0 %v919
    %v921 = vpop.xlane.xlu0 %920
    %v922 = vsel %vm369, %v297, 0.0
    %923 = vadd.xlane.f32.xlu0 %v922
    %v924 = vpop.xlane.xlu0 %923
    %v925 = vsel %vm369, %v298, 0.0
    %926 = vadd.xlane.f32.xlu0 %v925
    %v927 = vpop.xlane.xlu0 %926
    %v928 = vsel %vm369, %v299, 0.0
    %929 = vadd.xlane.f32.xlu0 %v928
    %v930 = vpop.xlane.xlu0 %929
    %v931 = vsel %vm369, %v300, 0.0
    %932 = vadd.xlane.f32.xlu0 %v931
    %v933 = vpop.xlane.xlu0 %932
    %v934 = vsel %vm369, %v301, 0.0
    %935 = vadd.xlane.f32.xlu0 %v934
    %v936 = vpop.xlane.xlu0 %935
    %v937 = vsel %vm369, %v302, 0.0
    %938 = vadd.xlane.f32.xlu0 %v937
    %v939 = vpop.xlane.xlu0 %938
    %v940 = vsel %vm369, %v303, 0.0
    %941 = vadd.xlane.f32.xlu0 %v940
    %v942 = vpop.xlane.xlu0 %941
    %v943 = vsel %vm369, %v304, 0.0
    %944 = vadd.xlane.f32.xlu0 %v943
    %v945 = vpop.xlane.xlu0 %944
    %v946 = vsel %vm369, %v305, 0.0
    %947 = vadd.xlane.f32.xlu0 %v946
    %v948 = vpop.xlane.xlu0 %947
    %v949 = vsel %vm369, %v306, 0.0
    %950 = vadd.xlane.f32.xlu0 %v949
    %v951 = vpop.xlane.xlu0 %950
    %v952 = vsel %vm369, %v307, 0.0
    %953 = vadd.xlane.f32.xlu0 %v952
    %v954 = vpop.xlane.xlu0 %953
    %v955 = vsel %vm369, %v308, 0.0
    %956 = vadd.xlane.f32.xlu0 %v955
    %v957 = vpop.xlane.xlu0 %956
    %v958 = vsel %vm369, %v309, 0.0
    %959 = vadd.xlane.f32.xlu0 %v958
    %v960 = vpop.xlane.xlu0 %959
    %v961 = vsel %vm369, %v310, 0.0
    %962 = vadd.xlane.f32.xlu0 %v961
    %v963 = vpop.xlane.xlu0 %962
    %v964 = vsel %vm369, %v311, 0.0
    %965 = vadd.xlane.f32.xlu0 %v964
    %v966 = vpop.xlane.xlu0 %965
    %v967 = vsel %vm369, %v312, 0.0
    %968 = vadd.xlane.f32.xlu0 %v967
    %v969 = vpop.xlane.xlu0 %968
    %v970 = vsel %vm369, %v313, 0.0
    %971 = vadd.xlane.f32.xlu0 %v970
    %v972 = vpop.xlane.xlu0 %971
    %v973 = vsel %vm369, %v314, 0.0
    %974 = vadd.xlane.f32.xlu0 %v973
    %v975 = vpop.xlane.xlu0 %974
    %v976 = vsel %vm369, %v315, 0.0
    %977 = vadd.xlane.f32.xlu0 %v976
    %v978 = vpop.xlane.xlu0 %977
    %v979 = vsel %vm369, %v316, 0.0
    %980 = vadd.xlane.f32.xlu0 %v979
    %v981 = vpop.xlane.xlu0 %980
    %v982 = vsel %vm369, %v317, 0.0
    %983 = vadd.xlane.f32.xlu0 %v982
    %v984 = vpop.xlane.xlu0 %983
    %v985 = vsel %vm369, %v318, 0.0
    %986 = vadd.xlane.f32.xlu0 %v985
    %v987 = vpop.xlane.xlu0 %986
    %v988 = vsel %vm369, %v319, 0.0
    %989 = vadd.xlane.f32.xlu0 %v988
    %v990 = vpop.xlane.xlu0 %989
    %v991 = vsel %vm369, %v320, 0.0
    %992 = vadd.xlane.f32.xlu0 %v991
    %v993 = vpop.xlane.xlu0 %992
    %v994 = vsel %vm369, %v321, 0.0
    %995 = vadd.xlane.f32.xlu0 %v994
    %v996 = vpop.xlane.xlu0 %995
    %v997 = vsel %vm369, %v322, 0.0
    %998 = vadd.xlane.f32.xlu0 %v997
    %v999 = vpop.xlane.xlu0 %998
    %v1000 = vsel %vm369, %v323, 0.0
    %1001 = vadd.xlane.f32.xlu0 %v1000
    %v1002 = vpop.xlane.xlu0 %1001
    %v1003 = vsel %vm369, %v324, 0.0
    %1004 = vadd.xlane.f32.xlu0 %v1003
    %v1005 = vpop.xlane.xlu0 %1004
    %v1006 = vsel %vm369, %v325, 0.0
    %1007 = vadd.xlane.f32.xlu0 %v1006
    %v1008 = vpop.xlane.xlu0 %1007
    %v1009 = vsel %vm369, %v326, 0.0
    %1010 = vadd.xlane.f32.xlu0 %v1009
    %v1011 = vpop.xlane.xlu0 %1010
    %v1012 = vsel %vm369, %v327, 0.0
    %1013 = vadd.xlane.f32.xlu0 %v1012
    %v1014 = vpop.xlane.xlu0 %1013
    %v1015 = vsel %vm369, %v328, 0.0
    %1016 = vadd.xlane.f32.xlu0 %v1015
    %v1017 = vpop.xlane.xlu0 %1016
    %v1018 = vsel %vm369, %v329, 0.0
    %1019 = vadd.xlane.f32.xlu0 %v1018
    %v1020 = vpop.xlane.xlu0 %1019
    %v1021 = vsel %vm369, %v330, 0.0
    %1022 = vadd.xlane.f32.xlu0 %v1021
    %v1023 = vpop.xlane.xlu0 %1022
    %v1024 = vsel %vm369, %v331, 0.0
    %1025 = vadd.xlane.f32.xlu0 %v1024
    %v1026 = vpop.xlane.xlu0 %1025
    %v1027 = vsel %vm369, %v332, 0.0
    %1028 = vadd.xlane.f32.xlu0 %v1027
    %v1029 = vpop.xlane.xlu0 %1028
    %v1030 = vsel %vm369, %v333, 0.0
    %1031 = vadd.xlane.f32.xlu0 %v1030
    %v1032 = vpop.xlane.xlu0 %1031
    %v1033 = vsel %vm369, %v334, 0.0
    %1034 = vadd.xlane.f32.xlu0 %v1033
    %v1035 = vpop.xlane.xlu0 %1034
    %v1036 = vsel %vm369, %v335, 0.0
    %1037 = vadd.xlane.f32.xlu0 %v1036
    %v1038 = vpop.xlane.xlu0 %1037
    %v1039 = vsel %vm369, %v336, 0.0
    %1040 = vadd.xlane.f32.xlu0 %v1039
    %v1041 = vpop.xlane.xlu0 %1040
    %v1042 = vsel %vm369, %v337, 0.0
    %1043 = vadd.xlane.f32.xlu0 %v1042
    %v1044 = vpop.xlane.xlu0 %1043
    %v1045 = vsel %vm369, %v338, 0.0
    %1046 = vadd.xlane.f32.xlu0 %v1045
    %v1047 = vpop.xlane.xlu0 %1046
    %v1048 = vsel %vm369, %v339, 0.0
    %1049 = vadd.xlane.f32.xlu0 %v1048
    %v1050 = vpop.xlane.xlu0 %1049
    %v1051 = vsel %vm369, %v340, 0.0
    %1052 = vadd.xlane.f32.xlu0 %v1051
    %v1053 = vpop.xlane.xlu0 %1052
    %v1054 = vsel %vm369, %v341, 0.0
    %1055 = vadd.xlane.f32.xlu0 %v1054
    %v1056 = vpop.xlane.xlu0 %1055
    %v1057 = vsel %vm369, %v342, 0.0
    %1058 = vadd.xlane.f32.xlu0 %v1057
    %v1059 = vpop.xlane.xlu0 %1058
    %v1060 = vsel %vm369, %v343, 0.0
    %1061 = vadd.xlane.f32.xlu0 %v1060
    %v1062 = vpop.xlane.xlu0 %1061
    %v1063 = vsel %vm369, %v344, 0.0
    %1064 = vadd.xlane.f32.xlu0 %v1063
    %v1065 = vpop.xlane.xlu0 %1064
    %v1066 = vsel %vm369, %v345, 0.0
    %1067 = vadd.xlane.f32.xlu0 %v1066
    %v1068 = vpop.xlane.xlu0 %1067
    %v1069 = vsel %vm369, %v346, 0.0
    %1070 = vadd.xlane.f32.xlu0 %v1069
    %v1071 = vpop.xlane.xlu0 %1070
    %v1072 = vsel %vm369, %v347, 0.0
    %1073 = vadd.xlane.f32.xlu0 %v1072
    %v1074 = vpop.xlane.xlu0 %1073
    %v1075 = vsel %vm369, %v348, 0.0
    %1076 = vadd.xlane.f32.xlu0 %v1075
    %v1077 = vpop.xlane.xlu0 %1076
    %v1078 = vsel %vm369, %v349, 0.0
    %1079 = vadd.xlane.f32.xlu0 %v1078
    %v1080 = vpop.xlane.xlu0 %1079
    %v1081 = vsel %vm369, %v350, 0.0
    %1082 = vadd.xlane.f32.xlu0 %v1081
    %v1083 = vpop.xlane.xlu0 %1082
    %v1084 = vsel %vm369, %v351, 0.0
    %1085 = vadd.xlane.f32.xlu0 %v1084
    %v1086 = vpop.xlane.xlu0 %1085
    %v1087 = vsel %vm369, %v352, 0.0
    %1088 = vadd.xlane.f32.xlu0 %v1087
    %v1089 = vpop.xlane.xlu0 %1088
    %v1090 = vsel %vm369, %v353, 0.0
    %1091 = vadd.xlane.f32.xlu0 %v1090
    %v1092 = vpop.xlane.xlu0 %1091
    %v1093 = vsel %vm369, %v354, 0.0
    %1094 = vadd.xlane.f32.xlu0 %v1093
    %v1095 = vpop.xlane.xlu0 %1094
    %v1096 = vsel %vm369, %v355, 0.0
    %1097 = vadd.xlane.f32.xlu0 %v1096
    %v1098 = vpop.xlane.xlu0 %1097
    %v1099 = vsel %vm369, %v356, 0.0
    %1100 = vadd.xlane.f32.xlu0 %v1099
    %v1101 = vpop.xlane.xlu0 %1100
    %v1102 = vsel %vm369, %v357, 0.0
    %1103 = vadd.xlane.f32.xlu0 %v1102
    %v1104 = vpop.xlane.xlu0 %1103
    %v1105 = vsel %vm369, %v358, 0.0
    %1106 = vadd.xlane.f32.xlu0 %v1105
    %v1107 = vpop.xlane.xlu0 %1106
    %v1108 = vsel %vm369, %v359, 0.0
    %1109 = vadd.xlane.f32.xlu0 %v1108
    %v1110 = vpop.xlane.xlu0 %1109
    %v1111 = vsel %vm369, %v360, 0.0
    %1112 = vadd.xlane.f32.xlu0 %v1111
    %v1113 = vpop.xlane.xlu0 %1112
    %v1114 = vsel %vm369, %v361, 0.0
    %1115 = vadd.xlane.f32.xlu0 %v1114
    %v1116 = vpop.xlane.xlu0 %1115
    %v1117 = vsel %vm369, %v362, 0.0
    %1118 = vadd.xlane.f32.xlu0 %v1117
    %v1119 = vpop.xlane.xlu0 %1118
    %v1120 = vsel %vm369, %v363, 0.0
    %1121 = vadd.xlane.f32.xlu0 %v1120
    %v1122 = vpop.xlane.xlu0 %1121
    %v1123 = vsel %vm369, %v364, 0.0
    %1124 = vadd.xlane.f32.xlu0 %v1123
    %v1125 = vpop.xlane.xlu0 %1124
    %v1126 = vsel %vm369, %v365, 0.0
    %1127 = vadd.xlane.f32.xlu0 %v1126
    %v1128 = vpop.xlane.xlu0 %1127
    %v1129 = vsel %vm369, %v366, 0.0
    %1130 = vadd.xlane.f32.xlu0 %v1129
    %v1131 = vpop.xlane.xlu0 %1130
    %v1132 = vsel %vm369, %v367, 0.0
    %1133 = vadd.xlane.f32.xlu0 %v1132
    %v1134 = vpop.xlane.xlu0 %1133
    %v1135 = vsel %vm369, %v368, 0.0
    %1136 = vadd.xlane.f32.xlu0 %v1135
    %v1137 = vpop.xlane.xlu0 %1136
    %v1138 = vrcp.pop 64.0
    %v1139 = vmul.f32 64.0, %v1138
    %v1140 = vsub.f32 1.0, %v1139
    %v1141 = vmul.f32 %v1138, %v1140
    %v1142 = vadd.f32 %v1138, %v1141
    %vm1143 = vweird.f32 %v1138
    %v1144 = vsel %vm1143, %v1138, %v1142
    %v1145 = vmul.f32 %v372, %v1144
    %v1146 = vmul.f32 %v375, %v1144
    %v1147 = vmul.f32 %v378, %v1144
    %v1148 = vmul.f32 %v381, %v1144
    %v1149 = vmul.f32 %v384, %v1144
    %v1150 = vmul.f32 %v387, %v1144
    %v1151 = vmul.f32 %v390, %v1144
    %v1152 = vmul.f32 %v393, %v1144
    %v1153 = vmul.f32 %v396, %v1144
    %v1154 = vmul.f32 %v399, %v1144
    %v1155 = vmul.f32 %v402, %v1144
    %v1156 = vmul.f32 %v405, %v1144
    %v1157 = vmul.f32 %v408, %v1144
    %v1158 = vmul.f32 %v411, %v1144
    %v1159 = vmul.f32 %v414, %v1144
    %v1160 = vmul.f32 %v417, %v1144
    %v1161 = vmul.f32 %v420, %v1144
    %v1162 = vmul.f32 %v423, %v1144
    %v1163 = vmul.f32 %v426, %v1144
    %v1164 = vmul.f32 %v429, %v1144
    %v1165 = vmul.f32 %v432, %v1144
    %v1166 = vmul.f32 %v435, %v1144
    %v1167 = vmul.f32 %v438, %v1144
    %v1168 = vmul.f32 %v441, %v1144
    %v1169 = vmul.f32 %v444, %v1144
    %v1170 = vmul.f32 %v447, %v1144
    %v1171 = vmul.f32 %v450, %v1144
    %v1172 = vmul.f32 %v453, %v1144
    %v1173 = vmul.f32 %v456, %v1144
    %v1174 = vmul.f32 %v459, %v1144
    %v1175 = vmul.f32 %v462, %v1144
    %v1176 = vmul.f32 %v465, %v1144
    %v1177 = vmul.f32 %v468, %v1144
    %v1178 = vmul.f32 %v471, %v1144
    %v1179 = vmul.f32 %v474, %v1144
    %v1180 = vmul.f32 %v477, %v1144
    %v1181 = vmul.f32 %v480, %v1144
    %v1182 = vmul.f32 %v483, %v1144
    %v1183 = vmul.f32 %v486, %v1144
    %v1184 = vmul.f32 %v489, %v1144
    %v1185 = vmul.f32 %v492, %v1144
    %v1186 = vmul.f32 %v495, %v1144
    %v1187 = vmul.f32 %v498, %v1144
    %v1188 = vmul.f32 %v501, %v1144
    %v1189 = vmul.f32 %v504, %v1144
    %v1190 = vmul.f32 %v507, %v1144
    %v1191 = vmul.f32 %v510, %v1144
    %v1192 = vmul.f32 %v513, %v1144
    %v1193 = vmul.f32 %v516, %v1144
    %v1194 = vmul.f32 %v519, %v1144
    %v1195 = vmul.f32 %v522, %v1144
    %v1196 = vmul.f32 %v525, %v1144
    %v1197 = vmul.f32 %v528, %v1144
    %v1198 = vmul.f32 %v531, %v1144
    %v1199 = vmul.f32 %v534, %v1144
    %v1200 = vmul.f32 %v537, %v1144
    %v1201 = vmul.f32 %v540, %v1144
    %v1202 = vmul.f32 %v543, %v1144
    %v1203 = vmul.f32 %v546, %v1144
    %v1204 = vmul.f32 %v549, %v1144
    %v1205 = vmul.f32 %v552, %v1144
    %v1206 = vmul.f32 %v555, %v1144
    %v1207 = vmul.f32 %v558, %v1144
    %v1208 = vmul.f32 %v561, %v1144
    %v1209 = vmul.f32 %v564, %v1144
    %v1210 = vmul.f32 %v567, %v1144
    %v1211 = vmul.f32 %v570, %v1144
    %v1212 = vmul.f32 %v573, %v1144
    %v1213 = vmul.f32 %v576, %v1144
    %v1214 = vmul.f32 %v579, %v1144
    %v1215 = vmul.f32 %v582, %v1144
    %v1216 = vmul.f32 %v585, %v1144
    %v1217 = vmul.f32 %v588, %v1144
    %v1218 = vmul.f32 %v591, %v1144
    %v1219 = vmul.f32 %v594, %v1144
    %v1220 = vmul.f32 %v597, %v1144
    %v1221 = vmul.f32 %v600, %v1144
    %v1222 = vmul.f32 %v603, %v1144
    %v1223 = vmul.f32 %v606, %v1144
    %v1224 = vmul.f32 %v609, %v1144
    %v1225 = vmul.f32 %v612, %v1144
    %v1226 = vmul.f32 %v615, %v1144
    %v1227 = vmul.f32 %v618, %v1144
    %v1228 = vmul.f32 %v621, %v1144
    %v1229 = vmul.f32 %v624, %v1144
    %v1230 = vmul.f32 %v627, %v1144
    %v1231 = vmul.f32 %v630, %v1144
    %v1232 = vmul.f32 %v633, %v1144
    %v1233 = vmul.f32 %v636, %v1144
    %v1234 = vmul.f32 %v639, %v1144
    %v1235 = vmul.f32 %v642, %v1144
    %v1236 = vmul.f32 %v645, %v1144
    %v1237 = vmul.f32 %v648, %v1144
    %v1238 = vmul.f32 %v651, %v1144
    %v1239 = vmul.f32 %v654, %v1144
    %v1240 = vmul.f32 %v657, %v1144
    %v1241 = vmul.f32 %v660, %v1144
    %v1242 = vmul.f32 %v663, %v1144
    %v1243 = vmul.f32 %v666, %v1144
    %v1244 = vmul.f32 %v669, %v1144
    %v1245 = vmul.f32 %v672, %v1144
    %v1246 = vmul.f32 %v675, %v1144
    %v1247 = vmul.f32 %v678, %v1144
    %v1248 = vmul.f32 %v681, %v1144
    %v1249 = vmul.f32 %v684, %v1144
    %v1250 = vmul.f32 %v687, %v1144
    %v1251 = vmul.f32 %v690, %v1144
    %v1252 = vmul.f32 %v693, %v1144
    %v1253 = vmul.f32 %v696, %v1144
    %v1254 = vmul.f32 %v699, %v1144
    %v1255 = vmul.f32 %v702, %v1144
    %v1256 = vmul.f32 %v705, %v1144
    %v1257 = vmul.f32 %v708, %v1144
    %v1258 = vmul.f32 %v711, %v1144
    %v1259 = vmul.f32 %v714, %v1144
    %v1260 = vmul.f32 %v717, %v1144
    %v1261 = vmul.f32 %v720, %v1144
    %v1262 = vmul.f32 %v723, %v1144
    %v1263 = vmul.f32 %v726, %v1144
    %v1264 = vmul.f32 %v729, %v1144
    %v1265 = vmul.f32 %v732, %v1144
    %v1266 = vmul.f32 %v735, %v1144
    %v1267 = vmul.f32 %v738, %v1144
    %v1268 = vmul.f32 %v741, %v1144
    %v1269 = vmul.f32 %v744, %v1144
    %v1270 = vmul.f32 %v747, %v1144
    %v1271 = vmul.f32 %v750, %v1144
    %v1272 = vmul.f32 %v753, %v1144
    %v1273 = vmul.f32 %v756, %v1144
    %v1274 = vmul.f32 %v759, %v1144
    %v1275 = vmul.f32 %v762, %v1144
    %v1276 = vmul.f32 %v765, %v1144
    %v1277 = vmul.f32 %v768, %v1144
    %v1278 = vmul.f32 %v771, %v1144
    %v1279 = vmul.f32 %v774, %v1144
    %v1280 = vmul.f32 %v777, %v1144
    %v1281 = vmul.f32 %v780, %v1144
    %v1282 = vmul.f32 %v783, %v1144
    %v1283 = vmul.f32 %v786, %v1144
    %v1284 = vmul.f32 %v789, %v1144
    %v1285 = vmul.f32 %v792, %v1144
    %v1286 = vmul.f32 %v795, %v1144
    %v1287 = vmul.f32 %v798, %v1144
    %v1288 = vmul.f32 %v801, %v1144
    %v1289 = vmul.f32 %v804, %v1144
    %v1290 = vmul.f32 %v807, %v1144
    %v1291 = vmul.f32 %v810, %v1144
    %v1292 = vmul.f32 %v813, %v1144
    %v1293 = vmul.f32 %v816, %v1144
    %v1294 = vmul.f32 %v819, %v1144
    %v1295 = vmul.f32 %v822, %v1144
    %v1296 = vmul.f32 %v825, %v1144
    %v1297 = vmul.f32 %v828, %v1144
    %v1298 = vmul.f32 %v831, %v1144
    %v1299 = vmul.f32 %v834, %v1144
    %v1300 = vmul.f32 %v837, %v1144
    %v1301 = vmul.f32 %v840, %v1144
    %v1302 = vmul.f32 %v843, %v1144
    %v1303 = vmul.f32 %v846, %v1144
    %v1304 = vmul.f32 %v849, %v1144
    %v1305 = vmul.f32 %v852, %v1144
    %v1306 = vmul.f32 %v855, %v1144
    %v1307 = vmul.f32 %v858, %v1144
    %v1308 = vmul.f32 %v861, %v1144
    %v1309 = vmul.f32 %v864, %v1144
    %v1310 = vmul.f32 %v867, %v1144
    %v1311 = vmul.f32 %v870, %v1144
    %v1312 = vmul.f32 %v873, %v1144
    %v1313 = vmul.f32 %v876, %v1144
    %v1314 = vmul.f32 %v879, %v1144
    %v1315 = vmul.f32 %v882, %v1144
    %v1316 = vmul.f32 %v885, %v1144
    %v1317 = vmul.f32 %v888, %v1144
    %v1318 = vmul.f32 %v891, %v1144
    %v1319 = vmul.f32 %v894, %v1144
    %v1320 = vmul.f32 %v897, %v1144
    %v1321 = vmul.f32 %v900, %v1144
    %v1322 = vmul.f32 %v903, %v1144
    %v1323 = vmul.f32 %v906, %v1144
    %v1324 = vmul.f32 %v909, %v1144
    %v1325 = vmul.f32 %v912, %v1144
    %v1326 = vmul.f32 %v915, %v1144
    %v1327 = vmul.f32 %v918, %v1144
    %v1328 = vmul.f32 %v921, %v1144
    %v1329 = vmul.f32 %v924, %v1144
    %v1330 = vmul.f32 %v927, %v1144
    %v1331 = vmul.f32 %v930, %v1144
    %v1332 = vmul.f32 %v933, %v1144
    %v1333 = vmul.f32 %v936, %v1144
    %v1334 = vmul.f32 %v939, %v1144
    %v1335 = vmul.f32 %v942, %v1144
    %v1336 = vmul.f32 %v945, %v1144
    %v1337 = vmul.f32 %v948, %v1144
    %v1338 = vmul.f32 %v951, %v1144
    %v1339 = vmul.f32 %v954, %v1144
    %v1340 = vmul.f32 %v957, %v1144
    %v1341 = vmul.f32 %v960, %v1144
    %v1342 = vmul.f32 %v963, %v1144
    %v1343 = vmul.f32 %v966, %v1144
    %v1344 = vmul.f32 %v969, %v1144
    %v1345 = vmul.f32 %v972, %v1144
    %v1346 = vmul.f32 %v975, %v1144
    %v1347 = vmul.f32 %v978, %v1144
    %v1348 = vmul.f32 %v981, %v1144
    %v1349 = vmul.f32 %v984, %v1144
    %v1350 = vmul.f32 %v987, %v1144
    %v1351 = vmul.f32 %v990, %v1144
    %v1352 = vmul.f32 %v993, %v1144
    %v1353 = vmul.f32 %v996, %v1144
    %v1354 = vmul.f32 %v999, %v1144
    %v1355 = vmul.f32 %v1002, %v1144
    %v1356 = vmul.f32 %v1005, %v1144
    %v1357 = vmul.f32 %v1008, %v1144
    %v1358 = vmul.f32 %v1011, %v1144
    %v1359 = vmul.f32 %v1014, %v1144
    %v1360 = vmul.f32 %v1017, %v1144
    %v1361 = vmul.f32 %v1020, %v1144
    %v1362 = vmul.f32 %v1023, %v1144
    %v1363 = vmul.f32 %v1026, %v1144
    %v1364 = vmul.f32 %v1029, %v1144
    %v1365 = vmul.f32 %v1032, %v1144
    %v1366 = vmul.f32 %v1035, %v1144
    %v1367 = vmul.f32 %v1038, %v1144
    %v1368 = vmul.f32 %v1041, %v1144
    %v1369 = vmul.f32 %v1044, %v1144
    %v1370 = vmul.f32 %v1047, %v1144
    %v1371 = vmul.f32 %v1050, %v1144
    %v1372 = vmul.f32 %v1053, %v1144
    %v1373 = vmul.f32 %v1056, %v1144
    %v1374 = vmul.f32 %v1059, %v1144
    %v1375 = vmul.f32 %v1062, %v1144
    %v1376 = vmul.f32 %v1065, %v1144
    %v1377 = vmul.f32 %v1068, %v1144
    %v1378 = vmul.f32 %v1071, %v1144
    %v1379 = vmul.f32 %v1074, %v1144
    %v1380 = vmul.f32 %v1077, %v1144
    %v1381 = vmul.f32 %v1080, %v1144
    %v1382 = vmul.f32 %v1083, %v1144
    %v1383 = vmul.f32 %v1086, %v1144
    %v1384 = vmul.f32 %v1089, %v1144
    %v1385 = vmul.f32 %v1092, %v1144
    %v1386 = vmul.f32 %v1095, %v1144
    %v1387 = vmul.f32 %v1098, %v1144
    %v1388 = vmul.f32 %v1101, %v1144
    %v1389 = vmul.f32 %v1104, %v1144
    %v1390 = vmul.f32 %v1107, %v1144
    %v1391 = vmul.f32 %v1110, %v1144
    %v1392 = vmul.f32 %v1113, %v1144
    %v1393 = vmul.f32 %v1116, %v1144
    %v1394 = vmul.f32 %v1119, %v1144
    %v1395 = vmul.f32 %v1122, %v1144
    %v1396 = vmul.f32 %v1125, %v1144
    %v1397 = vmul.f32 %v1128, %v1144
    %v1398 = vmul.f32 %v1131, %v1144
    %v1399 = vmul.f32 %v1134, %v1144
    %v1400 = vmul.f32 %v1137, %v1144
    %v1401 = vld [vmem:[#allocation5] sm:$0xff]
    %v1402 = vld [vmem:[#allocation5 + $0x8] sm:$0xff]
    %v1403 = vld [vmem:[#allocation5 + $0x10] sm:$0xff]
    %v1404 = vld [vmem:[#allocation5 + $0x18] sm:$0xff]
    %v1405 = vld [vmem:[#allocation5 + $0x20] sm:$0xff]
    %v1406 = vld [vmem:[#allocation5 + $0x28] sm:$0xff]
    %v1407 = vld [vmem:[#allocation5 + $0x30] sm:$0xff]
    %v1408 = vld [vmem:[#allocation5 + $0x38] sm:$0xff]
    %v1409 = vld [vmem:[#allocation5 + $0x40] sm:$0xff]
    %v1410 = vld [vmem:[#allocation5 + $0x48] sm:$0xff]
    %v1411 = vld [vmem:[#allocation5 + $0x50] sm:$0xff]
    %v1412 = vld [vmem:[#allocation5 + $0x58] sm:$0xff]
    %v1413 = vld [vmem:[#allocation5 + $0x60] sm:$0xff]
    %v1414 = vld [vmem:[#allocation5 + $0x68] sm:$0xff]
    %v1415 = vld [vmem:[#allocation5 + $0x70] sm:$0xff]
    %v1416 = vld [vmem:[#allocation5 + $0x78] sm:$0xff]
    %v1417 = vld [vmem:[#allocation5 + $0x80] sm:$0xff]
    %v1418 = vld [vmem:[#allocation5 + $0x88] sm:$0xff]
    %v1419 = vld [vmem:[#allocation5 + $0x90] sm:$0xff]
    %v1420 = vld [vmem:[#allocation5 + $0x98] sm:$0xff]
    %v1421 = vld [vmem:[#allocation5 + $0xa0] sm:$0xff]
    %v1422 = vld [vmem:[#allocation5 + $0xa8] sm:$0xff]
    %v1423 = vld [vmem:[#allocation5 + $0xb0] sm:$0xff]
    %v1424 = vld [vmem:[#allocation5 + $0xb8] sm:$0xff]
    %v1425 = vld [vmem:[#allocation5 + $0xc0] sm:$0xff]
    %v1426 = vld [vmem:[#allocation5 + $0xc8] sm:$0xff]
    %v1427 = vld [vmem:[#allocation5 + $0xd0] sm:$0xff]
    %v1428 = vld [vmem:[#allocation5 + $0xd8] sm:$0xff]
    %v1429 = vld [vmem:[#allocation5 + $0xe0] sm:$0xff]
    %v1430 = vld [vmem:[#allocation5 + $0xe8] sm:$0xff]
    %v1431 = vld [vmem:[#allocation5 + $0xf0] sm:$0xff]
    %v1432 = vld [vmem:[#allocation5 + $0xf8] sm:$0xff]
    %v1433 = vld [vmem:[#allocation5 + $0x100] sm:$0xff]
    %v1434 = vld [vmem:[#allocation5 + $0x108] sm:$0xff]
    %v1435 = vld [vmem:[#allocation5 + $0x110] sm:$0xff]
    %v1436 = vld [vmem:[#allocation5 + $0x118] sm:$0xff]
    %v1437 = vld [vmem:[#allocation5 + $0x120] sm:$0xff]
    %v1438 = vld [vmem:[#allocation5 + $0x128] sm:$0xff]
    %v1439 = vld [vmem:[#allocation5 + $0x130] sm:$0xff]
    %v1440 = vld [vmem:[#allocation5 + $0x138] sm:$0xff]
    %v1441 = vld [vmem:[#allocation5 + $0x140] sm:$0xff]
    %v1442 = vld [vmem:[#allocation5 + $0x148] sm:$0xff]
    %v1443 = vld [vmem:[#allocation5 + $0x150] sm:$0xff]
    %v1444 = vld [vmem:[#allocation5 + $0x158] sm:$0xff]
    %v1445 = vld [vmem:[#allocation5 + $0x160] sm:$0xff]
    %v1446 = vld [vmem:[#allocation5 + $0x168] sm:$0xff]
    %v1447 = vld [vmem:[#allocation5 + $0x170] sm:$0xff]
    %v1448 = vld [vmem:[#allocation5 + $0x178] sm:$0xff]
    %v1449 = vld [vmem:[#allocation5 + $0x180] sm:$0xff]
    %v1450 = vld [vmem:[#allocation5 + $0x188] sm:$0xff]
    %v1451 = vld [vmem:[#allocation5 + $0x190] sm:$0xff]
    %v1452 = vld [vmem:[#allocation5 + $0x198] sm:$0xff]
    %v1453 = vld [vmem:[#allocation5 + $0x1a0] sm:$0xff]
    %v1454 = vld [vmem:[#allocation5 + $0x1a8] sm:$0xff]
    %v1455 = vld [vmem:[#allocation5 + $0x1b0] sm:$0xff]
    %v1456 = vld [vmem:[#allocation5 + $0x1b8] sm:$0xff]
    %v1457 = vld [vmem:[#allocation5 + $0x1c0] sm:$0xff]
    %v1458 = vld [vmem:[#allocation5 + $0x1c8] sm:$0xff]
    %v1459 = vld [vmem:[#allocation5 + $0x1d0] sm:$0xff]
    %v1460 = vld [vmem:[#allocation5 + $0x1d8] sm:$0xff]
    %v1461 = vld [vmem:[#allocation5 + $0x1e0] sm:$0xff]
    %v1462 = vld [vmem:[#allocation5 + $0x1e8] sm:$0xff]
    %v1463 = vld [vmem:[#allocation5 + $0x1f0] sm:$0xff]
    %v1464 = vld [vmem:[#allocation5 + $0x1f8] sm:$0xff]
    %v1465 = vld [vmem:[#allocation5 + $0x200] sm:$0xff]
    %v1466 = vld [vmem:[#allocation5 + $0x208] sm:$0xff]
    %v1467 = vld [vmem:[#allocation5 + $0x210] sm:$0xff]
    %v1468 = vld [vmem:[#allocation5 + $0x218] sm:$0xff]
    %v1469 = vld [vmem:[#allocation5 + $0x220] sm:$0xff]
    %v1470 = vld [vmem:[#allocation5 + $0x228] sm:$0xff]
    %v1471 = vld [vmem:[#allocation5 + $0x230] sm:$0xff]
    %v1472 = vld [vmem:[#allocation5 + $0x238] sm:$0xff]
    %v1473 = vld [vmem:[#allocation5 + $0x240] sm:$0xff]
    %v1474 = vld [vmem:[#allocation5 + $0x248] sm:$0xff]
    %v1475 = vld [vmem:[#allocation5 + $0x250] sm:$0xff]
    %v1476 = vld [vmem:[#allocation5 + $0x258] sm:$0xff]
    %v1477 = vld [vmem:[#allocation5 + $0x260] sm:$0xff]
    %v1478 = vld [vmem:[#allocation5 + $0x268] sm:$0xff]
    %v1479 = vld [vmem:[#allocation5 + $0x270] sm:$0xff]
    %v1480 = vld [vmem:[#allocation5 + $0x278] sm:$0xff]
    %v1481 = vld [vmem:[#allocation5 + $0x280] sm:$0xff]
    %v1482 = vld [vmem:[#allocation5 + $0x288] sm:$0xff]
    %v1483 = vld [vmem:[#allocation5 + $0x290] sm:$0xff]
    %v1484 = vld [vmem:[#allocation5 + $0x298] sm:$0xff]
    %v1485 = vld [vmem:[#allocation5 + $0x2a0] sm:$0xff]
    %v1486 = vld [vmem:[#allocation5 + $0x2a8] sm:$0xff]
    %v1487 = vld [vmem:[#allocation5 + $0x2b0] sm:$0xff]
    %v1488 = vld [vmem:[#allocation5 + $0x2b8] sm:$0xff]
    %v1489 = vld [vmem:[#allocation5 + $0x2c0] sm:$0xff]
    %v1490 = vld [vmem:[#allocation5 + $0x2c8] sm:$0xff]
    %v1491 = vld [vmem:[#allocation5 + $0x2d0] sm:$0xff]
    %v1492 = vld [vmem:[#allocation5 + $0x2d8] sm:$0xff]
    %v1493 = vld [vmem:[#allocation5 + $0x2e0] sm:$0xff]
    %v1494 = vld [vmem:[#allocation5 + $0x2e8] sm:$0xff]
    %v1495 = vld [vmem:[#allocation5 + $0x2f0] sm:$0xff]
    %v1496 = vld [vmem:[#allocation5 + $0x2f8] sm:$0xff]
    %v1497 = vld [vmem:[#allocation5 + $0x300] sm:$0xff]
    %v1498 = vld [vmem:[#allocation5 + $0x308] sm:$0xff]
    %v1499 = vld [vmem:[#allocation5 + $0x310] sm:$0xff]
    %v1500 = vld [vmem:[#allocation5 + $0x318] sm:$0xff]
    %v1501 = vld [vmem:[#allocation5 + $0x320] sm:$0xff]
    %v1502 = vld [vmem:[#allocation5 + $0x328] sm:$0xff]
    %v1503 = vld [vmem:[#allocation5 + $0x330] sm:$0xff]
    %v1504 = vld [vmem:[#allocation5 + $0x338] sm:$0xff]
    %v1505 = vld [vmem:[#allocation5 + $0x340] sm:$0xff]
    %v1506 = vld [vmem:[#allocation5 + $0x348] sm:$0xff]
    %v1507 = vld [vmem:[#allocation5 + $0x350] sm:$0xff]
    %v1508 = vld [vmem:[#allocation5 + $0x358] sm:$0xff]
    %v1509 = vld [vmem:[#allocation5 + $0x360] sm:$0xff]
    %v1510 = vld [vmem:[#allocation5 + $0x368] sm:$0xff]
    %v1511 = vld [vmem:[#allocation5 + $0x370] sm:$0xff]
    %v1512 = vld [vmem:[#allocation5 + $0x378] sm:$0xff]
    %v1513 = vld [vmem:[#allocation5 + $0x380] sm:$0xff]
    %v1514 = vld [vmem:[#allocation5 + $0x388] sm:$0xff]
    %v1515 = vld [vmem:[#allocation5 + $0x390] sm:$0xff]
    %v1516 = vld [vmem:[#allocation5 + $0x398] sm:$0xff]
    %v1517 = vld [vmem:[#allocation5 + $0x3a0] sm:$0xff]
    %v1518 = vld [vmem:[#allocation5 + $0x3a8] sm:$0xff]
    %v1519 = vld [vmem:[#allocation5 + $0x3b0] sm:$0xff]
    %v1520 = vld [vmem:[#allocation5 + $0x3b8] sm:$0xff]
    %v1521 = vld [vmem:[#allocation5 + $0x3c0] sm:$0xff]
    %v1522 = vld [vmem:[#allocation5 + $0x3c8] sm:$0xff]
    %v1523 = vld [vmem:[#allocation5 + $0x3d0] sm:$0xff]
    %v1524 = vld [vmem:[#allocation5 + $0x3d8] sm:$0xff]
    %v1525 = vld [vmem:[#allocation5 + $0x3e0] sm:$0xff]
    %v1526 = vld [vmem:[#allocation5 + $0x3e8] sm:$0xff]
    %v1527 = vld [vmem:[#allocation5 + $0x3f0] sm:$0xff]
    %v1528 = vld [vmem:[#allocation5 + $0x3f8] sm:$0xff]
    %v1529 = vld [vmem:[#allocation5 + $0x400] sm:$0xff]
    %v1530 = vld [vmem:[#allocation5 + $0x408] sm:$0xff]
    %v1531 = vld [vmem:[#allocation5 + $0x410] sm:$0xff]
    %v1532 = vld [vmem:[#allocation5 + $0x418] sm:$0xff]
    %v1533 = vld [vmem:[#allocation5 + $0x420] sm:$0xff]
    %v1534 = vld [vmem:[#allocation5 + $0x428] sm:$0xff]
    %v1535 = vld [vmem:[#allocation5 + $0x430] sm:$0xff]
    %v1536 = vld [vmem:[#allocation5 + $0x438] sm:$0xff]
    %v1537 = vld [vmem:[#allocation5 + $0x440] sm:$0xff]
    %v1538 = vld [vmem:[#allocation5 + $0x448] sm:$0xff]
    %v1539 = vld [vmem:[#allocation5 + $0x450] sm:$0xff]
    %v1540 = vld [vmem:[#allocation5 + $0x458] sm:$0xff]
    %v1541 = vld [vmem:[#allocation5 + $0x460] sm:$0xff]
    %v1542 = vld [vmem:[#allocation5 + $0x468] sm:$0xff]
    %v1543 = vld [vmem:[#allocation5 + $0x470] sm:$0xff]
    %v1544 = vld [vmem:[#allocation5 + $0x478] sm:$0xff]
    %v1545 = vld [vmem:[#allocation5 + $0x480] sm:$0xff]
    %v1546 = vld [vmem:[#allocation5 + $0x488] sm:$0xff]
    %v1547 = vld [vmem:[#allocation5 + $0x490] sm:$0xff]
    %v1548 = vld [vmem:[#allocation5 + $0x498] sm:$0xff]
    %v1549 = vld [vmem:[#allocation5 + $0x4a0] sm:$0xff]
    %v1550 = vld [vmem:[#allocation5 + $0x4a8] sm:$0xff]
    %v1551 = vld [vmem:[#allocation5 + $0x4b0] sm:$0xff]
    %v1552 = vld [vmem:[#allocation5 + $0x4b8] sm:$0xff]
    %v1553 = vld [vmem:[#allocation5 + $0x4c0] sm:$0xff]
    %v1554 = vld [vmem:[#allocation5 + $0x4c8] sm:$0xff]
    %v1555 = vld [vmem:[#allocation5 + $0x4d0] sm:$0xff]
    %v1556 = vld [vmem:[#allocation5 + $0x4d8] sm:$0xff]
    %v1557 = vld [vmem:[#allocation5 + $0x4e0] sm:$0xff]
    %v1558 = vld [vmem:[#allocation5 + $0x4e8] sm:$0xff]
    %v1559 = vld [vmem:[#allocation5 + $0x4f0] sm:$0xff]
    %v1560 = vld [vmem:[#allocation5 + $0x4f8] sm:$0xff]
    %v1561 = vld [vmem:[#allocation5 + $0x500] sm:$0xff]
    %v1562 = vld [vmem:[#allocation5 + $0x508] sm:$0xff]
    %v1563 = vld [vmem:[#allocation5 + $0x510] sm:$0xff]
    %v1564 = vld [vmem:[#allocation5 + $0x518] sm:$0xff]
    %v1565 = vld [vmem:[#allocation5 + $0x520] sm:$0xff]
    %v1566 = vld [vmem:[#allocation5 + $0x528] sm:$0xff]
    %v1567 = vld [vmem:[#allocation5 + $0x530] sm:$0xff]
    %v1568 = vld [vmem:[#allocation5 + $0x538] sm:$0xff]
    %v1569 = vld [vmem:[#allocation5 + $0x540] sm:$0xff]
    %v1570 = vld [vmem:[#allocation5 + $0x548] sm:$0xff]
    %v1571 = vld [vmem:[#allocation5 + $0x550] sm:$0xff]
    %v1572 = vld [vmem:[#allocation5 + $0x558] sm:$0xff]
    %v1573 = vld [vmem:[#allocation5 + $0x560] sm:$0xff]
    %v1574 = vld [vmem:[#allocation5 + $0x568] sm:$0xff]
    %v1575 = vld [vmem:[#allocation5 + $0x570] sm:$0xff]
    %v1576 = vld [vmem:[#allocation5 + $0x578] sm:$0xff]
    %v1577 = vld [vmem:[#allocation5 + $0x580] sm:$0xff]
    %v1578 = vld [vmem:[#allocation5 + $0x588] sm:$0xff]
    %v1579 = vld [vmem:[#allocation5 + $0x590] sm:$0xff]
    %v1580 = vld [vmem:[#allocation5 + $0x598] sm:$0xff]
    %v1581 = vld [vmem:[#allocation5 + $0x5a0] sm:$0xff]
    %v1582 = vld [vmem:[#allocation5 + $0x5a8] sm:$0xff]
    %v1583 = vld [vmem:[#allocation5 + $0x5b0] sm:$0xff]
    %v1584 = vld [vmem:[#allocation5 + $0x5b8] sm:$0xff]
    %v1585 = vld [vmem:[#allocation5 + $0x5c0] sm:$0xff]
    %v1586 = vld [vmem:[#allocation5 + $0x5c8] sm:$0xff]
    %v1587 = vld [vmem:[#allocation5 + $0x5d0] sm:$0xff]
    %v1588 = vld [vmem:[#allocation5 + $0x5d8] sm:$0xff]
    %v1589 = vld [vmem:[#allocation5 + $0x5e0] sm:$0xff]
    %v1590 = vld [vmem:[#allocation5 + $0x5e8] sm:$0xff]
    %v1591 = vld [vmem:[#allocation5 + $0x5f0] sm:$0xff]
    %v1592 = vld [vmem:[#allocation5 + $0x5f8] sm:$0xff]
    %v1593 = vld [vmem:[#allocation5 + $0x600] sm:$0xff]
    %v1594 = vld [vmem:[#allocation5 + $0x608] sm:$0xff]
    %v1595 = vld [vmem:[#allocation5 + $0x610] sm:$0xff]
    %v1596 = vld [vmem:[#allocation5 + $0x618] sm:$0xff]
    %v1597 = vld [vmem:[#allocation5 + $0x620] sm:$0xff]
    %v1598 = vld [vmem:[#allocation5 + $0x628] sm:$0xff]
    %v1599 = vld [vmem:[#allocation5 + $0x630] sm:$0xff]
    %v1600 = vld [vmem:[#allocation5 + $0x638] sm:$0xff]
    %v1601 = vld [vmem:[#allocation5 + $0x640] sm:$0xff]
    %v1602 = vld [vmem:[#allocation5 + $0x648] sm:$0xff]
    %v1603 = vld [vmem:[#allocation5 + $0x650] sm:$0xff]
    %v1604 = vld [vmem:[#allocation5 + $0x658] sm:$0xff]
    %v1605 = vld [vmem:[#allocation5 + $0x660] sm:$0xff]
    %v1606 = vld [vmem:[#allocation5 + $0x668] sm:$0xff]
    %v1607 = vld [vmem:[#allocation5 + $0x670] sm:$0xff]
    %v1608 = vld [vmem:[#allocation5 + $0x678] sm:$0xff]
    %v1609 = vld [vmem:[#allocation5 + $0x680] sm:$0xff]
    %v1610 = vld [vmem:[#allocation5 + $0x688] sm:$0xff]
    %v1611 = vld [vmem:[#allocation5 + $0x690] sm:$0xff]
    %v1612 = vld [vmem:[#allocation5 + $0x698] sm:$0xff]
    %v1613 = vld [vmem:[#allocation5 + $0x6a0] sm:$0xff]
    %v1614 = vld [vmem:[#allocation5 + $0x6a8] sm:$0xff]
    %v1615 = vld [vmem:[#allocation5 + $0x6b0] sm:$0xff]
    %v1616 = vld [vmem:[#allocation5 + $0x6b8] sm:$0xff]
    %v1617 = vld [vmem:[#allocation5 + $0x6c0] sm:$0xff]
    %v1618 = vld [vmem:[#allocation5 + $0x6c8] sm:$0xff]
    %v1619 = vld [vmem:[#allocation5 + $0x6d0] sm:$0xff]
    %v1620 = vld [vmem:[#allocation5 + $0x6d8] sm:$0xff]
    %v1621 = vld [vmem:[#allocation5 + $0x6e0] sm:$0xff]
    %v1622 = vld [vmem:[#allocation5 + $0x6e8] sm:$0xff]
    %v1623 = vld [vmem:[#allocation5 + $0x6f0] sm:$0xff]
    %v1624 = vld [vmem:[#allocation5 + $0x6f8] sm:$0xff]
    %v1625 = vld [vmem:[#allocation5 + $0x700] sm:$0xff]
    %v1626 = vld [vmem:[#allocation5 + $0x708] sm:$0xff]
    %v1627 = vld [vmem:[#allocation5 + $0x710] sm:$0xff]
    %v1628 = vld [vmem:[#allocation5 + $0x718] sm:$0xff]
    %v1629 = vld [vmem:[#allocation5 + $0x720] sm:$0xff]
    %v1630 = vld [vmem:[#allocation5 + $0x728] sm:$0xff]
    %v1631 = vld [vmem:[#allocation5 + $0x730] sm:$0xff]
    %v1632 = vld [vmem:[#allocation5 + $0x738] sm:$0xff]
    %v1633 = vld [vmem:[#allocation5 + $0x740] sm:$0xff]
    %v1634 = vld [vmem:[#allocation5 + $0x748] sm:$0xff]
    %v1635 = vld [vmem:[#allocation5 + $0x750] sm:$0xff]
    %v1636 = vld [vmem:[#allocation5 + $0x758] sm:$0xff]
    %v1637 = vld [vmem:[#allocation5 + $0x760] sm:$0xff]
    %v1638 = vld [vmem:[#allocation5 + $0x768] sm:$0xff]
    %v1639 = vld [vmem:[#allocation5 + $0x770] sm:$0xff]
    %v1640 = vld [vmem:[#allocation5 + $0x778] sm:$0xff]
    %v1641 = vld [vmem:[#allocation5 + $0x780] sm:$0xff]
    %v1642 = vld [vmem:[#allocation5 + $0x788] sm:$0xff]
    %v1643 = vld [vmem:[#allocation5 + $0x790] sm:$0xff]
    %v1644 = vld [vmem:[#allocation5 + $0x798] sm:$0xff]
    %v1645 = vld [vmem:[#allocation5 + $0x7a0] sm:$0xff]
    %v1646 = vld [vmem:[#allocation5 + $0x7a8] sm:$0xff]
    %v1647 = vld [vmem:[#allocation5 + $0x7b0] sm:$0xff]
    %v1648 = vld [vmem:[#allocation5 + $0x7b8] sm:$0xff]
    %v1649 = vld [vmem:[#allocation5 + $0x7c0] sm:$0xff]
    %v1650 = vld [vmem:[#allocation5 + $0x7c8] sm:$0xff]
    %v1651 = vld [vmem:[#allocation5 + $0x7d0] sm:$0xff]
    %v1652 = vld [vmem:[#allocation5 + $0x7d8] sm:$0xff]
    %v1653 = vld [vmem:[#allocation5 + $0x7e0] sm:$0xff]
    %v1654 = vld [vmem:[#allocation5 + $0x7e8] sm:$0xff]
    %v1655 = vld [vmem:[#allocation5 + $0x7f0] sm:$0xff]
    %v1656 = vld [vmem:[#allocation5 + $0x7f8] sm:$0xff]
    %v1657 = vld [vmem:[#allocation5 + $0x800] sm:$0xff]
    %v1658 = vld [vmem:[#allocation5 + $0x808] sm:$0xff]
    %v1659 = vld [vmem:[#allocation5 + $0x810] sm:$0xff]
    %v1660 = vld [vmem:[#allocation5 + $0x818] sm:$0xff]
    %v1661 = vld [vmem:[#allocation5 + $0x820] sm:$0xff]
    %v1662 = vld [vmem:[#allocation5 + $0x828] sm:$0xff]
    %v1663 = vld [vmem:[#allocation5 + $0x830] sm:$0xff]
    %v1664 = vld [vmem:[#allocation5 + $0x838] sm:$0xff]
    %v1665 = vld [vmem:[#allocation5 + $0x840] sm:$0xff]
    %v1666 = vld [vmem:[#allocation5 + $0x848] sm:$0xff]
    %v1667 = vld [vmem:[#allocation5 + $0x850] sm:$0xff]
    %v1668 = vld [vmem:[#allocation5 + $0x858] sm:$0xff]
    %v1669 = vld [vmem:[#allocation5 + $0x860] sm:$0xff]
    %v1670 = vld [vmem:[#allocation5 + $0x868] sm:$0xff]
    %v1671 = vld [vmem:[#allocation5 + $0x870] sm:$0xff]
    %v1672 = vld [vmem:[#allocation5 + $0x878] sm:$0xff]
    %v1673 = vld [vmem:[#allocation5 + $0x880] sm:$0xff]
    %v1674 = vld [vmem:[#allocation5 + $0x888] sm:$0xff]
    %v1675 = vld [vmem:[#allocation5 + $0x890] sm:$0xff]
    %v1676 = vld [vmem:[#allocation5 + $0x898] sm:$0xff]
    %v1677 = vld [vmem:[#allocation5 + $0x8a0] sm:$0xff]
    %v1678 = vld [vmem:[#allocation5 + $0x8a8] sm:$0xff]
    %v1679 = vld [vmem:[#allocation5 + $0x8b0] sm:$0xff]
    %v1680 = vld [vmem:[#allocation5 + $0x8b8] sm:$0xff]
    %v1681 = vld [vmem:[#allocation5 + $0x8c0] sm:$0xff]
    %v1682 = vld [vmem:[#allocation5 + $0x8c8] sm:$0xff]
    %v1683 = vld [vmem:[#allocation5 + $0x8d0] sm:$0xff]
    %v1684 = vld [vmem:[#allocation5 + $0x8d8] sm:$0xff]
    %v1685 = vld [vmem:[#allocation5 + $0x8e0] sm:$0xff]
    %v1686 = vld [vmem:[#allocation5 + $0x8e8] sm:$0xff]
    %v1687 = vld [vmem:[#allocation5 + $0x8f0] sm:$0xff]
    %v1688 = vld [vmem:[#allocation5 + $0x8f8] sm:$0xff]
    %v1689 = vld [vmem:[#allocation5 + $0x900] sm:$0xff]
    %v1690 = vld [vmem:[#allocation5 + $0x908] sm:$0xff]
    %v1691 = vld [vmem:[#allocation5 + $0x910] sm:$0xff]
    %v1692 = vld [vmem:[#allocation5 + $0x918] sm:$0xff]
    %v1693 = vld [vmem:[#allocation5 + $0x920] sm:$0xff]
    %v1694 = vld [vmem:[#allocation5 + $0x928] sm:$0xff]
    %v1695 = vld [vmem:[#allocation5 + $0x930] sm:$0xff]
    %v1696 = vld [vmem:[#allocation5 + $0x938] sm:$0xff]
    %v1697 = vld [vmem:[#allocation5 + $0x940] sm:$0xff]
    %v1698 = vld [vmem:[#allocation5 + $0x948] sm:$0xff]
    %v1699 = vld [vmem:[#allocation5 + $0x950] sm:$0xff]
    %v1700 = vld [vmem:[#allocation5 + $0x958] sm:$0xff]
    %v1701 = vld [vmem:[#allocation5 + $0x960] sm:$0xff]
    %v1702 = vld [vmem:[#allocation5 + $0x968] sm:$0xff]
    %v1703 = vld [vmem:[#allocation5 + $0x970] sm:$0xff]
    %v1704 = vld [vmem:[#allocation5 + $0x978] sm:$0xff]
    %v1705 = vld [vmem:[#allocation5 + $0x980] sm:$0xff]
    %v1706 = vld [vmem:[#allocation5 + $0x988] sm:$0xff]
    %v1707 = vld [vmem:[#allocation5 + $0x990] sm:$0xff]
    %v1708 = vld [vmem:[#allocation5 + $0x998] sm:$0xff]
    %v1709 = vld [vmem:[#allocation5 + $0x9a0] sm:$0xff]
    %v1710 = vld [vmem:[#allocation5 + $0x9a8] sm:$0xff]
    %v1711 = vld [vmem:[#allocation5 + $0x9b0] sm:$0xff]
    %v1712 = vld [vmem:[#allocation5 + $0x9b8] sm:$0xff]
    %v1713 = vld [vmem:[#allocation5 + $0x9c0] sm:$0xff]
    %v1714 = vld [vmem:[#allocation5 + $0x9c8] sm:$0xff]
    %v1715 = vld [vmem:[#allocation5 + $0x9d0] sm:$0xff]
    %v1716 = vld [vmem:[#allocation5 + $0x9d8] sm:$0xff]
    %v1717 = vld [vmem:[#allocation5 + $0x9e0] sm:$0xff]
    %v1718 = vld [vmem:[#allocation5 + $0x9e8] sm:$0xff]
    %v1719 = vld [vmem:[#allocation5 + $0x9f0] sm:$0xff]
    %v1720 = vld [vmem:[#allocation5 + $0x9f8] sm:$0xff]
    %v1721 = vld [vmem:[#allocation5 + $0xa00] sm:$0xff]
    %v1722 = vld [vmem:[#allocation5 + $0xa08] sm:$0xff]
    %v1723 = vld [vmem:[#allocation5 + $0xa10] sm:$0xff]
    %v1724 = vld [vmem:[#allocation5 + $0xa18] sm:$0xff]
    %v1725 = vld [vmem:[#allocation5 + $0xa20] sm:$0xff]
    %v1726 = vld [vmem:[#allocation5 + $0xa28] sm:$0xff]
    %v1727 = vld [vmem:[#allocation5 + $0xa30] sm:$0xff]
    %v1728 = vld [vmem:[#allocation5 + $0xa38] sm:$0xff]
    %v1729 = vld [vmem:[#allocation5 + $0xa40] sm:$0xff]
    %v1730 = vld [vmem:[#allocation5 + $0xa48] sm:$0xff]
    %v1731 = vld [vmem:[#allocation5 + $0xa50] sm:$0xff]
    %v1732 = vld [vmem:[#allocation5 + $0xa58] sm:$0xff]
    %v1733 = vld [vmem:[#allocation5 + $0xa60] sm:$0xff]
    %v1734 = vld [vmem:[#allocation5 + $0xa68] sm:$0xff]
    %v1735 = vld [vmem:[#allocation5 + $0xa70] sm:$0xff]
    %v1736 = vld [vmem:[#allocation5 + $0xa78] sm:$0xff]
    %v1737 = vld [vmem:[#allocation5 + $0xa80] sm:$0xff]
    %v1738 = vld [vmem:[#allocation5 + $0xa88] sm:$0xff]
    %v1739 = vld [vmem:[#allocation5 + $0xa90] sm:$0xff]
    %v1740 = vld [vmem:[#allocation5 + $0xa98] sm:$0xff]
    %v1741 = vld [vmem:[#allocation5 + $0xaa0] sm:$0xff]
    %v1742 = vld [vmem:[#allocation5 + $0xaa8] sm:$0xff]
    %v1743 = vld [vmem:[#allocation5 + $0xab0] sm:$0xff]
    %v1744 = vld [vmem:[#allocation5 + $0xab8] sm:$0xff]
    %v1745 = vld [vmem:[#allocation5 + $0xac0] sm:$0xff]
    %v1746 = vld [vmem:[#allocation5 + $0xac8] sm:$0xff]
    %v1747 = vld [vmem:[#allocation5 + $0xad0] sm:$0xff]
    %v1748 = vld [vmem:[#allocation5 + $0xad8] sm:$0xff]
    %v1749 = vld [vmem:[#allocation5 + $0xae0] sm:$0xff]
    %v1750 = vld [vmem:[#allocation5 + $0xae8] sm:$0xff]
    %v1751 = vld [vmem:[#allocation5 + $0xaf0] sm:$0xff]
    %v1752 = vld [vmem:[#allocation5 + $0xaf8] sm:$0xff]
    %v1753 = vld [vmem:[#allocation5 + $0xb00] sm:$0xff]
    %v1754 = vld [vmem:[#allocation5 + $0xb08] sm:$0xff]
    %v1755 = vld [vmem:[#allocation5 + $0xb10] sm:$0xff]
    %v1756 = vld [vmem:[#allocation5 + $0xb18] sm:$0xff]
    %v1757 = vld [vmem:[#allocation5 + $0xb20] sm:$0xff]
    %v1758 = vld [vmem:[#allocation5 + $0xb28] sm:$0xff]
    %v1759 = vld [vmem:[#allocation5 + $0xb30] sm:$0xff]
    %v1760 = vld [vmem:[#allocation5 + $0xb38] sm:$0xff]
    %v1761 = vld [vmem:[#allocation5 + $0xb40] sm:$0xff]
    %v1762 = vld [vmem:[#allocation5 + $0xb48] sm:$0xff]
    %v1763 = vld [vmem:[#allocation5 + $0xb50] sm:$0xff]
    %v1764 = vld [vmem:[#allocation5 + $0xb58] sm:$0xff]
    %v1765 = vld [vmem:[#allocation5 + $0xb60] sm:$0xff]
    %v1766 = vld [vmem:[#allocation5 + $0xb68] sm:$0xff]
    %v1767 = vld [vmem:[#allocation5 + $0xb70] sm:$0xff]
    %v1768 = vld [vmem:[#allocation5 + $0xb78] sm:$0xff]
    %v1769 = vld [vmem:[#allocation5 + $0xb80] sm:$0xff]
    %v1770 = vld [vmem:[#allocation5 + $0xb88] sm:$0xff]
    %v1771 = vld [vmem:[#allocation5 + $0xb90] sm:$0xff]
    %v1772 = vld [vmem:[#allocation5 + $0xb98] sm:$0xff]
    %v1773 = vld [vmem:[#allocation5 + $0xba0] sm:$0xff]
    %v1774 = vld [vmem:[#allocation5 + $0xba8] sm:$0xff]
    %v1775 = vld [vmem:[#allocation5 + $0xbb0] sm:$0xff]
    %v1776 = vld [vmem:[#allocation5 + $0xbb8] sm:$0xff]
    %v1777 = vld [vmem:[#allocation5 + $0xbc0] sm:$0xff]
    %v1778 = vld [vmem:[#allocation5 + $0xbc8] sm:$0xff]
    %v1779 = vld [vmem:[#allocation5 + $0xbd0] sm:$0xff]
    %v1780 = vld [vmem:[#allocation5 + $0xbd8] sm:$0xff]
    %v1781 = vld [vmem:[#allocation5 + $0xbe0] sm:$0xff]
    %v1782 = vld [vmem:[#allocation5 + $0xbe8] sm:$0xff]
    %v1783 = vld [vmem:[#allocation5 + $0xbf0] sm:$0xff]
    %v1784 = vld [vmem:[#allocation5 + $0xbf8] sm:$0xff]
    %v1785 = vld [vmem:[#allocation5 + $0xc00] sm:$0xff]
    %v1786 = vld [vmem:[#allocation5 + $0xc08] sm:$0xff]
    %v1787 = vld [vmem:[#allocation5 + $0xc10] sm:$0xff]
    %v1788 = vld [vmem:[#allocation5 + $0xc18] sm:$0xff]
    %v1789 = vld [vmem:[#allocation5 + $0xc20] sm:$0xff]
    %v1790 = vld [vmem:[#allocation5 + $0xc28] sm:$0xff]
    %v1791 = vld [vmem:[#allocation5 + $0xc30] sm:$0xff]
    %v1792 = vld [vmem:[#allocation5 + $0xc38] sm:$0xff]
    %v1793 = vld [vmem:[#allocation5 + $0xc40] sm:$0xff]
    %v1794 = vld [vmem:[#allocation5 + $0xc48] sm:$0xff]
    %v1795 = vld [vmem:[#allocation5 + $0xc50] sm:$0xff]
    %v1796 = vld [vmem:[#allocation5 + $0xc58] sm:$0xff]
    %v1797 = vld [vmem:[#allocation5 + $0xc60] sm:$0xff]
    %v1798 = vld [vmem:[#allocation5 + $0xc68] sm:$0xff]
    %v1799 = vld [vmem:[#allocation5 + $0xc70] sm:$0xff]
    %v1800 = vld [vmem:[#allocation5 + $0xc78] sm:$0xff]
    %v1801 = vld [vmem:[#allocation5 + $0xc80] sm:$0xff]
    %v1802 = vld [vmem:[#allocation5 + $0xc88] sm:$0xff]
    %v1803 = vld [vmem:[#allocation5 + $0xc90] sm:$0xff]
    %v1804 = vld [vmem:[#allocation5 + $0xc98] sm:$0xff]
    %v1805 = vld [vmem:[#allocation5 + $0xca0] sm:$0xff]
    %v1806 = vld [vmem:[#allocation5 + $0xca8] sm:$0xff]
    %v1807 = vld [vmem:[#allocation5 + $0xcb0] sm:$0xff]
    %v1808 = vld [vmem:[#allocation5 + $0xcb8] sm:$0xff]
    %v1809 = vld [vmem:[#allocation5 + $0xcc0] sm:$0xff]
    %v1810 = vld [vmem:[#allocation5 + $0xcc8] sm:$0xff]
    %v1811 = vld [vmem:[#allocation5 + $0xcd0] sm:$0xff]
    %v1812 = vld [vmem:[#allocation5 + $0xcd8] sm:$0xff]
    %v1813 = vld [vmem:[#allocation5 + $0xce0] sm:$0xff]
    %v1814 = vld [vmem:[#allocation5 + $0xce8] sm:$0xff]
    %v1815 = vld [vmem:[#allocation5 + $0xcf0] sm:$0xff]
    %v1816 = vld [vmem:[#allocation5 + $0xcf8] sm:$0xff]
    %v1817 = vld [vmem:[#allocation5 + $0xd00] sm:$0xff]
    %v1818 = vld [vmem:[#allocation5 + $0xd08] sm:$0xff]
    %v1819 = vld [vmem:[#allocation5 + $0xd10] sm:$0xff]
    %v1820 = vld [vmem:[#allocation5 + $0xd18] sm:$0xff]
    %v1821 = vld [vmem:[#allocation5 + $0xd20] sm:$0xff]
    %v1822 = vld [vmem:[#allocation5 + $0xd28] sm:$0xff]
    %v1823 = vld [vmem:[#allocation5 + $0xd30] sm:$0xff]
    %v1824 = vld [vmem:[#allocation5 + $0xd38] sm:$0xff]
    %v1825 = vld [vmem:[#allocation5 + $0xd40] sm:$0xff]
    %v1826 = vld [vmem:[#allocation5 + $0xd48] sm:$0xff]
    %v1827 = vld [vmem:[#allocation5 + $0xd50] sm:$0xff]
    %v1828 = vld [vmem:[#allocation5 + $0xd58] sm:$0xff]
    %v1829 = vld [vmem:[#allocation5 + $0xd60] sm:$0xff]
    %v1830 = vld [vmem:[#allocation5 + $0xd68] sm:$0xff]
    %v1831 = vld [vmem:[#allocation5 + $0xd70] sm:$0xff]
    %v1832 = vld [vmem:[#allocation5 + $0xd78] sm:$0xff]
    %v1833 = vld [vmem:[#allocation5 + $0xd80] sm:$0xff]
    %v1834 = vld [vmem:[#allocation5 + $0xd88] sm:$0xff]
    %v1835 = vld [vmem:[#allocation5 + $0xd90] sm:$0xff]
    %v1836 = vld [vmem:[#allocation5 + $0xd98] sm:$0xff]
    %v1837 = vld [vmem:[#allocation5 + $0xda0] sm:$0xff]
    %v1838 = vld [vmem:[#allocation5 + $0xda8] sm:$0xff]
    %v1839 = vld [vmem:[#allocation5 + $0xdb0] sm:$0xff]
    %v1840 = vld [vmem:[#allocation5 + $0xdb8] sm:$0xff]
    %v1841 = vld [vmem:[#allocation5 + $0xdc0] sm:$0xff]
    %v1842 = vld [vmem:[#allocation5 + $0xdc8] sm:$0xff]
    %v1843 = vld [vmem:[#allocation5 + $0xdd0] sm:$0xff]
    %v1844 = vld [vmem:[#allocation5 + $0xdd8] sm:$0xff]
    %v1845 = vld [vmem:[#allocation5 + $0xde0] sm:$0xff]
    %v1846 = vld [vmem:[#allocation5 + $0xde8] sm:$0xff]
    %v1847 = vld [vmem:[#allocation5 + $0xdf0] sm:$0xff]
    %v1848 = vld [vmem:[#allocation5 + $0xdf8] sm:$0xff]
    %v1849 = vld [vmem:[#allocation5 + $0xe00] sm:$0xff]
    %v1850 = vld [vmem:[#allocation5 + $0xe08] sm:$0xff]
    %v1851 = vld [vmem:[#allocation5 + $0xe10] sm:$0xff]
    %v1852 = vld [vmem:[#allocation5 + $0xe18] sm:$0xff]
    %v1853 = vld [vmem:[#allocation5 + $0xe20] sm:$0xff]
    %v1854 = vld [vmem:[#allocation5 + $0xe28] sm:$0xff]
    %v1855 = vld [vmem:[#allocation5 + $0xe30] sm:$0xff]
    %v1856 = vld [vmem:[#allocation5 + $0xe38] sm:$0xff]
    %v1857 = vld [vmem:[#allocation5 + $0xe40] sm:$0xff]
    %v1858 = vld [vmem:[#allocation5 + $0xe48] sm:$0xff]
    %v1859 = vld [vmem:[#allocation5 + $0xe50] sm:$0xff]
    %v1860 = vld [vmem:[#allocation5 + $0xe58] sm:$0xff]
    %v1861 = vld [vmem:[#allocation5 + $0xe60] sm:$0xff]
    %v1862 = vld [vmem:[#allocation5 + $0xe68] sm:$0xff]
    %v1863 = vld [vmem:[#allocation5 + $0xe70] sm:$0xff]
    %v1864 = vld [vmem:[#allocation5 + $0xe78] sm:$0xff]
    %v1865 = vld [vmem:[#allocation5 + $0xe80] sm:$0xff]
    %v1866 = vld [vmem:[#allocation5 + $0xe88] sm:$0xff]
    %v1867 = vld [vmem:[#allocation5 + $0xe90] sm:$0xff]
    %v1868 = vld [vmem:[#allocation5 + $0xe98] sm:$0xff]
    %v1869 = vld [vmem:[#allocation5 + $0xea0] sm:$0xff]
    %v1870 = vld [vmem:[#allocation5 + $0xea8] sm:$0xff]
    %v1871 = vld [vmem:[#allocation5 + $0xeb0] sm:$0xff]
    %v1872 = vld [vmem:[#allocation5 + $0xeb8] sm:$0xff]
    %v1873 = vld [vmem:[#allocation5 + $0xec0] sm:$0xff]
    %v1874 = vld [vmem:[#allocation5 + $0xec8] sm:$0xff]
    %v1875 = vld [vmem:[#allocation5 + $0xed0] sm:$0xff]
    %v1876 = vld [vmem:[#allocation5 + $0xed8] sm:$0xff]
    %v1877 = vld [vmem:[#allocation5 + $0xee0] sm:$0xff]
    %v1878 = vld [vmem:[#allocation5 + $0xee8] sm:$0xff]
    %v1879 = vld [vmem:[#allocation5 + $0xef0] sm:$0xff]
    %v1880 = vld [vmem:[#allocation5 + $0xef8] sm:$0xff]
    %v1881 = vld [vmem:[#allocation5 + $0xf00] sm:$0xff]
    %v1882 = vld [vmem:[#allocation5 + $0xf08] sm:$0xff]
    %v1883 = vld [vmem:[#allocation5 + $0xf10] sm:$0xff]
    %v1884 = vld [vmem:[#allocation5 + $0xf18] sm:$0xff]
    %v1885 = vld [vmem:[#allocation5 + $0xf20] sm:$0xff]
    %v1886 = vld [vmem:[#allocation5 + $0xf28] sm:$0xff]
    %v1887 = vld [vmem:[#allocation5 + $0xf30] sm:$0xff]
    %v1888 = vld [vmem:[#allocation5 + $0xf38] sm:$0xff]
    %v1889 = vld [vmem:[#allocation5 + $0xf40] sm:$0xff]
    %v1890 = vld [vmem:[#allocation5 + $0xf48] sm:$0xff]
    %v1891 = vld [vmem:[#allocation5 + $0xf50] sm:$0xff]
    %v1892 = vld [vmem:[#allocation5 + $0xf58] sm:$0xff]
    %v1893 = vld [vmem:[#allocation5 + $0xf60] sm:$0xff]
    %v1894 = vld [vmem:[#allocation5 + $0xf68] sm:$0xff]
    %v1895 = vld [vmem:[#allocation5 + $0xf70] sm:$0xff]
    %v1896 = vld [vmem:[#allocation5 + $0xf78] sm:$0xff]
    %v1897 = vld [vmem:[#allocation5 + $0xf80] sm:$0xff]
    %v1898 = vld [vmem:[#allocation5 + $0xf88] sm:$0xff]
    %v1899 = vld [vmem:[#allocation5 + $0xf90] sm:$0xff]
    %v1900 = vld [vmem:[#allocation5 + $0xf98] sm:$0xff]
    %v1901 = vld [vmem:[#allocation5 + $0xfa0] sm:$0xff]
    %v1902 = vld [vmem:[#allocation5 + $0xfa8] sm:$0xff]
    %v1903 = vld [vmem:[#allocation5 + $0xfb0] sm:$0xff]
    %v1904 = vld [vmem:[#allocation5 + $0xfb8] sm:$0xff]
    %v1905 = vld [vmem:[#allocation5 + $0xfc0] sm:$0xff]
    %v1906 = vld [vmem:[#allocation5 + $0xfc8] sm:$0xff]
    %v1907 = vld [vmem:[#allocation5 + $0xfd0] sm:$0xff]
    %v1908 = vld [vmem:[#allocation5 + $0xfd8] sm:$0xff]
    %v1909 = vld [vmem:[#allocation5 + $0xfe0] sm:$0xff]
    %v1910 = vld [vmem:[#allocation5 + $0xfe8] sm:$0xff]
    %v1911 = vld [vmem:[#allocation5 + $0xff0] sm:$0xff]
    %v1912 = vld [vmem:[#allocation5 + $0xff8] sm:$0xff]
    %v1913 = vld [vmem:[#allocation2] sm:$0x3]
    %v1914 = vld [vmem:[#allocation7] sm:$0x77]
    %v1915 = vld [vmem:[#allocation7 + $0x8] sm:$0x77]
    %1918 = vst [vmem:[#allocation1] ss:$2 sm:$0xff] %v1914
    %s1919 = scalar_lea.vmem [#allocation1], 16
    %1920 = vst [vmem:[%s1919] ss:$2 sm:$0xff] %v1915
    %v1921 = vld.sshfl [vmem:[#allocation1] sm:$0xff pattern:$0x75316420]
    %v1922 = vld.sshfl [vmem:[#allocation1 + $0x8] sm:$0xff pattern:$0x75316420]
    %v1923 = vld.sshfl [vmem:[#allocation1 + $0x10] sm:$0xff pattern:$0x75316420]
    %v1924 = vld.sshfl [vmem:[#allocation1 + $0x18] sm:$0xff pattern:$0x75316420]
    %vm1925 = vcmask 23552
    %v1927 = vsel %vm1925, %v1913, 0
    %vm1929 = vcmask 1042432
    %v1930 = vsel %vm1929, %v1921, 0
    %v1932 = vsel %vm1929, %v1922, 0
    %v1934 = vsel %vm1929, %v1923, 0
    %v1936 = vsel %vm1929, %v1924, 0
    %1938 = vmatpush.msra.mxu0 0.0
    %1939 = vmatpush.msra.mxu0 0.0
    %1940 = vmatpush.msra.mxu0 0.0
    %1941 = vmatpush.msra.mxu0 0.0
    %1942 = vmatpush.msra.mxu0 0.0
    %1943 = vmatpush.msra.mxu0 0.0
    %1944 = vmatpush.msra.mxu0 0.0
    %1945 = vmatpush.msra.mxu0 0.0
    %1946 = vmatpush.msra.mxu0 0.0
    %1947 = vmatpush.msra.mxu0 0.0
    %1948 = vmatpush.msra.mxu0 0.0
    %1949 = vmatpush.msra.mxu0 0.0
    %1950 = vmatpush.msra.mxu0 0.0
    %1951 = vmatpush.msra.mxu0 0.0
    %1952 = vmatpush.msra.mxu0 0.0
    %1953 = vmatpush.msra.mxu0 %v1930
    %1954 = vmatmul.f32.gmra.mxu0 %v1927
    %v1955 = vpop.f32.mrf.mxu0
    %v1956 = vadd.f32 0.0, %v1955
    %1957 = vdwg.mxu0
    %1958 = vmatpush.msra.mxu0 0.0
    %1959 = vmatpush.msra.mxu0 0.0
    %1960 = vmatpush.msra.mxu0 0.0
    %1961 = vmatpush.msra.mxu0 0.0
    %1962 = vmatpush.msra.mxu0 0.0
    %1963 = vmatpush.msra.mxu0 0.0
    %1964 = vmatpush.msra.mxu0 0.0
    %1965 = vmatpush.msra.mxu0 0.0
    %1966 = vmatpush.msra.mxu0 0.0
    %1967 = vmatpush.msra.mxu0 0.0
    %1968 = vmatpush.msra.mxu0 0.0
    %1969 = vmatpush.msra.mxu0 0.0
    %1970 = vmatpush.msra.mxu0 0.0
    %1971 = vmatpush.msra.mxu0 0.0
    %1972 = vmatpush.msra.mxu0 0.0
    %1973 = vmatpush.msra.mxu0 %v1932
    %1974 = vmatmul.f32.gmra.mxu0 %v1927
    %v1975 = vpop.f32.mrf.mxu0
    %v1976 = vadd.f32 0.0, %v1975
    %1977 = vdwg.mxu0
    %1978 = vmatpush.msra.mxu0 0.0
    %1979 = vmatpush.msra.mxu0 0.0
    %1980 = vmatpush.msra.mxu0 0.0
    %1981 = vmatpush.msra.mxu0 0.0
    %1982 = vmatpush.msra.mxu0 0.0
    %1983 = vmatpush.msra.mxu0 0.0
    %1984 = vmatpush.msra.mxu0 0.0
    %1985 = vmatpush.msra.mxu0 0.0
    %1986 = vmatpush.msra.mxu0 0.0
    %1987 = vmatpush.msra.mxu0 0.0
    %1988 = vmatpush.msra.mxu0 0.0
    %1989 = vmatpush.msra.mxu0 0.0
    %1990 = vmatpush.msra.mxu0 0.0
    %1991 = vmatpush.msra.mxu0 0.0
    %1992 = vmatpush.msra.mxu0 0.0
    %1993 = vmatpush.msra.mxu0 %v1934
    %1994 = vmatmul.f32.gmra.mxu0 %v1927
    %v1995 = vpop.f32.mrf.mxu0
    %v1996 = vadd.f32 0.0, %v1995
    %1997 = vdwg.mxu0
    %1998 = vmatpush.msra.mxu0 0.0
    %1999 = vmatpush.msra.mxu0 0.0
    %2000 = vmatpush.msra.mxu0 0.0
    %2001 = vmatpush.msra.mxu0 0.0
    %2002 = vmatpush.msra.mxu0 0.0
    %2003 = vmatpush.msra.mxu0 0.0
    %2004 = vmatpush.msra.mxu0 0.0
    %2005 = vmatpush.msra.mxu0 0.0
    %2006 = vmatpush.msra.mxu0 0.0
    %2007 = vmatpush.msra.mxu0 0.0
    %2008 = vmatpush.msra.mxu0 0.0
    %2009 = vmatpush.msra.mxu0 0.0
    %2010 = vmatpush.msra.mxu0 0.0
    %2011 = vmatpush.msra.mxu0 0.0
    %2012 = vmatpush.msra.mxu0 0.0
    %2013 = vmatpush.msra.mxu0 %v1936
    %2014 = vmatmul.f32.gmra.mxu0 %v1927
    %v2015 = vpop.f32.mrf.mxu0
    %v2016 = vadd.f32 0.0, %v2015
    %2017 = vdwg.mxu0
    %v2274 = vlaneseq
    %v2275 = vand.u32 %v2274, 127
    %v2276 = vperm.slane %v1145, %v2275
    %v2277 = vadd.s32 %v2275, 4294967288
    %v2278 = vperm.slane %v1146, %v2277
    %vm2279 = vcmask 130112
    %v2280 = vsel %vm2279, %v2278, %v2276
    %v2281 = vadd.s32 %v2275, 4294967280
    %v2282 = vperm.slane %v1147, %v2281
    %vm2283 = vcmask 195712
    %v2284 = vsel %vm2283, %v2282, %v2280
    %v2285 = vadd.s32 %v2275, 4294967272
    %v2286 = vperm.slane %v1148, %v2285
    %vm2287 = vcmask 261312
    %v2288 = vsel %vm2287, %v2286, %v2284
    %v2289 = vadd.s32 %v2275, 4294967264
    %v2290 = vperm.slane %v1149, %v2289
    %vm2291 = vcmask 326912
    %v2292 = vsel %vm2291, %v2290, %v2288
    %v2293 = vadd.s32 %v2275, 4294967256
    %v2294 = vperm.slane %v1150, %v2293
    %vm2295 = vcmask 392512
    %v2296 = vsel %vm2295, %v2294, %v2292
    %v2297 = vadd.s32 %v2275, 4294967248
    %v2298 = vperm.slane %v1151, %v2297
    %vm2299 = vcmask 458112
    %v2300 = vsel %vm2299, %v2298, %v2296
    %v2301 = vadd.s32 %v2275, 4294967240
    %v2302 = vperm.slane %v1152, %v2301
    %vm2303 = vcmask 523712
    %v2304 = vsel %vm2303, %v2302, %v2300
    %v2305 = vadd.s32 %v2275, 4294967232
    %v2306 = vperm.slane %v1153, %v2305
    %vm2307 = vcmask 589312
    %v2308 = vsel %vm2307, %v2306, %v2304
    %v2309 = vadd.s32 %v2275, 4294967224
    %v2310 = vperm.slane %v1154, %v2309
    %vm2311 = vcmask 654912
    %v2312 = vsel %vm2311, %v2310, %v2308
    %v2313 = vadd.s32 %v2275, 4294967216
    %v2314 = vperm.slane %v1155, %v2313
    %vm2315 = vcmask 720512
    %v2316 = vsel %vm2315, %v2314, %v2312
    %v2317 = vadd.s32 %v2275, 4294967208
    %v2318 = vperm.slane %v1156, %v2317
    %vm2319 = vcmask 786112
    %v2320 = vsel %vm2319, %v2318, %v2316
    %v2321 = vadd.s32 %v2275, 4294967200
    %v2322 = vperm.slane %v1157, %v2321
    %vm2323 = vcmask 851712
    %v2324 = vsel %vm2323, %v2322, %v2320
    %v2325 = vadd.s32 %v2275, 4294967192
    %v2326 = vperm.slane %v1158, %v2325
    %vm2327 = vcmask 917312
    %v2328 = vsel %vm2327, %v2326, %v2324
    %v2329 = vadd.s32 %v2275, 4294967184
    %v2330 = vperm.slane %v1159, %v2329
    %vm2331 = vcmask 982912
    %v2332 = vsel %vm2331, %v2330, %v2328
    %v2333 = vadd.s32 %v2275, 4294967176
    %v2334 = vperm.slane %v1160, %v2333
    %vm2335 = vcmask 1048512
    %v2336 = vsel %vm2335, %v2334, %v2332
    %v2337 = vperm.slane %v1161, %v2275
    %v2338 = vperm.slane %v1162, %v2277
    %v2339 = vsel %vm2279, %v2338, %v2337
    %v2340 = vperm.slane %v1163, %v2281
    %v2341 = vsel %vm2283, %v2340, %v2339
    %v2342 = vperm.slane %v1164, %v2285
    %v2343 = vsel %vm2287, %v2342, %v2341
    %v2344 = vperm.slane %v1165, %v2289
    %v2345 = vsel %vm2291, %v2344, %v2343
    %v2346 = vperm.slane %v1166, %v2293
    %v2347 = vsel %vm2295, %v2346, %v2345
    %v2348 = vperm.slane %v1167, %v2297
    %v2349 = vsel %vm2299, %v2348, %v2347
    %v2350 = vperm.slane %v1168, %v2301
    %v2351 = vsel %vm2303, %v2350, %v2349
    %v2352 = vperm.slane %v1169, %v2305
    %v2353 = vsel %vm2307, %v2352, %v2351
    %v2354 = vperm.slane %v1170, %v2309
    %v2355 = vsel %vm2311, %v2354, %v2353
    %v2356 = vperm.slane %v1171, %v2313
    %v2357 = vsel %vm2315, %v2356, %v2355
    %v2358 = vperm.slane %v1172, %v2317
    %v2359 = vsel %vm2319, %v2358, %v2357
    %v2360 = vperm.slane %v1173, %v2321
    %v2361 = vsel %vm2323, %v2360, %v2359
    %v2362 = vperm.slane %v1174, %v2325
    %v2363 = vsel %vm2327, %v2362, %v2361
    %v2364 = vperm.slane %v1175, %v2329
    %v2365 = vsel %vm2331, %v2364, %v2363
    %v2366 = vperm.slane %v1176, %v2333
    %v2367 = vsel %vm2335, %v2366, %v2365
    %v2368 = vperm.slane %v1177, %v2275
    %v2369 = vperm.slane %v1178, %v2277
    %v2370 = vsel %vm2279, %v2369, %v2368
    %v2371 = vperm.slane %v1179, %v2281
    %v2372 = vsel %vm2283, %v2371, %v2370
    %v2373 = vperm.slane %v1180, %v2285
    %v2374 = vsel %vm2287, %v2373, %v2372
    %v2375 = vperm.slane %v1181, %v2289
    %v2376 = vsel %vm2291, %v2375, %v2374
    %v2377 = vperm.slane %v1182, %v2293
    %v2378 = vsel %vm2295, %v2377, %v2376
    %v2379 = vperm.slane %v1183, %v2297
    %v2380 = vsel %vm2299, %v2379, %v2378
    %v2381 = vperm.slane %v1184, %v2301
    %v2382 = vsel %vm2303, %v2381, %v2380
    %v2383 = vperm.slane %v1185, %v2305
    %v2384 = vsel %vm2307, %v2383, %v2382
    %v2385 = vperm.slane %v1186, %v2309
    %v2386 = vsel %vm2311, %v2385, %v2384
    %v2387 = vperm.slane %v1187, %v2313
    %v2388 = vsel %vm2315, %v2387, %v2386
    %v2389 = vperm.slane %v1188, %v2317
    %v2390 = vsel %vm2319, %v2389, %v2388
    %v2391 = vperm.slane %v1189, %v2321
    %v2392 = vsel %vm2323, %v2391, %v2390
    %v2393 = vperm.slane %v1190, %v2325
    %v2394 = vsel %vm2327, %v2393, %v2392
    %v2395 = vperm.slane %v1191, %v2329
    %v2396 = vsel %vm2331, %v2395, %v2394
    %v2397 = vperm.slane %v1192, %v2333
    %v2398 = vsel %vm2335, %v2397, %v2396
    %v2399 = vperm.slane %v1193, %v2275
    %v2400 = vperm.slane %v1194, %v2277
    %v2401 = vsel %vm2279, %v2400, %v2399
    %v2402 = vperm.slane %v1195, %v2281
    %v2403 = vsel %vm2283, %v2402, %v2401
    %v2404 = vperm.slane %v1196, %v2285
    %v2405 = vsel %vm2287, %v2404, %v2403
    %v2406 = vperm.slane %v1197, %v2289
    %v2407 = vsel %vm2291, %v2406, %v2405
    %v2408 = vperm.slane %v1198, %v2293
    %v2409 = vsel %vm2295, %v2408, %v2407
    %v2410 = vperm.slane %v1199, %v2297
    %v2411 = vsel %vm2299, %v2410, %v2409
    %v2412 = vperm.slane %v1200, %v2301
    %v2413 = vsel %vm2303, %v2412, %v2411
    %v2414 = vperm.slane %v1201, %v2305
    %v2415 = vsel %vm2307, %v2414, %v2413
    %v2416 = vperm.slane %v1202, %v2309
    %v2417 = vsel %vm2311, %v2416, %v2415
    %v2418 = vperm.slane %v1203, %v2313
    %v2419 = vsel %vm2315, %v2418, %v2417
    %v2420 = vperm.slane %v1204, %v2317
    %v2421 = vsel %vm2319, %v2420, %v2419
    %v2422 = vperm.slane %v1205, %v2321
    %v2423 = vsel %vm2323, %v2422, %v2421
    %v2424 = vperm.slane %v1206, %v2325
    %v2425 = vsel %vm2327, %v2424, %v2423
    %v2426 = vperm.slane %v1207, %v2329
    %v2427 = vsel %vm2331, %v2426, %v2425
    %v2428 = vperm.slane %v1208, %v2333
    %v2429 = vsel %vm2335, %v2428, %v2427
    %v2430 = vperm.slane %v1209, %v2275
    %v2431 = vperm.slane %v1210, %v2277
    %v2432 = vsel %vm2279, %v2431, %v2430
    %v2433 = vperm.slane %v1211, %v2281
    %v2434 = vsel %vm2283, %v2433, %v2432
    %v2435 = vperm.slane %v1212, %v2285
    %v2436 = vsel %vm2287, %v2435, %v2434
    %v2437 = vperm.slane %v1213, %v2289
    %v2438 = vsel %vm2291, %v2437, %v2436
    %v2439 = vperm.slane %v1214, %v2293
    %v2440 = vsel %vm2295, %v2439, %v2438
    %v2441 = vperm.slane %v1215, %v2297
    %v2442 = vsel %vm2299, %v2441, %v2440
    %v2443 = vperm.slane %v1216, %v2301
    %v2444 = vsel %vm2303, %v2443, %v2442
    %v2445 = vperm.slane %v1217, %v2305
    %v2446 = vsel %vm2307, %v2445, %v2444
    %v2447 = vperm.slane %v1218, %v2309
    %v2448 = vsel %vm2311, %v2447, %v2446
    %v2449 = vperm.slane %v1219, %v2313
    %v2450 = vsel %vm2315, %v2449, %v2448
    %v2451 = vperm.slane %v1220, %v2317
    %v2452 = vsel %vm2319, %v2451, %v2450
    %v2453 = vperm.slane %v1221, %v2321
    %v2454 = vsel %vm2323, %v2453, %v2452
    %v2455 = vperm.slane %v1222, %v2325
    %v2456 = vsel %vm2327, %v2455, %v2454
    %v2457 = vperm.slane %v1223, %v2329
    %v2458 = vsel %vm2331, %v2457, %v2456
    %v2459 = vperm.slane %v1224, %v2333
    %v2460 = vsel %vm2335, %v2459, %v2458
    %v2461 = vperm.slane %v1225, %v2275
    %v2462 = vperm.slane %v1226, %v2277
    %v2463 = vsel %vm2279, %v2462, %v2461
    %v2464 = vperm.slane %v1227, %v2281
    %v2465 = vsel %vm2283, %v2464, %v2463
    %v2466 = vperm.slane %v1228, %v2285
    %v2467 = vsel %vm2287, %v2466, %v2465
    %v2468 = vperm.slane %v1229, %v2289
    %v2469 = vsel %vm2291, %v2468, %v2467
    %v2470 = vperm.slane %v1230, %v2293
    %v2471 = vsel %vm2295, %v2470, %v2469
    %v2472 = vperm.slane %v1231, %v2297
    %v2473 = vsel %vm2299, %v2472, %v2471
    %v2474 = vperm.slane %v1232, %v2301
    %v2475 = vsel %vm2303, %v2474, %v2473
    %v2476 = vperm.slane %v1233, %v2305
    %v2477 = vsel %vm2307, %v2476, %v2475
    %v2478 = vperm.slane %v1234, %v2309
    %v2479 = vsel %vm2311, %v2478, %v2477
    %v2480 = vperm.slane %v1235, %v2313
    %v2481 = vsel %vm2315, %v2480, %v2479
    %v2482 = vperm.slane %v1236, %v2317
    %v2483 = vsel %vm2319, %v2482, %v2481
    %v2484 = vperm.slane %v1237, %v2321
    %v2485 = vsel %vm2323, %v2484, %v2483
    %v2486 = vperm.slane %v1238, %v2325
    %v2487 = vsel %vm2327, %v2486, %v2485
    %v2488 = vperm.slane %v1239, %v2329
    %v2489 = vsel %vm2331, %v2488, %v2487
    %v2490 = vperm.slane %v1240, %v2333
    %v2491 = vsel %vm2335, %v2490, %v2489
    %v2492 = vperm.slane %v1241, %v2275
    %v2493 = vperm.slane %v1242, %v2277
    %v2494 = vsel %vm2279, %v2493, %v2492
    %v2495 = vperm.slane %v1243, %v2281
    %v2496 = vsel %vm2283, %v2495, %v2494
    %v2497 = vperm.slane %v1244, %v2285
    %v2498 = vsel %vm2287, %v2497, %v2496
    %v2499 = vperm.slane %v1245, %v2289
    %v2500 = vsel %vm2291, %v2499, %v2498
    %v2501 = vperm.slane %v1246, %v2293
    %v2502 = vsel %vm2295, %v2501, %v2500
    %v2503 = vperm.slane %v1247, %v2297
    %v2504 = vsel %vm2299, %v2503, %v2502
    %v2505 = vperm.slane %v1248, %v2301
    %v2506 = vsel %vm2303, %v2505, %v2504
    %v2507 = vperm.slane %v1249, %v2305
    %v2508 = vsel %vm2307, %v2507, %v2506
    %v2509 = vperm.slane %v1250, %v2309
    %v2510 = vsel %vm2311, %v2509, %v2508
    %v2511 = vperm.slane %v1251, %v2313
    %v2512 = vsel %vm2315, %v2511, %v2510
    %v2513 = vperm.slane %v1252, %v2317
    %v2514 = vsel %vm2319, %v2513, %v2512
    %v2515 = vperm.slane %v1253, %v2321
    %v2516 = vsel %vm2323, %v2515, %v2514
    %v2517 = vperm.slane %v1254, %v2325
    %v2518 = vsel %vm2327, %v2517, %v2516
    %v2519 = vperm.slane %v1255, %v2329
    %v2520 = vsel %vm2331, %v2519, %v2518
    %v2521 = vperm.slane %v1256, %v2333
    %v2522 = vsel %vm2335, %v2521, %v2520
    %v2523 = vperm.slane %v1257, %v2275
    %v2524 = vperm.slane %v1258, %v2277
    %v2525 = vsel %vm2279, %v2524, %v2523
    %v2526 = vperm.slane %v1259, %v2281
    %v2527 = vsel %vm2283, %v2526, %v2525
    %v2528 = vperm.slane %v1260, %v2285
    %v2529 = vsel %vm2287, %v2528, %v2527
    %v2530 = vperm.slane %v1261, %v2289
    %v2531 = vsel %vm2291, %v2530, %v2529
    %v2532 = vperm.slane %v1262, %v2293
    %v2533 = vsel %vm2295, %v2532, %v2531
    %v2534 = vperm.slane %v1263, %v2297
    %v2535 = vsel %vm2299, %v2534, %v2533
    %v2536 = vperm.slane %v1264, %v2301
    %v2537 = vsel %vm2303, %v2536, %v2535
    %v2538 = vperm.slane %v1265, %v2305
    %v2539 = vsel %vm2307, %v2538, %v2537
    %v2540 = vperm.slane %v1266, %v2309
    %v2541 = vsel %vm2311, %v2540, %v2539
    %v2542 = vperm.slane %v1267, %v2313
    %v2543 = vsel %vm2315, %v2542, %v2541
    %v2544 = vperm.slane %v1268, %v2317
    %v2545 = vsel %vm2319, %v2544, %v2543
    %v2546 = vperm.slane %v1269, %v2321
    %v2547 = vsel %vm2323, %v2546, %v2545
    %v2548 = vperm.slane %v1270, %v2325
    %v2549 = vsel %vm2327, %v2548, %v2547
    %v2550 = vperm.slane %v1271, %v2329
    %v2551 = vsel %vm2331, %v2550, %v2549
    %v2552 = vperm.slane %v1272, %v2333
    %v2553 = vsel %vm2335, %v2552, %v2551
    %v2554 = vperm.slane %v1273, %v2275
    %v2555 = vperm.slane %v1274, %v2277
    %v2556 = vsel %vm2279, %v2555, %v2554
    %v2557 = vperm.slane %v1275, %v2281
    %v2558 = vsel %vm2283, %v2557, %v2556
    %v2559 = vperm.slane %v1276, %v2285
    %v2560 = vsel %vm2287, %v2559, %v2558
    %v2561 = vperm.slane %v1277, %v2289
    %v2562 = vsel %vm2291, %v2561, %v2560
    %v2563 = vperm.slane %v1278, %v2293
    %v2564 = vsel %vm2295, %v2563, %v2562
    %v2565 = vperm.slane %v1279, %v2297
    %v2566 = vsel %vm2299, %v2565, %v2564
    %v2567 = vperm.slane %v1280, %v2301
    %v2568 = vsel %vm2303, %v2567, %v2566
    %v2569 = vperm.slane %v1281, %v2305
    %v2570 = vsel %vm2307, %v2569, %v2568
    %v2571 = vperm.slane %v1282, %v2309
    %v2572 = vsel %vm2311, %v2571, %v2570
    %v2573 = vperm.slane %v1283, %v2313
    %v2574 = vsel %vm2315, %v2573, %v2572
    %v2575 = vperm.slane %v1284, %v2317
    %v2576 = vsel %vm2319, %v2575, %v2574
    %v2577 = vperm.slane %v1285, %v2321
    %v2578 = vsel %vm2323, %v2577, %v2576
    %v2579 = vperm.slane %v1286, %v2325
    %v2580 = vsel %vm2327, %v2579, %v2578
    %v2581 = vperm.slane %v1287, %v2329
    %v2582 = vsel %vm2331, %v2581, %v2580
    %v2583 = vperm.slane %v1288, %v2333
    %v2584 = vsel %vm2335, %v2583, %v2582
    %v2585 = vperm.slane %v1289, %v2275
    %v2586 = vperm.slane %v1290, %v2277
    %v2587 = vsel %vm2279, %v2586, %v2585
    %v2588 = vperm.slane %v1291, %v2281
    %v2589 = vsel %vm2283, %v2588, %v2587
    %v2590 = vperm.slane %v1292, %v2285
    %v2591 = vsel %vm2287, %v2590, %v2589
    %v2592 = vperm.slane %v1293, %v2289
    %v2593 = vsel %vm2291, %v2592, %v2591
    %v2594 = vperm.slane %v1294, %v2293
    %v2595 = vsel %vm2295, %v2594, %v2593
    %v2596 = vperm.slane %v1295, %v2297
    %v2597 = vsel %vm2299, %v2596, %v2595
    %v2598 = vperm.slane %v1296, %v2301
    %v2599 = vsel %vm2303, %v2598, %v2597
    %v2600 = vperm.slane %v1297, %v2305
    %v2601 = vsel %vm2307, %v2600, %v2599
    %v2602 = vperm.slane %v1298, %v2309
    %v2603 = vsel %vm2311, %v2602, %v2601
    %v2604 = vperm.slane %v1299, %v2313
    %v2605 = vsel %vm2315, %v2604, %v2603
    %v2606 = vperm.slane %v1300, %v2317
    %v2607 = vsel %vm2319, %v2606, %v2605
    %v2608 = vperm.slane %v1301, %v2321
    %v2609 = vsel %vm2323, %v2608, %v2607
    %v2610 = vperm.slane %v1302, %v2325
    %v2611 = vsel %vm2327, %v2610, %v2609
    %v2612 = vperm.slane %v1303, %v2329
    %v2613 = vsel %vm2331, %v2612, %v2611
    %v2614 = vperm.slane %v1304, %v2333
    %v2615 = vsel %vm2335, %v2614, %v2613
    %v2616 = vperm.slane %v1305, %v2275
    %v2617 = vperm.slane %v1306, %v2277
    %v2618 = vsel %vm2279, %v2617, %v2616
    %v2619 = vperm.slane %v1307, %v2281
    %v2620 = vsel %vm2283, %v2619, %v2618
    %v2621 = vperm.slane %v1308, %v2285
    %v2622 = vsel %vm2287, %v2621, %v2620
    %v2623 = vperm.slane %v1309, %v2289
    %v2624 = vsel %vm2291, %v2623, %v2622
    %v2625 = vperm.slane %v1310, %v2293
    %v2626 = vsel %vm2295, %v2625, %v2624
    %v2627 = vperm.slane %v1311, %v2297
    %v2628 = vsel %vm2299, %v2627, %v2626
    %v2629 = vperm.slane %v1312, %v2301
    %v2630 = vsel %vm2303, %v2629, %v2628
    %v2631 = vperm.slane %v1313, %v2305
    %v2632 = vsel %vm2307, %v2631, %v2630
    %v2633 = vperm.slane %v1314, %v2309
    %v2634 = vsel %vm2311, %v2633, %v2632
    %v2635 = vperm.slane %v1315, %v2313
    %v2636 = vsel %vm2315, %v2635, %v2634
    %v2637 = vperm.slane %v1316, %v2317
    %v2638 = vsel %vm2319, %v2637, %v2636
    %v2639 = vperm.slane %v1317, %v2321
    %v2640 = vsel %vm2323, %v2639, %v2638
    %v2641 = vperm.slane %v1318, %v2325
    %v2642 = vsel %vm2327, %v2641, %v2640
    %v2643 = vperm.slane %v1319, %v2329
    %v2644 = vsel %vm2331, %v2643, %v2642
    %v2645 = vperm.slane %v1320, %v2333
    %v2646 = vsel %vm2335, %v2645, %v2644
    %v2647 = vperm.slane %v1321, %v2275
    %v2648 = vperm.slane %v1322, %v2277
    %v2649 = vsel %vm2279, %v2648, %v2647
    %v2650 = vperm.slane %v1323, %v2281
    %v2651 = vsel %vm2283, %v2650, %v2649
    %v2652 = vperm.slane %v1324, %v2285
    %v2653 = vsel %vm2287, %v2652, %v2651
    %v2654 = vperm.slane %v1325, %v2289
    %v2655 = vsel %vm2291, %v2654, %v2653
    %v2656 = vperm.slane %v1326, %v2293
    %v2657 = vsel %vm2295, %v2656, %v2655
    %v2658 = vperm.slane %v1327, %v2297
    %v2659 = vsel %vm2299, %v2658, %v2657
    %v2660 = vperm.slane %v1328, %v2301
    %v2661 = vsel %vm2303, %v2660, %v2659
    %v2662 = vperm.slane %v1329, %v2305
    %v2663 = vsel %vm2307, %v2662, %v2661
    %v2664 = vperm.slane %v1330, %v2309
    %v2665 = vsel %vm2311, %v2664, %v2663
    %v2666 = vperm.slane %v1331, %v2313
    %v2667 = vsel %vm2315, %v2666, %v2665
    %v2668 = vperm.slane %v1332, %v2317
    %v2669 = vsel %vm2319, %v2668, %v2667
    %v2670 = vperm.slane %v1333, %v2321
    %v2671 = vsel %vm2323, %v2670, %v2669
    %v2672 = vperm.slane %v1334, %v2325
    %v2673 = vsel %vm2327, %v2672, %v2671
    %v2674 = vperm.slane %v1335, %v2329
    %v2675 = vsel %vm2331, %v2674, %v2673
    %v2676 = vperm.slane %v1336, %v2333
    %v2677 = vsel %vm2335, %v2676, %v2675
    %v2678 = vperm.slane %v1337, %v2275
    %v2679 = vperm.slane %v1338, %v2277
    %v2680 = vsel %vm2279, %v2679, %v2678
    %v2681 = vperm.slane %v1339, %v2281
    %v2682 = vsel %vm2283, %v2681, %v2680
    %v2683 = vperm.slane %v1340, %v2285
    %v2684 = vsel %vm2287, %v2683, %v2682
    %v2685 = vperm.slane %v1341, %v2289
    %v2686 = vsel %vm2291, %v2685, %v2684
    %v2687 = vperm.slane %v1342, %v2293
    %v2688 = vsel %vm2295, %v2687, %v2686
    %v2689 = vperm.slane %v1343, %v2297
    %v2690 = vsel %vm2299, %v2689, %v2688
    %v2691 = vperm.slane %v1344, %v2301
    %v2692 = vsel %vm2303, %v2691, %v2690
    %v2693 = vperm.slane %v1345, %v2305
    %v2694 = vsel %vm2307, %v2693, %v2692
    %v2695 = vperm.slane %v1346, %v2309
    %v2696 = vsel %vm2311, %v2695, %v2694
    %v2697 = vperm.slane %v1347, %v2313
    %v2698 = vsel %vm2315, %v2697, %v2696
    %v2699 = vperm.slane %v1348, %v2317
    %v2700 = vsel %vm2319, %v2699, %v2698
    %v2701 = vperm.slane %v1349, %v2321
    %v2702 = vsel %vm2323, %v2701, %v2700
    %v2703 = vperm.slane %v1350, %v2325
    %v2704 = vsel %vm2327, %v2703, %v2702
    %v2705 = vperm.slane %v1351, %v2329
    %v2706 = vsel %vm2331, %v2705, %v2704
    %v2707 = vperm.slane %v1352, %v2333
    %v2708 = vsel %vm2335, %v2707, %v2706
    %v2709 = vperm.slane %v1353, %v2275
    %v2710 = vperm.slane %v1354, %v2277
    %v2711 = vsel %vm2279, %v2710, %v2709
    %v2712 = vperm.slane %v1355, %v2281
    %v2713 = vsel %vm2283, %v2712, %v2711
    %v2714 = vperm.slane %v1356, %v2285
    %v2715 = vsel %vm2287, %v2714, %v2713
    %v2716 = vperm.slane %v1357, %v2289
    %v2717 = vsel %vm2291, %v2716, %v2715
    %v2718 = vperm.slane %v1358, %v2293
    %v2719 = vsel %vm2295, %v2718, %v2717
    %v2720 = vperm.slane %v1359, %v2297
    %v2721 = vsel %vm2299, %v2720, %v2719
    %v2722 = vperm.slane %v1360, %v2301
    %v2723 = vsel %vm2303, %v2722, %v2721
    %v2724 = vperm.slane %v1361, %v2305
    %v2725 = vsel %vm2307, %v2724, %v2723
    %v2726 = vperm.slane %v1362, %v2309
    %v2727 = vsel %vm2311, %v2726, %v2725
    %v2728 = vperm.slane %v1363, %v2313
    %v2729 = vsel %vm2315, %v2728, %v2727
    %v2730 = vperm.slane %v1364, %v2317
    %v2731 = vsel %vm2319, %v2730, %v2729
    %v2732 = vperm.slane %v1365, %v2321
    %v2733 = vsel %vm2323, %v2732, %v2731
    %v2734 = vperm.slane %v1366, %v2325
    %v2735 = vsel %vm2327, %v2734, %v2733
    %v2736 = vperm.slane %v1367, %v2329
    %v2737 = vsel %vm2331, %v2736, %v2735
    %v2738 = vperm.slane %v1368, %v2333
    %v2739 = vsel %vm2335, %v2738, %v2737
    %v2740 = vperm.slane %v1369, %v2275
    %v2741 = vperm.slane %v1370, %v2277
    %v2742 = vsel %vm2279, %v2741, %v2740
    %v2743 = vperm.slane %v1371, %v2281
    %v2744 = vsel %vm2283, %v2743, %v2742
    %v2745 = vperm.slane %v1372, %v2285
    %v2746 = vsel %vm2287, %v2745, %v2744
    %v2747 = vperm.slane %v1373, %v2289
    %v2748 = vsel %vm2291, %v2747, %v2746
    %v2749 = vperm.slane %v1374, %v2293
    %v2750 = vsel %vm2295, %v2749, %v2748
    %v2751 = vperm.slane %v1375, %v2297
    %v2752 = vsel %vm2299, %v2751, %v2750
    %v2753 = vperm.slane %v1376, %v2301
    %v2754 = vsel %vm2303, %v2753, %v2752
    %v2755 = vperm.slane %v1377, %v2305
    %v2756 = vsel %vm2307, %v2755, %v2754
    %v2757 = vperm.slane %v1378, %v2309
    %v2758 = vsel %vm2311, %v2757, %v2756
    %v2759 = vperm.slane %v1379, %v2313
    %v2760 = vsel %vm2315, %v2759, %v2758
    %v2761 = vperm.slane %v1380, %v2317
    %v2762 = vsel %vm2319, %v2761, %v2760
    %v2763 = vperm.slane %v1381, %v2321
    %v2764 = vsel %vm2323, %v2763, %v2762
    %v2765 = vperm.slane %v1382, %v2325
    %v2766 = vsel %vm2327, %v2765, %v2764
    %v2767 = vperm.slane %v1383, %v2329
    %v2768 = vsel %vm2331, %v2767, %v2766
    %v2769 = vperm.slane %v1384, %v2333
    %v2770 = vsel %vm2335, %v2769, %v2768
    %v2771 = vperm.slane %v1385, %v2275
    %v2772 = vperm.slane %v1386, %v2277
    %v2773 = vsel %vm2279, %v2772, %v2771
    %v2774 = vperm.slane %v1387, %v2281
    %v2775 = vsel %vm2283, %v2774, %v2773
    %v2776 = vperm.slane %v1388, %v2285
    %v2777 = vsel %vm2287, %v2776, %v2775
    %v2778 = vperm.slane %v1389, %v2289
    %v2779 = vsel %vm2291, %v2778, %v2777
    %v2780 = vperm.slane %v1390, %v2293
    %v2781 = vsel %vm2295, %v2780, %v2779
    %v2782 = vperm.slane %v1391, %v2297
    %v2783 = vsel %vm2299, %v2782, %v2781
    %v2784 = vperm.slane %v1392, %v2301
    %v2785 = vsel %vm2303, %v2784, %v2783
    %v2786 = vperm.slane %v1393, %v2305
    %v2787 = vsel %vm2307, %v2786, %v2785
    %v2788 = vperm.slane %v1394, %v2309
    %v2789 = vsel %vm2311, %v2788, %v2787
    %v2790 = vperm.slane %v1395, %v2313
    %v2791 = vsel %vm2315, %v2790, %v2789
    %v2792 = vperm.slane %v1396, %v2317
    %v2793 = vsel %vm2319, %v2792, %v2791
    %v2794 = vperm.slane %v1397, %v2321
    %v2795 = vsel %vm2323, %v2794, %v2793
    %v2796 = vperm.slane %v1398, %v2325
    %v2797 = vsel %vm2327, %v2796, %v2795
    %v2798 = vperm.slane %v1399, %v2329
    %v2799 = vsel %vm2331, %v2798, %v2797
    %v2800 = vperm.slane %v1400, %v2333
    %v2801 = vsel %vm2335, %v2800, %v2799
    %vm2802 = vcmask 1041409
    %v2803 = vsel %vm2802, %v2584, %v2336
    %v2804 = vsel %vm2802, %v2615, %v2367
    %v2805 = vsel %vm2802, %v2646, %v2398
    %v2806 = vsel %vm2802, %v2677, %v2429
    %v2807 = vsel %vm2802, %v2708, %v2460
    %v2808 = vsel %vm2802, %v2739, %v2491
    %v2809 = vsel %vm2802, %v2770, %v2522
    %v2810 = vsel %vm2802, %v2801, %v2553
    %2819 = vmatpush.msra.mxu0 %v1461
    %2820 = vmatpush.msra.mxu0 %v1457
    %2821 = vmatpush.msra.mxu0 %v1453
    %2822 = vmatpush.msra.mxu0 %v1449
    %2823 = vmatpush.msra.mxu0 %v1445
    %2824 = vmatpush.msra.mxu0 %v1441
    %2825 = vmatpush.msra.mxu0 %v1437
    %2826 = vmatpush.msra.mxu0 %v1433
    %2827 = vmatpush.msra.mxu0 %v1429
    %2828 = vmatpush.msra.mxu0 %v1425
    %2829 = vmatpush.msra.mxu0 %v1421
    %2830 = vmatpush.msra.mxu0 %v1417
    %2831 = vmatpush.msra.mxu0 %v1413
    %2832 = vmatpush.msra.mxu0 %v1409
    %2833 = vmatpush.msra.mxu0 %v1405
    %2834 = vmatpush.msra.mxu0 %v1401
    %2835 = vmatmul.f32.gmra.mxu0 %v2803
    %v2836 = vpop.f32.mrf.mxu0
    %v2837 = vadd.f32 %v1956, %v2836
    %2838 = vdwg.mxu0
    %2839 = vmatpush.msra.mxu0 %v1525
    %2840 = vmatpush.msra.mxu0 %v1521
    %2841 = vmatpush.msra.mxu0 %v1517
    %2842 = vmatpush.msra.mxu0 %v1513
    %2843 = vmatpush.msra.mxu0 %v1509
    %2844 = vmatpush.msra.mxu0 %v1505
    %2845 = vmatpush.msra.mxu0 %v1501
    %2846 = vmatpush.msra.mxu0 %v1497
    %2847 = vmatpush.msra.mxu0 %v1493
    %2848 = vmatpush.msra.mxu0 %v1489
    %2849 = vmatpush.msra.mxu0 %v1485
    %2850 = vmatpush.msra.mxu0 %v1481
    %2851 = vmatpush.msra.mxu0 %v1477
    %2852 = vmatpush.msra.mxu0 %v1473
    %2853 = vmatpush.msra.mxu0 %v1469
    %2854 = vmatpush.msra.mxu0 %v1465
    %2855 = vmatmul.f32.gmra.mxu0 %v2804
    %v2856 = vpop.f32.mrf.mxu0
    %v2857 = vadd.f32 %v2837, %v2856
    %2858 = vdwg.mxu0
    %2859 = vmatpush.msra.mxu0 %v1589
    %2860 = vmatpush.msra.mxu0 %v1585
    %2861 = vmatpush.msra.mxu0 %v1581
    %2862 = vmatpush.msra.mxu0 %v1577
    %2863 = vmatpush.msra.mxu0 %v1573
    %2864 = vmatpush.msra.mxu0 %v1569
    %2865 = vmatpush.msra.mxu0 %v1565
    %2866 = vmatpush.msra.mxu0 %v1561
    %2867 = vmatpush.msra.mxu0 %v1557
    %2868 = vmatpush.msra.mxu0 %v1553
    %2869 = vmatpush.msra.mxu0 %v1549
    %2870 = vmatpush.msra.mxu0 %v1545
    %2871 = vmatpush.msra.mxu0 %v1541
    %2872 = vmatpush.msra.mxu0 %v1537
    %2873 = vmatpush.msra.mxu0 %v1533
    %2874 = vmatpush.msra.mxu0 %v1529
    %2875 = vmatmul.f32.gmra.mxu0 %v2805
    %v2876 = vpop.f32.mrf.mxu0
    %v2877 = vadd.f32 %v2857, %v2876
    %2878 = vdwg.mxu0
    %2879 = vmatpush.msra.mxu0 %v1653
    %2880 = vmatpush.msra.mxu0 %v1649
    %2881 = vmatpush.msra.mxu0 %v1645
    %2882 = vmatpush.msra.mxu0 %v1641
    %2883 = vmatpush.msra.mxu0 %v1637
    %2884 = vmatpush.msra.mxu0 %v1633
    %2885 = vmatpush.msra.mxu0 %v1629
    %2886 = vmatpush.msra.mxu0 %v1625
    %2887 = vmatpush.msra.mxu0 %v1621
    %2888 = vmatpush.msra.mxu0 %v1617
    %2889 = vmatpush.msra.mxu0 %v1613
    %2890 = vmatpush.msra.mxu0 %v1609
    %2891 = vmatpush.msra.mxu0 %v1605
    %2892 = vmatpush.msra.mxu0 %v1601
    %2893 = vmatpush.msra.mxu0 %v1597
    %2894 = vmatpush.msra.mxu0 %v1593
    %2895 = vmatmul.f32.gmra.mxu0 %v2806
    %v2896 = vpop.f32.mrf.mxu0
    %v2897 = vadd.f32 %v2877, %v2896
    %2898 = vdwg.mxu0
    %2899 = vmatpush.msra.mxu0 %v1717
    %2900 = vmatpush.msra.mxu0 %v1713
    %2901 = vmatpush.msra.mxu0 %v1709
    %2902 = vmatpush.msra.mxu0 %v1705
    %2903 = vmatpush.msra.mxu0 %v1701
    %2904 = vmatpush.msra.mxu0 %v1697
    %2905 = vmatpush.msra.mxu0 %v1693
    %2906 = vmatpush.msra.mxu0 %v1689
    %2907 = vmatpush.msra.mxu0 %v1685
    %2908 = vmatpush.msra.mxu0 %v1681
    %2909 = vmatpush.msra.mxu0 %v1677
    %2910 = vmatpush.msra.mxu0 %v1673
    %2911 = vmatpush.msra.mxu0 %v1669
    %2912 = vmatpush.msra.mxu0 %v1665
    %2913 = vmatpush.msra.mxu0 %v1661
    %2914 = vmatpush.msra.mxu0 %v1657
    %2915 = vmatmul.f32.gmra.mxu0 %v2807
    %v2916 = vpop.f32.mrf.mxu0
    %v2917 = vadd.f32 %v2897, %v2916
    %2918 = vdwg.mxu0
    %2919 = vmatpush.msra.mxu0 %v1781
    %2920 = vmatpush.msra.mxu0 %v1777
    %2921 = vmatpush.msra.mxu0 %v1773
    %2922 = vmatpush.msra.mxu0 %v1769
    %2923 = vmatpush.msra.mxu0 %v1765
    %2924 = vmatpush.msra.mxu0 %v1761
    %2925 = vmatpush.msra.mxu0 %v1757
    %2926 = vmatpush.msra.mxu0 %v1753
    %2927 = vmatpush.msra.mxu0 %v1749
    %2928 = vmatpush.msra.mxu0 %v1745
    %2929 = vmatpush.msra.mxu0 %v1741
    %2930 = vmatpush.msra.mxu0 %v1737
    %2931 = vmatpush.msra.mxu0 %v1733
    %2932 = vmatpush.msra.mxu0 %v1729
    %2933 = vmatpush.msra.mxu0 %v1725
    %2934 = vmatpush.msra.mxu0 %v1721
    %2935 = vmatmul.f32.gmra.mxu0 %v2808
    %v2936 = vpop.f32.mrf.mxu0
    %v2937 = vadd.f32 %v2917, %v2936
    %2938 = vdwg.mxu0
    %2939 = vmatpush.msra.mxu0 %v1845
    %2940 = vmatpush.msra.mxu0 %v1841
    %2941 = vmatpush.msra.mxu0 %v1837
    %2942 = vmatpush.msra.mxu0 %v1833
    %2943 = vmatpush.msra.mxu0 %v1829
    %2944 = vmatpush.msra.mxu0 %v1825
    %2945 = vmatpush.msra.mxu0 %v1821
    %2946 = vmatpush.msra.mxu0 %v1817
    %2947 = vmatpush.msra.mxu0 %v1813
    %2948 = vmatpush.msra.mxu0 %v1809
    %2949 = vmatpush.msra.mxu0 %v1805
    %2950 = vmatpush.msra.mxu0 %v1801
    %2951 = vmatpush.msra.mxu0 %v1797
    %2952 = vmatpush.msra.mxu0 %v1793
    %2953 = vmatpush.msra.mxu0 %v1789
    %2954 = vmatpush.msra.mxu0 %v1785
    %2955 = vmatmul.f32.gmra.mxu0 %v2809
    %v2956 = vpop.f32.mrf.mxu0
    %v2957 = vadd.f32 %v2937, %v2956
    %2958 = vdwg.mxu0
    %2959 = vmatpush.msra.mxu0 %v1909
    %2960 = vmatpush.msra.mxu0 %v1905
    %2961 = vmatpush.msra.mxu0 %v1901
    %2962 = vmatpush.msra.mxu0 %v1897
    %2963 = vmatpush.msra.mxu0 %v1893
    %2964 = vmatpush.msra.mxu0 %v1889
    %2965 = vmatpush.msra.mxu0 %v1885
    %2966 = vmatpush.msra.mxu0 %v1881
    %2967 = vmatpush.msra.mxu0 %v1877
    %2968 = vmatpush.msra.mxu0 %v1873
    %2969 = vmatpush.msra.mxu0 %v1869
    %2970 = vmatpush.msra.mxu0 %v1865
    %2971 = vmatpush.msra.mxu0 %v1861
    %2972 = vmatpush.msra.mxu0 %v1857
    %2973 = vmatpush.msra.mxu0 %v1853
    %2974 = vmatpush.msra.mxu0 %v1849
    %2975 = vmatmul.f32.gmra.mxu0 %v2810
    %v2976 = vpop.f32.mrf.mxu0
    %v2977 = vadd.f32 %v2957, %v2976
    %2978 = vdwg.mxu0
    %2979 = vmatpush.msra.mxu0 %v1462
    %2980 = vmatpush.msra.mxu0 %v1458
    %2981 = vmatpush.msra.mxu0 %v1454
    %2982 = vmatpush.msra.mxu0 %v1450
    %2983 = vmatpush.msra.mxu0 %v1446
    %2984 = vmatpush.msra.mxu0 %v1442
    %2985 = vmatpush.msra.mxu0 %v1438
    %2986 = vmatpush.msra.mxu0 %v1434
    %2987 = vmatpush.msra.mxu0 %v1430
    %2988 = vmatpush.msra.mxu0 %v1426
    %2989 = vmatpush.msra.mxu0 %v1422
    %2990 = vmatpush.msra.mxu0 %v1418
    %2991 = vmatpush.msra.mxu0 %v1414
    %2992 = vmatpush.msra.mxu0 %v1410
    %2993 = vmatpush.msra.mxu0 %v1406
    %2994 = vmatpush.msra.mxu0 %v1402
    %2995 = vmatmul.f32.gmra.mxu0 %v2803
    %v2996 = vpop.f32.mrf.mxu0
    %v2997 = vadd.f32 %v1976, %v2996
    %2998 = vdwg.mxu0
    %2999 = vmatpush.msra.mxu0 %v1526
    %3000 = vmatpush.msra.mxu0 %v1522
    %3001 = vmatpush.msra.mxu0 %v1518
    %3002 = vmatpush.msra.mxu0 %v1514
    %3003 = vmatpush.msra.mxu0 %v1510
    %3004 = vmatpush.msra.mxu0 %v1506
    %3005 = vmatpush.msra.mxu0 %v1502
    %3006 = vmatpush.msra.mxu0 %v1498
    %3007 = vmatpush.msra.mxu0 %v1494
    %3008 = vmatpush.msra.mxu0 %v1490
    %3009 = vmatpush.msra.mxu0 %v1486
    %3010 = vmatpush.msra.mxu0 %v1482
    %3011 = vmatpush.msra.mxu0 %v1478
    %3012 = vmatpush.msra.mxu0 %v1474
    %3013 = vmatpush.msra.mxu0 %v1470
    %3014 = vmatpush.msra.mxu0 %v1466
    %3015 = vmatmul.f32.gmra.mxu0 %v2804
    %v3016 = vpop.f32.mrf.mxu0
    %v3017 = vadd.f32 %v2997, %v3016
    %3018 = vdwg.mxu0
    %3019 = vmatpush.msra.mxu0 %v1590
    %3020 = vmatpush.msra.mxu0 %v1586
    %3021 = vmatpush.msra.mxu0 %v1582
    %3022 = vmatpush.msra.mxu0 %v1578
    %3023 = vmatpush.msra.mxu0 %v1574
    %3024 = vmatpush.msra.mxu0 %v1570
    %3025 = vmatpush.msra.mxu0 %v1566
    %3026 = vmatpush.msra.mxu0 %v1562
    %3027 = vmatpush.msra.mxu0 %v1558
    %3028 = vmatpush.msra.mxu0 %v1554
    %3029 = vmatpush.msra.mxu0 %v1550
    %3030 = vmatpush.msra.mxu0 %v1546
    %3031 = vmatpush.msra.mxu0 %v1542
    %3032 = vmatpush.msra.mxu0 %v1538
    %3033 = vmatpush.msra.mxu0 %v1534
    %3034 = vmatpush.msra.mxu0 %v1530
    %3035 = vmatmul.f32.gmra.mxu0 %v2805
    %v3036 = vpop.f32.mrf.mxu0
    %v3037 = vadd.f32 %v3017, %v3036
    %3038 = vdwg.mxu0
    %3039 = vmatpush.msra.mxu0 %v1654
    %3040 = vmatpush.msra.mxu0 %v1650
    %3041 = vmatpush.msra.mxu0 %v1646
    %3042 = vmatpush.msra.mxu0 %v1642
    %3043 = vmatpush.msra.mxu0 %v1638
    %3044 = vmatpush.msra.mxu0 %v1634
    %3045 = vmatpush.msra.mxu0 %v1630
    %3046 = vmatpush.msra.mxu0 %v1626
    %3047 = vmatpush.msra.mxu0 %v1622
    %3048 = vmatpush.msra.mxu0 %v1618
    %3049 = vmatpush.msra.mxu0 %v1614
    %3050 = vmatpush.msra.mxu0 %v1610
    %3051 = vmatpush.msra.mxu0 %v1606
    %3052 = vmatpush.msra.mxu0 %v1602
    %3053 = vmatpush.msra.mxu0 %v1598
    %3054 = vmatpush.msra.mxu0 %v1594
    %3055 = vmatmul.f32.gmra.mxu0 %v2806
    %v3056 = vpop.f32.mrf.mxu0
    %v3057 = vadd.f32 %v3037, %v3056
    %3058 = vdwg.mxu0
    %3059 = vmatpush.msra.mxu0 %v1718
    %3060 = vmatpush.msra.mxu0 %v1714
    %3061 = vmatpush.msra.mxu0 %v1710
    %3062 = vmatpush.msra.mxu0 %v1706
    %3063 = vmatpush.msra.mxu0 %v1702
    %3064 = vmatpush.msra.mxu0 %v1698
    %3065 = vmatpush.msra.mxu0 %v1694
    %3066 = vmatpush.msra.mxu0 %v1690
    %3067 = vmatpush.msra.mxu0 %v1686
    %3068 = vmatpush.msra.mxu0 %v1682
    %3069 = vmatpush.msra.mxu0 %v1678
    %3070 = vmatpush.msra.mxu0 %v1674
    %3071 = vmatpush.msra.mxu0 %v1670
    %3072 = vmatpush.msra.mxu0 %v1666
    %3073 = vmatpush.msra.mxu0 %v1662
    %3074 = vmatpush.msra.mxu0 %v1658
    %3075 = vmatmul.f32.gmra.mxu0 %v2807
    %v3076 = vpop.f32.mrf.mxu0
    %v3077 = vadd.f32 %v3057, %v3076
    %3078 = vdwg.mxu0
    %3079 = vmatpush.msra.mxu0 %v1782
    %3080 = vmatpush.msra.mxu0 %v1778
    %3081 = vmatpush.msra.mxu0 %v1774
    %3082 = vmatpush.msra.mxu0 %v1770
    %3083 = vmatpush.msra.mxu0 %v1766
    %3084 = vmatpush.msra.mxu0 %v1762
    %3085 = vmatpush.msra.mxu0 %v1758
    %3086 = vmatpush.msra.mxu0 %v1754
    %3087 = vmatpush.msra.mxu0 %v1750
    %3088 = vmatpush.msra.mxu0 %v1746
    %3089 = vmatpush.msra.mxu0 %v1742
    %3090 = vmatpush.msra.mxu0 %v1738
    %3091 = vmatpush.msra.mxu0 %v1734
    %3092 = vmatpush.msra.mxu0 %v1730
    %3093 = vmatpush.msra.mxu0 %v1726
    %3094 = vmatpush.msra.mxu0 %v1722
    %3095 = vmatmul.f32.gmra.mxu0 %v2808
    %v3096 = vpop.f32.mrf.mxu0
    %v3097 = vadd.f32 %v3077, %v3096
    %3098 = vdwg.mxu0
    %3099 = vmatpush.msra.mxu0 %v1846
    %3100 = vmatpush.msra.mxu0 %v1842
    %3101 = vmatpush.msra.mxu0 %v1838
    %3102 = vmatpush.msra.mxu0 %v1834
    %3103 = vmatpush.msra.mxu0 %v1830
    %3104 = vmatpush.msra.mxu0 %v1826
    %3105 = vmatpush.msra.mxu0 %v1822
    %3106 = vmatpush.msra.mxu0 %v1818
    %3107 = vmatpush.msra.mxu0 %v1814
    %3108 = vmatpush.msra.mxu0 %v1810
    %3109 = vmatpush.msra.mxu0 %v1806
    %3110 = vmatpush.msra.mxu0 %v1802
    %3111 = vmatpush.msra.mxu0 %v1798
    %3112 = vmatpush.msra.mxu0 %v1794
    %3113 = vmatpush.msra.mxu0 %v1790
    %3114 = vmatpush.msra.mxu0 %v1786
    %3115 = vmatmul.f32.gmra.mxu0 %v2809
    %v3116 = vpop.f32.mrf.mxu0
    %v3117 = vadd.f32 %v3097, %v3116
    %3118 = vdwg.mxu0
    %3119 = vmatpush.msra.mxu0 %v1910
    %3120 = vmatpush.msra.mxu0 %v1906
    %3121 = vmatpush.msra.mxu0 %v1902
    %3122 = vmatpush.msra.mxu0 %v1898
    %3123 = vmatpush.msra.mxu0 %v1894
    %3124 = vmatpush.msra.mxu0 %v1890
    %3125 = vmatpush.msra.mxu0 %v1886
    %3126 = vmatpush.msra.mxu0 %v1882
    %3127 = vmatpush.msra.mxu0 %v1878
    %3128 = vmatpush.msra.mxu0 %v1874
    %3129 = vmatpush.msra.mxu0 %v1870
    %3130 = vmatpush.msra.mxu0 %v1866
    %3131 = vmatpush.msra.mxu0 %v1862
    %3132 = vmatpush.msra.mxu0 %v1858
    %3133 = vmatpush.msra.mxu0 %v1854
    %3134 = vmatpush.msra.mxu0 %v1850
    %3135 = vmatmul.f32.gmra.mxu0 %v2810
    %v3136 = vpop.f32.mrf.mxu0
    %v3137 = vadd.f32 %v3117, %v3136
    %3138 = vdwg.mxu0
    %3139 = vmatpush.msra.mxu0 %v1463
    %3140 = vmatpush.msra.mxu0 %v1459
    %3141 = vmatpush.msra.mxu0 %v1455
    %3142 = vmatpush.msra.mxu0 %v1451
    %3143 = vmatpush.msra.mxu0 %v1447
    %3144 = vmatpush.msra.mxu0 %v1443
    %3145 = vmatpush.msra.mxu0 %v1439
    %3146 = vmatpush.msra.mxu0 %v1435
    %3147 = vmatpush.msra.mxu0 %v1431
    %3148 = vmatpush.msra.mxu0 %v1427
    %3149 = vmatpush.msra.mxu0 %v1423
    %3150 = vmatpush.msra.mxu0 %v1419
    %3151 = vmatpush.msra.mxu0 %v1415
    %3152 = vmatpush.msra.mxu0 %v1411
    %3153 = vmatpush.msra.mxu0 %v1407
    %3154 = vmatpush.msra.mxu0 %v1403
    %3155 = vmatmul.f32.gmra.mxu0 %v2803
    %v3156 = vpop.f32.mrf.mxu0
    %v3157 = vadd.f32 %v1996, %v3156
    %3158 = vdwg.mxu0
    %3159 = vmatpush.msra.mxu0 %v1527
    %3160 = vmatpush.msra.mxu0 %v1523
    %3161 = vmatpush.msra.mxu0 %v1519
    %3162 = vmatpush.msra.mxu0 %v1515
    %3163 = vmatpush.msra.mxu0 %v1511
    %3164 = vmatpush.msra.mxu0 %v1507
    %3165 = vmatpush.msra.mxu0 %v1503
    %3166 = vmatpush.msra.mxu0 %v1499
    %3167 = vmatpush.msra.mxu0 %v1495
    %3168 = vmatpush.msra.mxu0 %v1491
    %3169 = vmatpush.msra.mxu0 %v1487
    %3170 = vmatpush.msra.mxu0 %v1483
    %3171 = vmatpush.msra.mxu0 %v1479
    %3172 = vmatpush.msra.mxu0 %v1475
    %3173 = vmatpush.msra.mxu0 %v1471
    %3174 = vmatpush.msra.mxu0 %v1467
    %3175 = vmatmul.f32.gmra.mxu0 %v2804
    %v3176 = vpop.f32.mrf.mxu0
    %v3177 = vadd.f32 %v3157, %v3176
    %3178 = vdwg.mxu0
    %3179 = vmatpush.msra.mxu0 %v1591
    %3180 = vmatpush.msra.mxu0 %v1587
    %3181 = vmatpush.msra.mxu0 %v1583
    %3182 = vmatpush.msra.mxu0 %v1579
    %3183 = vmatpush.msra.mxu0 %v1575
    %3184 = vmatpush.msra.mxu0 %v1571
    %3185 = vmatpush.msra.mxu0 %v1567
    %3186 = vmatpush.msra.mxu0 %v1563
    %3187 = vmatpush.msra.mxu0 %v1559
    %3188 = vmatpush.msra.mxu0 %v1555
    %3189 = vmatpush.msra.mxu0 %v1551
    %3190 = vmatpush.msra.mxu0 %v1547
    %3191 = vmatpush.msra.mxu0 %v1543
    %3192 = vmatpush.msra.mxu0 %v1539
    %3193 = vmatpush.msra.mxu0 %v1535
    %3194 = vmatpush.msra.mxu0 %v1531
    %3195 = vmatmul.f32.gmra.mxu0 %v2805
    %v3196 = vpop.f32.mrf.mxu0
    %v3197 = vadd.f32 %v3177, %v3196
    %3198 = vdwg.mxu0
    %3199 = vmatpush.msra.mxu0 %v1655
    %3200 = vmatpush.msra.mxu0 %v1651
    %3201 = vmatpush.msra.mxu0 %v1647
    %3202 = vmatpush.msra.mxu0 %v1643
    %3203 = vmatpush.msra.mxu0 %v1639
    %3204 = vmatpush.msra.mxu0 %v1635
    %3205 = vmatpush.msra.mxu0 %v1631
    %3206 = vmatpush.msra.mxu0 %v1627
    %3207 = vmatpush.msra.mxu0 %v1623
    %3208 = vmatpush.msra.mxu0 %v1619
    %3209 = vmatpush.msra.mxu0 %v1615
    %3210 = vmatpush.msra.mxu0 %v1611
    %3211 = vmatpush.msra.mxu0 %v1607
    %3212 = vmatpush.msra.mxu0 %v1603
    %3213 = vmatpush.msra.mxu0 %v1599
    %3214 = vmatpush.msra.mxu0 %v1595
    %3215 = vmatmul.f32.gmra.mxu0 %v2806
    %v3216 = vpop.f32.mrf.mxu0
    %v3217 = vadd.f32 %v3197, %v3216
    %3218 = vdwg.mxu0
    %3219 = vmatpush.msra.mxu0 %v1719
    %3220 = vmatpush.msra.mxu0 %v1715
    %3221 = vmatpush.msra.mxu0 %v1711
    %3222 = vmatpush.msra.mxu0 %v1707
    %3223 = vmatpush.msra.mxu0 %v1703
    %3224 = vmatpush.msra.mxu0 %v1699
    %3225 = vmatpush.msra.mxu0 %v1695
    %3226 = vmatpush.msra.mxu0 %v1691
    %3227 = vmatpush.msra.mxu0 %v1687
    %3228 = vmatpush.msra.mxu0 %v1683
    %3229 = vmatpush.msra.mxu0 %v1679
    %3230 = vmatpush.msra.mxu0 %v1675
    %3231 = vmatpush.msra.mxu0 %v1671
    %3232 = vmatpush.msra.mxu0 %v1667
    %3233 = vmatpush.msra.mxu0 %v1663
    %3234 = vmatpush.msra.mxu0 %v1659
    %3235 = vmatmul.f32.gmra.mxu0 %v2807
    %v3236 = vpop.f32.mrf.mxu0
    %v3237 = vadd.f32 %v3217, %v3236
    %3238 = vdwg.mxu0
    %3239 = vmatpush.msra.mxu0 %v1783
    %3240 = vmatpush.msra.mxu0 %v1779
    %3241 = vmatpush.msra.mxu0 %v1775
    %3242 = vmatpush.msra.mxu0 %v1771
    %3243 = vmatpush.msra.mxu0 %v1767
    %3244 = vmatpush.msra.mxu0 %v1763
    %3245 = vmatpush.msra.mxu0 %v1759
    %3246 = vmatpush.msra.mxu0 %v1755
    %3247 = vmatpush.msra.mxu0 %v1751
    %3248 = vmatpush.msra.mxu0 %v1747
    %3249 = vmatpush.msra.mxu0 %v1743
    %3250 = vmatpush.msra.mxu0 %v1739
    %3251 = vmatpush.msra.mxu0 %v1735
    %3252 = vmatpush.msra.mxu0 %v1731
    %3253 = vmatpush.msra.mxu0 %v1727
    %3254 = vmatpush.msra.mxu0 %v1723
    %3255 = vmatmul.f32.gmra.mxu0 %v2808
    %v3256 = vpop.f32.mrf.mxu0
    %v3257 = vadd.f32 %v3237, %v3256
    %3258 = vdwg.mxu0
    %3259 = vmatpush.msra.mxu0 %v1847
    %3260 = vmatpush.msra.mxu0 %v1843
    %3261 = vmatpush.msra.mxu0 %v1839
    %3262 = vmatpush.msra.mxu0 %v1835
    %3263 = vmatpush.msra.mxu0 %v1831
    %3264 = vmatpush.msra.mxu0 %v1827
    %3265 = vmatpush.msra.mxu0 %v1823
    %3266 = vmatpush.msra.mxu0 %v1819
    %3267 = vmatpush.msra.mxu0 %v1815
    %3268 = vmatpush.msra.mxu0 %v1811
    %3269 = vmatpush.msra.mxu0 %v1807
    %3270 = vmatpush.msra.mxu0 %v1803
    %3271 = vmatpush.msra.mxu0 %v1799
    %3272 = vmatpush.msra.mxu0 %v1795
    %3273 = vmatpush.msra.mxu0 %v1791
    %3274 = vmatpush.msra.mxu0 %v1787
    %3275 = vmatmul.f32.gmra.mxu0 %v2809
    %v3276 = vpop.f32.mrf.mxu0
    %v3277 = vadd.f32 %v3257, %v3276
    %3278 = vdwg.mxu0
    %3279 = vmatpush.msra.mxu0 %v1911
    %3280 = vmatpush.msra.mxu0 %v1907
    %3281 = vmatpush.msra.mxu0 %v1903
    %3282 = vmatpush.msra.mxu0 %v1899
    %3283 = vmatpush.msra.mxu0 %v1895
    %3284 = vmatpush.msra.mxu0 %v1891
    %3285 = vmatpush.msra.mxu0 %v1887
    %3286 = vmatpush.msra.mxu0 %v1883
    %3287 = vmatpush.msra.mxu0 %v1879
    %3288 = vmatpush.msra.mxu0 %v1875
    %3289 = vmatpush.msra.mxu0 %v1871
    %3290 = vmatpush.msra.mxu0 %v1867
    %3291 = vmatpush.msra.mxu0 %v1863
    %3292 = vmatpush.msra.mxu0 %v1859
    %3293 = vmatpush.msra.mxu0 %v1855
    %3294 = vmatpush.msra.mxu0 %v1851
    %3295 = vmatmul.f32.gmra.mxu0 %v2810
    %v3296 = vpop.f32.mrf.mxu0
    %v3297 = vadd.f32 %v3277, %v3296
    %3298 = vdwg.mxu0
    %3299 = vmatpush.msra.mxu0 %v1464
    %3300 = vmatpush.msra.mxu0 %v1460
    %3301 = vmatpush.msra.mxu0 %v1456
    %3302 = vmatpush.msra.mxu0 %v1452
    %3303 = vmatpush.msra.mxu0 %v1448
    %3304 = vmatpush.msra.mxu0 %v1444
    %3305 = vmatpush.msra.mxu0 %v1440
    %3306 = vmatpush.msra.mxu0 %v1436
    %3307 = vmatpush.msra.mxu0 %v1432
    %3308 = vmatpush.msra.mxu0 %v1428
    %3309 = vmatpush.msra.mxu0 %v1424
    %3310 = vmatpush.msra.mxu0 %v1420
    %3311 = vmatpush.msra.mxu0 %v1416
    %3312 = vmatpush.msra.mxu0 %v1412
    %3313 = vmatpush.msra.mxu0 %v1408
    %3314 = vmatpush.msra.mxu0 %v1404
    %3315 = vmatmul.f32.gmra.mxu0 %v2803
    %v3316 = vpop.f32.mrf.mxu0
    %v3317 = vadd.f32 %v2016, %v3316
    %3318 = vdwg.mxu0
    %3319 = vmatpush.msra.mxu0 %v1528
    %3320 = vmatpush.msra.mxu0 %v1524
    %3321 = vmatpush.msra.mxu0 %v1520
    %3322 = vmatpush.msra.mxu0 %v1516
    %3323 = vmatpush.msra.mxu0 %v1512
    %3324 = vmatpush.msra.mxu0 %v1508
    %3325 = vmatpush.msra.mxu0 %v1504
    %3326 = vmatpush.msra.mxu0 %v1500
    %3327 = vmatpush.msra.mxu0 %v1496
    %3328 = vmatpush.msra.mxu0 %v1492
    %3329 = vmatpush.msra.mxu0 %v1488
    %3330 = vmatpush.msra.mxu0 %v1484
    %3331 = vmatpush.msra.mxu0 %v1480
    %3332 = vmatpush.msra.mxu0 %v1476
    %3333 = vmatpush.msra.mxu0 %v1472
    %3334 = vmatpush.msra.mxu0 %v1468
    %3335 = vmatmul.f32.gmra.mxu0 %v2804
    %v3336 = vpop.f32.mrf.mxu0
    %v3337 = vadd.f32 %v3317, %v3336
    %3338 = vdwg.mxu0
    %3339 = vmatpush.msra.mxu0 %v1592
    %3340 = vmatpush.msra.mxu0 %v1588
    %3341 = vmatpush.msra.mxu0 %v1584
    %3342 = vmatpush.msra.mxu0 %v1580
    %3343 = vmatpush.msra.mxu0 %v1576
    %3344 = vmatpush.msra.mxu0 %v1572
    %3345 = vmatpush.msra.mxu0 %v1568
    %3346 = vmatpush.msra.mxu0 %v1564
    %3347 = vmatpush.msra.mxu0 %v1560
    %3348 = vmatpush.msra.mxu0 %v1556
    %3349 = vmatpush.msra.mxu0 %v1552
    %3350 = vmatpush.msra.mxu0 %v1548
    %3351 = vmatpush.msra.mxu0 %v1544
    %3352 = vmatpush.msra.mxu0 %v1540
    %3353 = vmatpush.msra.mxu0 %v1536
    %3354 = vmatpush.msra.mxu0 %v1532
    %3355 = vmatmul.f32.gmra.mxu0 %v2805
    %v3356 = vpop.f32.mrf.mxu0
    %v3357 = vadd.f32 %v3337, %v3356
    %3358 = vdwg.mxu0
    %3359 = vmatpush.msra.mxu0 %v1656
    %3360 = vmatpush.msra.mxu0 %v1652
    %3361 = vmatpush.msra.mxu0 %v1648
    %3362 = vmatpush.msra.mxu0 %v1644
    %3363 = vmatpush.msra.mxu0 %v1640
    %3364 = vmatpush.msra.mxu0 %v1636
    %3365 = vmatpush.msra.mxu0 %v1632
    %3366 = vmatpush.msra.mxu0 %v1628
    %3367 = vmatpush.msra.mxu0 %v1624
    %3368 = vmatpush.msra.mxu0 %v1620
    %3369 = vmatpush.msra.mxu0 %v1616
    %3370 = vmatpush.msra.mxu0 %v1612
    %3371 = vmatpush.msra.mxu0 %v1608
    %3372 = vmatpush.msra.mxu0 %v1604
    %3373 = vmatpush.msra.mxu0 %v1600
    %3374 = vmatpush.msra.mxu0 %v1596
    %3375 = vmatmul.f32.gmra.mxu0 %v2806
    %v3376 = vpop.f32.mrf.mxu0
    %v3377 = vadd.f32 %v3357, %v3376
    %3378 = vdwg.mxu0
    %3379 = vmatpush.msra.mxu0 %v1720
    %3380 = vmatpush.msra.mxu0 %v1716
    %3381 = vmatpush.msra.mxu0 %v1712
    %3382 = vmatpush.msra.mxu0 %v1708
    %3383 = vmatpush.msra.mxu0 %v1704
    %3384 = vmatpush.msra.mxu0 %v1700
    %3385 = vmatpush.msra.mxu0 %v1696
    %3386 = vmatpush.msra.mxu0 %v1692
    %3387 = vmatpush.msra.mxu0 %v1688
    %3388 = vmatpush.msra.mxu0 %v1684
    %3389 = vmatpush.msra.mxu0 %v1680
    %3390 = vmatpush.msra.mxu0 %v1676
    %3391 = vmatpush.msra.mxu0 %v1672
    %3392 = vmatpush.msra.mxu0 %v1668
    %3393 = vmatpush.msra.mxu0 %v1664
    %3394 = vmatpush.msra.mxu0 %v1660
    %3395 = vmatmul.f32.gmra.mxu0 %v2807
    %v3396 = vpop.f32.mrf.mxu0
    %v3397 = vadd.f32 %v3377, %v3396
    %3398 = vdwg.mxu0
    %3399 = vmatpush.msra.mxu0 %v1784
    %3400 = vmatpush.msra.mxu0 %v1780
    %3401 = vmatpush.msra.mxu0 %v1776
    %3402 = vmatpush.msra.mxu0 %v1772
    %3403 = vmatpush.msra.mxu0 %v1768
    %3404 = vmatpush.msra.mxu0 %v1764
    %3405 = vmatpush.msra.mxu0 %v1760
    %3406 = vmatpush.msra.mxu0 %v1756
    %3407 = vmatpush.msra.mxu0 %v1752
    %3408 = vmatpush.msra.mxu0 %v1748
    %3409 = vmatpush.msra.mxu0 %v1744
    %3410 = vmatpush.msra.mxu0 %v1740
    %3411 = vmatpush.msra.mxu0 %v1736
    %3412 = vmatpush.msra.mxu0 %v1732
    %3413 = vmatpush.msra.mxu0 %v1728
    %3414 = vmatpush.msra.mxu0 %v1724
    %3415 = vmatmul.f32.gmra.mxu0 %v2808
    %v3416 = vpop.f32.mrf.mxu0
    %v3417 = vadd.f32 %v3397, %v3416
    %3418 = vdwg.mxu0
    %3419 = vmatpush.msra.mxu0 %v1848
    %3420 = vmatpush.msra.mxu0 %v1844
    %3421 = vmatpush.msra.mxu0 %v1840
    %3422 = vmatpush.msra.mxu0 %v1836
    %3423 = vmatpush.msra.mxu0 %v1832
    %3424 = vmatpush.msra.mxu0 %v1828
    %3425 = vmatpush.msra.mxu0 %v1824
    %3426 = vmatpush.msra.mxu0 %v1820
    %3427 = vmatpush.msra.mxu0 %v1816
    %3428 = vmatpush.msra.mxu0 %v1812
    %3429 = vmatpush.msra.mxu0 %v1808
    %3430 = vmatpush.msra.mxu0 %v1804
    %3431 = vmatpush.msra.mxu0 %v1800
    %3432 = vmatpush.msra.mxu0 %v1796
    %3433 = vmatpush.msra.mxu0 %v1792
    %3434 = vmatpush.msra.mxu0 %v1788
    %3435 = vmatmul.f32.gmra.mxu0 %v2809
    %v3436 = vpop.f32.mrf.mxu0
    %v3437 = vadd.f32 %v3417, %v3436
    %3438 = vdwg.mxu0
    %3439 = vmatpush.msra.mxu0 %v1912
    %3440 = vmatpush.msra.mxu0 %v1908
    %3441 = vmatpush.msra.mxu0 %v1904
    %3442 = vmatpush.msra.mxu0 %v1900
    %3443 = vmatpush.msra.mxu0 %v1896
    %3444 = vmatpush.msra.mxu0 %v1892
    %3445 = vmatpush.msra.mxu0 %v1888
    %3446 = vmatpush.msra.mxu0 %v1884
    %3447 = vmatpush.msra.mxu0 %v1880
    %3448 = vmatpush.msra.mxu0 %v1876
    %3449 = vmatpush.msra.mxu0 %v1872
    %3450 = vmatpush.msra.mxu0 %v1868
    %3451 = vmatpush.msra.mxu0 %v1864
    %3452 = vmatpush.msra.mxu0 %v1860
    %3453 = vmatpush.msra.mxu0 %v1856
    %3454 = vmatpush.msra.mxu0 %v1852
    %3455 = vmatmul.f32.gmra.mxu0 %v2810
    %v3456 = vpop.f32.mrf.mxu0
    %v3457 = vadd.f32 %v3437, %v3456
    %3458 = vdwg.mxu0
    %v3459 = vld [vmem:[#allocation8] sm:$0xf]
    %v3461 = vperm.slane %v3459, 0
    %v3462 = vperm.slane %v3459, 1
    %v3463 = vperm.slane %v3459, 2
    %v3464 = vperm.slane %v3459, 3
    %v3469 = vadd.f32 %v2977, %v3461
    %v3470 = vadd.f32 %v3137, %v3462
    %v3471 = vadd.f32 %v3297, %v3463
    %v3472 = vadd.f32 %v3457, %v3464
    %v3473 = vmax.f32 %v3469, 0.0
    %v3474 = vmax.f32 %v3470, 0.0
    %v3475 = vmax.f32 %v3471, 0.0
    %v3476 = vmax.f32 %v3472, 0.0
    %v3477 = vld [vmem:[#allocation10] sm:$0xff]
    %v3478 = vld [vmem:[#allocation10 + $0x8] sm:$0xff]
    %v3479 = vld [vmem:[#allocation10 + $0x10] sm:$0xff]
    %v3480 = vld [vmem:[#allocation10 + $0x18] sm:$0xff]
    %v3481 = vld [vmem:[#allocation10 + $0x20] sm:$0xff]
    %v3482 = vld [vmem:[#allocation10 + $0x28] sm:$0xff]
    %v3483 = vld [vmem:[#allocation10 + $0x30] sm:$0xff]
    %v3484 = vld [vmem:[#allocation10 + $0x38] sm:$0xff]
    %v3485 = vld [vmem:[#allocation10 + $0x40] sm:$0xff]
    %v3486 = vld [vmem:[#allocation10 + $0x48] sm:$0xff]
    %v3487 = vld [vmem:[#allocation10 + $0x50] sm:$0xff]
    %v3488 = vld [vmem:[#allocation10 + $0x58] sm:$0xff]
    %v3489 = vld [vmem:[#allocation10 + $0x60] sm:$0xff]
    %v3490 = vld [vmem:[#allocation10 + $0x68] sm:$0xff]
    %v3491 = vld [vmem:[#allocation10 + $0x70] sm:$0xff]
    %v3492 = vld [vmem:[#allocation10 + $0x78] sm:$0xff]
    %v3493 = vld [vmem:[#allocation10 + $0x80] sm:$0xff]
    %v3494 = vld [vmem:[#allocation10 + $0x88] sm:$0xff]
    %v3495 = vld [vmem:[#allocation10 + $0x90] sm:$0xff]
    %v3496 = vld [vmem:[#allocation10 + $0x98] sm:$0xff]
    %v3497 = vld [vmem:[#allocation10 + $0xa0] sm:$0xff]
    %v3498 = vld [vmem:[#allocation10 + $0xa8] sm:$0xff]
    %v3499 = vld [vmem:[#allocation10 + $0xb0] sm:$0xff]
    %v3500 = vld [vmem:[#allocation10 + $0xb8] sm:$0xff]
    %v3501 = vld [vmem:[#allocation10 + $0xc0] sm:$0xff]
    %v3502 = vld [vmem:[#allocation10 + $0xc8] sm:$0xff]
    %v3503 = vld [vmem:[#allocation10 + $0xd0] sm:$0xff]
    %v3504 = vld [vmem:[#allocation10 + $0xd8] sm:$0xff]
    %v3505 = vld [vmem:[#allocation10 + $0xe0] sm:$0xff]
    %v3506 = vld [vmem:[#allocation10 + $0xe8] sm:$0xff]
    %v3507 = vld [vmem:[#allocation10 + $0xf0] sm:$0xff]
    %v3508 = vld [vmem:[#allocation10 + $0xf8] sm:$0xff]
    %v3509 = vld [vmem:[#allocation10 + $0x100] sm:$0xff]
    %v3510 = vld [vmem:[#allocation10 + $0x108] sm:$0xff]
    %v3511 = vld [vmem:[#allocation10 + $0x110] sm:$0xff]
    %v3512 = vld [vmem:[#allocation10 + $0x118] sm:$0xff]
    %v3513 = vld [vmem:[#allocation10 + $0x120] sm:$0xff]
    %v3514 = vld [vmem:[#allocation10 + $0x128] sm:$0xff]
    %v3515 = vld [vmem:[#allocation10 + $0x130] sm:$0xff]
    %v3516 = vld [vmem:[#allocation10 + $0x138] sm:$0xff]
    %v3517 = vld [vmem:[#allocation10 + $0x140] sm:$0xff]
    %v3518 = vld [vmem:[#allocation10 + $0x148] sm:$0xff]
    %v3519 = vld [vmem:[#allocation10 + $0x150] sm:$0xff]
    %v3520 = vld [vmem:[#allocation10 + $0x158] sm:$0xff]
    %v3521 = vld [vmem:[#allocation10 + $0x160] sm:$0xff]
    %v3522 = vld [vmem:[#allocation10 + $0x168] sm:$0xff]
    %v3523 = vld [vmem:[#allocation10 + $0x170] sm:$0xff]
    %v3524 = vld [vmem:[#allocation10 + $0x178] sm:$0xff]
    %v3525 = vld [vmem:[#allocation10 + $0x180] sm:$0xff]
    %v3526 = vld [vmem:[#allocation10 + $0x188] sm:$0xff]
    %v3527 = vld [vmem:[#allocation10 + $0x190] sm:$0xff]
    %v3528 = vld [vmem:[#allocation10 + $0x198] sm:$0xff]
    %v3529 = vld [vmem:[#allocation10 + $0x1a0] sm:$0xff]
    %v3530 = vld [vmem:[#allocation10 + $0x1a8] sm:$0xff]
    %v3531 = vld [vmem:[#allocation10 + $0x1b0] sm:$0xff]
    %v3532 = vld [vmem:[#allocation10 + $0x1b8] sm:$0xff]
    %v3533 = vld [vmem:[#allocation10 + $0x1c0] sm:$0xff]
    %v3534 = vld [vmem:[#allocation10 + $0x1c8] sm:$0xff]
    %v3535 = vld [vmem:[#allocation10 + $0x1d0] sm:$0xff]
    %v3536 = vld [vmem:[#allocation10 + $0x1d8] sm:$0xff]
    %v3537 = vld [vmem:[#allocation10 + $0x1e0] sm:$0xff]
    %v3538 = vld [vmem:[#allocation10 + $0x1e8] sm:$0xff]
    %v3539 = vld [vmem:[#allocation10 + $0x1f0] sm:$0xff]
    %v3540 = vld [vmem:[#allocation10 + $0x1f8] sm:$0xff]
    %v3541 = vld [vmem:[#allocation11] sm:$0x1]
    %v3543 = vperm.slane %v3541, 0
    %3545 = vmatpush.msra.mxu0 %v3492
    %3546 = vmatpush.msra.mxu0 %v3491
    %3547 = vmatpush.msra.mxu0 %v3490
    %3548 = vmatpush.msra.mxu0 %v3489
    %3549 = vmatpush.msra.mxu0 %v3488
    %3550 = vmatpush.msra.mxu0 %v3487
    %3551 = vmatpush.msra.mxu0 %v3486
    %3552 = vmatpush.msra.mxu0 %v3485
    %3553 = vmatpush.msra.mxu0 %v3484
    %3554 = vmatpush.msra.mxu0 %v3483
    %3555 = vmatpush.msra.mxu0 %v3482
    %3556 = vmatpush.msra.mxu0 %v3481
    %3557 = vmatpush.msra.mxu0 %v3480
    %3558 = vmatpush.msra.mxu0 %v3479
    %3559 = vmatpush.msra.mxu0 %v3478
    %3560 = vmatpush.msra.mxu0 %v3477
    %3561 = vmatmul.f32.gmra.mxu0 %v3473
    %v3562 = vpop.f32.mrf.mxu0
    %v3563 = vadd.f32 %v3543, %v3562
    %3564 = vdwg.mxu0
    %3565 = vmatpush.msra.mxu0 %v3508
    %3566 = vmatpush.msra.mxu0 %v3507
    %3567 = vmatpush.msra.mxu0 %v3506
    %3568 = vmatpush.msra.mxu0 %v3505
    %3569 = vmatpush.msra.mxu0 %v3504
    %3570 = vmatpush.msra.mxu0 %v3503
    %3571 = vmatpush.msra.mxu0 %v3502
    %3572 = vmatpush.msra.mxu0 %v3501
    %3573 = vmatpush.msra.mxu0 %v3500
    %3574 = vmatpush.msra.mxu0 %v3499
    %3575 = vmatpush.msra.mxu0 %v3498
    %3576 = vmatpush.msra.mxu0 %v3497
    %3577 = vmatpush.msra.mxu0 %v3496
    %3578 = vmatpush.msra.mxu0 %v3495
    %3579 = vmatpush.msra.mxu0 %v3494
    %3580 = vmatpush.msra.mxu0 %v3493
    %3581 = vmatmul.f32.gmra.mxu0 %v3474
    %v3582 = vpop.f32.mrf.mxu0
    %v3583 = vadd.f32 %v3563, %v3582
    %3584 = vdwg.mxu0
    %3585 = vmatpush.msra.mxu0 %v3524
    %3586 = vmatpush.msra.mxu0 %v3523
    %3587 = vmatpush.msra.mxu0 %v3522
    %3588 = vmatpush.msra.mxu0 %v3521
    %3589 = vmatpush.msra.mxu0 %v3520
    %3590 = vmatpush.msra.mxu0 %v3519
    %3591 = vmatpush.msra.mxu0 %v3518
    %3592 = vmatpush.msra.mxu0 %v3517
    %3593 = vmatpush.msra.mxu0 %v3516
    %3594 = vmatpush.msra.mxu0 %v3515
    %3595 = vmatpush.msra.mxu0 %v3514
    %3596 = vmatpush.msra.mxu0 %v3513
    %3597 = vmatpush.msra.mxu0 %v3512
    %3598 = vmatpush.msra.mxu0 %v3511
    %3599 = vmatpush.msra.mxu0 %v3510
    %3600 = vmatpush.msra.mxu0 %v3509
    %3601 = vmatmul.f32.gmra.mxu0 %v3475
    %v3602 = vpop.f32.mrf.mxu0
    %v3603 = vadd.f32 %v3583, %v3602
    %3604 = vdwg.mxu0
    %3605 = vmatpush.msra.mxu0 %v3540
    %3606 = vmatpush.msra.mxu0 %v3539
    %3607 = vmatpush.msra.mxu0 %v3538
    %3608 = vmatpush.msra.mxu0 %v3537
    %3609 = vmatpush.msra.mxu0 %v3536
    %3610 = vmatpush.msra.mxu0 %v3535
    %3611 = vmatpush.msra.mxu0 %v3534
    %3612 = vmatpush.msra.mxu0 %v3533
    %3613 = vmatpush.msra.mxu0 %v3532
    %3614 = vmatpush.msra.mxu0 %v3531
    %3615 = vmatpush.msra.mxu0 %v3530
    %3616 = vmatpush.msra.mxu0 %v3529
    %3617 = vmatpush.msra.mxu0 %v3528
    %3618 = vmatpush.msra.mxu0 %v3527
    %3619 = vmatpush.msra.mxu0 %v3526
    %3620 = vmatpush.msra.mxu0 %v3525
    %3621 = vmatmul.f32.gmra.mxu0 %v3476
    %v3622 = vpop.f32.mrf.mxu0
    %v3623 = vadd.f32 %v3603, %v3622
    %3624 = vdwg.mxu0
    %3625 = vst [vmem:[#allocation13] sm:$0x3] %v3623
    // Predicated region
    $region54: #{tpu_custom_call.1} parent=1 // pred_check
      _
    $region55: #{tpu_custom_call.1} parent=1 // pred_check_branch
      %3627 = sbr.rel (0) target = $region57
    $region56: #{tpu_custom_call.1} parent=1 // pred_region
      %3629 = vsyncadd [#allocation4], 0
      %s3631 = sshll.u32 [#allocation13], 4
      %s3632 = int_to_ptr.vmem [resolvable:$true] %s3631
      %s3633 = sshll.u32 %s7, 4
      %s3634 = int_to_ptr.hbm [resolvable:$true] %s3633
      %3636 = dma.vmem_to_hbm [thread:$0]  %s3632, 32, %s3634, [#allocation4]
    $region57: #{tpu_custom_call.1} parent=1 // pred_fallthru
      _
    // Predicated region
    $region58: #{tpu_custom_call.1} parent=1 // pred_check
      _
    $region59: #{tpu_custom_call.1} parent=1 // pred_check_branch
      %3638 = sbr.rel (0) target = $region61
    $region60: #{tpu_custom_call.1} parent=1 // pred_region
      %3640 = dma.done [#allocation4], 32
    $region61: #{tpu_custom_call.1} parent=1 // pred_fallthru
      _
    %3641 = vsyncpa [#allocation3], 1
    %3642 = vsyncpa [#allocation6], 1
    %3643 = vsyncpa [#allocation9], 1
    %3644 = vsyncpa [#allocation12], 1
    %3645 = vsyncpa [#allocation4], 1

</llo_original>
